<compile_context>
chip_gen: v5e
topology: v5e:2x2
jax: 0.10.0
libtpu: 0.0.40
codegen_flags: <defaults>
</compile_context>

<pallas_src>
import math
from functools import partial

import jax
import jax.numpy as jnp
from jax.experimental import pallas as pl
from jax.experimental.pallas import tpu as pltpu


def _encoder_layer_kernel(x_ref, wqkv_ref, bqkv_ref, wo_ref, bo_ref,
                          g1_ref, be1_ref, w1_ref, b1_ref, w2_ref, b2_ref,
                          g2_ref, be2_ref, o_ref, *, n_heads, d_head, eps):
    # x_ref: (bb, L, D).  Weights pre-transposed to [in, out] (bf16); biases / LN params f32 (1, dim).
    bb, L, D = x_ref.shape
    M = bb * L

    xb = x_ref[...].reshape(M, D).astype(jnp.float32)      # f32 copy kept for the residual path
    xb_bf = xb.astype(jnp.bfloat16)

    # ---- QKV projection (1/sqrt(dh) already folded into the Q columns of Wqkv / bq) ----
    qkv = jnp.dot(xb_bf, wqkv_ref[...], preferred_element_type=jnp.float32) + bqkv_ref[...]  # (M, 3D)
    qkv_bf = qkv.astype(jnp.bfloat16)

    # ---- per-(batch, head) attention; full Wo applied ONCE after concatenating heads ----
    # attn_mask / tau / delta are not supported (the module is exercised with None).
    # TODO(synk): at production head counts / sequence lengths, replace this static unroll with a
    # batched lax.dot_general over an (H, L, dh) view and add Q-row tiling (flash-style) so the
    # live (L, L) score tensors stay bounded.
    slabs = []
    for b in range(bb):
        rows = slice(b * L, (b + 1) * L)
        heads = []
        for h in range(n_heads):
            q = qkv_bf[rows, h * d_head:(h + 1) * d_head]                      # (L, dh), pre-scaled
            k = qkv_bf[rows, D + h * d_head: D + (h + 1) * d_head]             # (L, dh)
            v = qkv_bf[rows, 2 * D + h * d_head: 2 * D + (h + 1) * d_head]     # (L, dh)
            s = jnp.dot(q, k.T, preferred_element_type=jnp.float32)            # (L, L)
            s = s - jnp.max(s, axis=-1, keepdims=True)
            p = jnp.exp(s)
            inv = pl.reciprocal(jnp.sum(p, axis=-1, keepdims=True), approx=True)   # EUP
            oh = jnp.dot(p.astype(jnp.bfloat16), v,
                         preferred_element_type=jnp.float32) * inv             # (L, dh)
            heads.append(oh)
        slabs.append(jnp.concatenate(heads, axis=-1))                          # (L, D)
    ctx = jnp.concatenate(slabs, axis=0) if bb > 1 else slabs[0]                # (M, D)
    attn_out = jnp.dot(ctx.astype(jnp.bfloat16), wo_ref[...],
                       preferred_element_type=jnp.float32) + bo_ref[...]       # (M, D)

    # ---- residual + LayerNorm1 (f32)   [dropout == identity at eval] ----
    x1 = xb + attn_out
    mu = jnp.mean(x1, axis=-1, keepdims=True)
    xc = x1 - mu
    var = jnp.mean(xc * xc, axis=-1, keepdims=True)
    x1 = xc * jax.lax.rsqrt(var + eps) * g1_ref[...] + be1_ref[...]            # (M, D)

    # ---- position-wise FFN: Conv1d(kernel=1) == per-token Linear, done in [M, D] layout ----
    hdn = jnp.dot(x1.astype(jnp.bfloat16), w1_ref[...],
                  preferred_element_type=jnp.float32) + b1_ref[...]             # (M, F)
    hdn = jnp.maximum(hdn, 0.0)                                                 # relu
    y = jnp.dot(hdn.astype(jnp.bfloat16), w2_ref[...],
                preferred_element_type=jnp.float32) + b2_ref[...]               # (M, D)

    # ---- residual + LayerNorm2 (f32) ----
    z = x1 + y
    mu2 = jnp.mean(z, axis=-1, keepdims=True)
    zc = z - mu2
    var2 = jnp.mean(zc * zc, axis=-1, keepdims=True)
    z = zc * jax.lax.rsqrt(var2 + eps) * g2_ref[...] + be2_ref[...]

    o_ref[...] = z.reshape(bb, L, D).astype(o_ref.dtype)


def encoder_layer(x, p, n_heads, eps=1e-5, block_b=1):
    """x: [B, L, D].  p holds torch-layout parameters:
       wq/wk/wv/wo [D, D], bq/bk/bv/bo [D], g1/be1/g2/be2 [D],
       w1 [F, D, 1], b1 [F], w2 [D, F, 1], b2 [D].
       block_b: batch elements per grid step (raise on v5e/v6e so block_b*L >= 128-256 rows)."""
    B, L, D = x.shape
    assert D % n_heads == 0 and B % block_b == 0
    dh = D // n_heads
    F = p["w1"].shape[0]
    scale = 1.0 / math.sqrt(dh)
    wdt = jnp.bfloat16   # matmul operand dtype; accumulation stays f32

    # One-time parameter re-layout (trace level):
    #   [out,in] -> [in,out], 1/sqrt(dh) folded into Q weights/bias, matmul weights cast to bf16.
    wqkv = jnp.concatenate([p["wq"].T * scale, p["wk"].T, p["wv"].T], axis=1).astype(wdt)  # [D, 3D]
    bqkv = jnp.concatenate([p["bq"] * scale, p["bk"], p["bv"]]).reshape(1, 3 * D).astype(jnp.float32)
    wo_t = p["wo"].T.astype(wdt)                                                # [D, D]
    bo = p["bo"].reshape(1, D).astype(jnp.float32)
    g1 = p["g1"].reshape(1, D).astype(jnp.float32)
    be1 = p["be1"].reshape(1, D).astype(jnp.float32)
    w1_t = p["w1"][:, :, 0].T.astype(wdt)                                       # [D, F]
    b1 = p["b1"].reshape(1, F).astype(jnp.float32)
    w2_t = p["w2"][:, :, 0].T.astype(wdt)                                       # [F, D]
    b2 = p["b2"].reshape(1, D).astype(jnp.float32)
    g2 = p["g2"].reshape(1, D).astype(jnp.float32)
    be2 = p["be2"].reshape(1, D).astype(jnp.float32)

    kernel = partial(_encoder_layer_kernel, n_heads=n_heads, d_head=dh, eps=eps)
    const = lambda b: (0, 0)  # weights / biases stay resident in VMEM across the grid

    # Explicit VMEM budget (matters on v7x's 64 MiB): bf16 weights + activation blocks + headroom.
    weight_bytes = int((wqkv.size + wo_t.size + w1_t.size + w2_t.size) * 2)
    act_bytes = int(block_b * L * D * x.dtype.itemsize)
    vmem_limit = int(min(100 * 1024 * 1024,
                         max(32 * 1024 * 1024,
                             2 * weight_bytes + 16 * act_bytes + 8 * 1024 * 1024)))

    cost = pl.CostEstimate(
        flops=int(2 * B * L * (4 * D * D + 2 * L * D + 2 * D * F)),
        transcendentals=int(B * n_heads * L * L),
        bytes_accessed=int(2 * B * L * D * x.dtype.itemsize + weight_bytes),
    )

    out = pl.pallas_call(
        kernel,
        out_shape=jax.ShapeDtypeStruct((B, L, D), x.dtype),
        grid_spec=pltpu.PrefetchScalarGridSpec(
            num_scalar_prefetch=0,
            grid=(B // block_b,),
            in_specs=[
                pl.BlockSpec((block_b, L, D), lambda b: (b, 0, 0)),  # x
                pl.BlockSpec((D, 3 * D), const),                     # Wqkv (bf16, Q pre-scaled)
                pl.BlockSpec((1, 3 * D), const),                     # bqkv (f32, bq pre-scaled)
                pl.BlockSpec((D, D), const),                         # Wo^T (bf16)
                pl.BlockSpec((1, D), const),                         # bo
                pl.BlockSpec((1, D), const),                         # LN1 gamma
                pl.BlockSpec((1, D), const),                         # LN1 beta
                pl.BlockSpec((D, F), const),                         # W1^T (conv1, k=1, bf16)
                pl.BlockSpec((1, F), const),                         # b1
                pl.BlockSpec((F, D), const),                         # W2^T (conv2, k=1, bf16)
                pl.BlockSpec((1, D), const),                         # b2
                pl.BlockSpec((1, D), const),                         # LN2 gamma
                pl.BlockSpec((1, D), const),                         # LN2 beta
            ],
            out_specs=pl.BlockSpec((block_b, L, D), lambda b: (b, 0, 0)),
        ),
        compiler_params=pltpu.CompilerParams(
            dimension_semantics=("parallel",),
            vmem_limit_bytes=vmem_limit,
        ),
        cost_estimate=cost,
    )(x, wqkv, bqkv, wo_t, bo, g1, be1, w1_t, b1, w2_t, b2, g2, be2)

    # FullAttention(output_attention=False) returns None for the attention weights.
    return out, None


# ---------------- pure-JAX reference (mirrors the PyTorch forward, f32) ----------------
def _layer_norm(x, g, b, eps=1e-5):
    mu = jnp.mean(x, axis=-1, keepdims=True)
    var = jnp.mean((x - mu) ** 2, axis=-1, keepdims=True)
    return (x - mu) * jax.lax.rsqrt(var + eps) * g + b


def encoder_layer_ref(x, p, n_heads, eps=1e-5):
    B, L, D = x.shape
    dh = D // n_heads
    q = (x @ p["wq"].T + p["bq"]).reshape(B, L, n_heads, dh)
    k = (x @ p["wk"].T + p["bk"]).reshape(B, L, n_heads, dh)
    v = (x @ p["wv"].T + p["bv"]).reshape(B, L, n_heads, dh)
    s = jnp.einsum("blhe,bshe->bhls", q, k) * (1.0 / math.sqrt(dh))
    a = jax.nn.softmax(s, axis=-1)
    o = jnp.einsum("bhls,bshd->blhd", a, v).reshape(B, L, D)
    new_x = o @ p["wo"].T + p["bo"]
    x1 = _layer_norm(x + new_x, p["g1"], p["be1"], eps)
    hdn = jax.nn.relu(x1 @ p["w1"][:, :, 0].T + p["b1"])
    y = hdn @ p["w2"][:, :, 0].T + p["b2"]
    return _layer_norm(x1 + y, p["g2"], p["be2"], eps)


if __name__ == "__main__":
    # Small but lane-dense shapes: batch=2, seq=64, d_model=128, heads=4, d_ff=4*d_model=512.
    B, L, D, H = 2, 64, 128, 4
    F = 4 * D

    key = jax.random.PRNGKey(0)
    ks = jax.random.split(key, 20)

    x = jax.random.normal(ks[0], (B, L, D), dtype=jnp.float32)

    def w(k, shape, scale=0.05):
        return scale * jax.random.normal(k, shape, dtype=jnp.float32)

    p = {
        "wq": w(ks[1], (D, D)), "bq": w(ks[2], (D,)),
        "wk": w(ks[3], (D, D)), "bk": w(ks[4], (D,)),
        "wv": w(ks[5], (D, D)), "bv": w(ks[6], (D,)),
        "wo": w(ks[7], (D, D)), "bo": w(ks[8], (D,)),
        "g1": 1.0 + 0.1 * jax.random.normal(ks[9], (D,), dtype=jnp.float32),
        "be1": 0.1 * jax.random.normal(ks[10], (D,), dtype=jnp.float32),
        "w1": w(ks[11], (F, D, 1)), "b1": w(ks[12], (F,)),   # Conv1d(d_model->d_ff, k=1)
        "w2": w(ks[13], (D, F, 1)), "b2": w(ks[14], (D,)),   # Conv1d(d_ff->d_model, k=1)
        "g2": 1.0 + 0.1 * jax.random.normal(ks[15], (D,), dtype=jnp.float32),
        "be2": 0.1 * jax.random.normal(ks[16], (D,), dtype=jnp.float32),
    }

    # block_b=1 keeps a 2-step parallel grid (both v7x cores busy); raise block_b on v5e/v6e to
    # pack more rows per matmul.
    out, attn = encoder_layer(x, p, n_heads=H, block_b=1)
    out = jax.block_until_ready(out)

    ref = encoder_layer_ref(x, p, n_heads=H)
    assert out.shape == (B, L, D)
    max_err = float(jnp.max(jnp.abs(out - ref)))
    # bf16 matmul operands + approx reciprocal softmax denom => slightly widened tolerance.
    assert jnp.allclose(out, ref, atol=5e-2, rtol=5e-2), f"max abs err = {max_err}"

    print("KERNEL_OK")
</pallas_src>

<mosaic_0001>
module attributes {stable_mosaic.version = 11 : i64} {
  func.func @_encoder_layer_kernel(%arg0: i32, %arg1: memref<1x64x128xf32, #tpu.memory_space<vmem>>, %arg2: memref<128x384xbf16, #tpu.memory_space<vmem>>, %arg3: memref<1x384xf32, #tpu.memory_space<vmem>>, %arg4: memref<128x128xbf16, #tpu.memory_space<vmem>>, %arg5: memref<1x128xf32, #tpu.memory_space<vmem>>, %arg6: memref<1x128xf32, #tpu.memory_space<vmem>>, %arg7: memref<1x128xf32, #tpu.memory_space<vmem>>, %arg8: memref<128x512xbf16, #tpu.memory_space<vmem>>, %arg9: memref<1x512xf32, #tpu.memory_space<vmem>>, %arg10: memref<512x128xbf16, #tpu.memory_space<vmem>>, %arg11: memref<1x128xf32, #tpu.memory_space<vmem>>, %arg12: memref<1x128xf32, #tpu.memory_space<vmem>>, %arg13: memref<1x128xf32, #tpu.memory_space<vmem>>, %arg14: memref<1x64x128xf32, #tpu.memory_space<vmem>>) attributes {dimension_semantics = [#tpu.dimension_semantics<parallel>], iteration_bounds = array<i64: 2>, scalar_prefetch = 0 : i64, scratch_operands = 0 : i64, tpu.core_type = #tpu.core_type<tc>, window_params = [{transform_indices = @transform_0, window_bounds = array<i64: 1, 64, 128>}, {pipeline_mode = #tpu.pipeline_mode<synchronous>, transform_indices = @transform_1, window_bounds = array<i64: 128, 384>}, {pipeline_mode = #tpu.pipeline_mode<synchronous>, transform_indices = @transform_2, window_bounds = array<i64: 1, 384>}, {pipeline_mode = #tpu.pipeline_mode<synchronous>, transform_indices = @transform_3, window_bounds = array<i64: 128, 128>}, {pipeline_mode = #tpu.pipeline_mode<synchronous>, transform_indices = @transform_4, window_bounds = array<i64: 1, 128>}, {pipeline_mode = #tpu.pipeline_mode<synchronous>, transform_indices = @transform_5, window_bounds = array<i64: 1, 128>}, {pipeline_mode = #tpu.pipeline_mode<synchronous>, transform_indices = @transform_6, window_bounds = array<i64: 1, 128>}, {pipeline_mode = #tpu.pipeline_mode<synchronous>, transform_indices = @transform_7, window_bounds = array<i64: 128, 512>}, {pipeline_mode = #tpu.pipeline_mode<synchronous>, transform_indices = @transform_8, window_bounds = array<i64: 1, 512>}, {pipeline_mode = #tpu.pipeline_mode<synchronous>, transform_indices = @transform_9, window_bounds = array<i64: 512, 128>}, {pipeline_mode = #tpu.pipeline_mode<synchronous>, transform_indices = @transform_10, window_bounds = array<i64: 1, 128>}, {pipeline_mode = #tpu.pipeline_mode<synchronous>, transform_indices = @transform_11, window_bounds = array<i64: 1, 128>}, {pipeline_mode = #tpu.pipeline_mode<synchronous>, transform_indices = @transform_12, window_bounds = array<i64: 1, 128>}, {transform_indices = @transform_13, window_bounds = array<i64: 1, 64, 128>}]} {
    %c0 = arith.constant 0 : index
    %c0_0 = arith.constant 0 : index
    %c0_1 = arith.constant 0 : index
    %0 = vector.load %arg1[%c0, %c0_0, %c0_1] : memref<1x64x128xf32, #tpu.memory_space<vmem>>, vector<1x64x128xf32>
    %1 = vector.shape_cast %0 : vector<1x64x128xf32> to vector<64x128xf32>
    %2 = arith.truncf %1 : vector<64x128xf32> to vector<64x128xbf16>
    %c0_2 = arith.constant 0 : index
    %c0_3 = arith.constant 0 : index
    %3 = vector.load %arg2[%c0_2, %c0_3] : memref<128x384xbf16, #tpu.memory_space<vmem>>, vector<128x384xbf16>
    %cst = arith.constant dense<0.000000e+00> : vector<64x384xf32>
    %4 = tpu.matmul %2, %3, %cst {dimension_numbers = #tpu.dot_dimension_numbers<[1], [0], [0], [1], [0, 0, 1, 1], [], []>} : vector<64x128xbf16>, vector<128x384xbf16>, vector<64x384xf32> -> vector<64x384xf32>
    %c0_4 = arith.constant 0 : index
    %c0_5 = arith.constant 0 : index
    %5 = vector.load %arg3[%c0_4, %c0_5] : memref<1x384xf32, #tpu.memory_space<vmem>>, vector<1x384xf32>
    %6 = vector.broadcast %5 : vector<1x384xf32> to vector<64x384xf32>
    %7 = arith.addf %4, %6 : vector<64x384xf32>
    %8 = arith.truncf %7 : vector<64x384xf32> to vector<64x384xbf16>
    %9 = vector.extract_strided_slice %8 {offsets = [0, 0], sizes = [64, 32], strides = [1, 1]} : vector<64x384xbf16> to vector<64x32xbf16>
    %10 = vector.extract_strided_slice %8 {offsets = [0, 128], sizes = [64, 32], strides = [1, 1]} : vector<64x384xbf16> to vector<64x32xbf16>
    %11 = vector.extract_strided_slice %8 {offsets = [0, 256], sizes = [64, 32], strides = [1, 1]} : vector<64x384xbf16> to vector<64x32xbf16>
    %12 = tpu.transpose %10, [1, 0] : vector<64x32xbf16> -> vector<32x64xbf16>
    %cst_6 = arith.constant dense<0.000000e+00> : vector<64x64xf32>
    %13 = tpu.matmul %9, %12, %cst_6 {dimension_numbers = #tpu.dot_dimension_numbers<[1], [0], [0], [1], [0, 0, 1, 1], [], []>} : vector<64x32xbf16>, vector<32x64xbf16>, vector<64x64xf32> -> vector<64x64xf32>
    %cst_7 = arith.constant dense<0xFF800000> : vector<64xf32>
    %14 = vector.multi_reduction <maximumf>, %13, %cst_7 [1] : vector<64x64xf32> to vector<64xf32>
    %15 = vector.shape_cast %14 : vector<64xf32> to vector<64x1xf32>
    %16 = vector.broadcast %15 : vector<64x1xf32> to vector<64x64xf32>
    %17 = arith.subf %13, %16 : vector<64x64xf32>
    %18 = math.exp %17 : vector<64x64xf32>
    %cst_8 = arith.constant dense<0.000000e+00> : vector<64xf32>
    %19 = vector.multi_reduction <add>, %18, %cst_8 [1] : vector<64x64xf32> to vector<64xf32>
    %20 = vector.shape_cast %19 : vector<64xf32> to vector<64x1xf32>
    %21 = tpu.reciprocal %20 {approx = true} : vector<64x1xf32> -> vector<64x1xf32>
    %22 = arith.truncf %18 : vector<64x64xf32> to vector<64x64xbf16>
    %cst_9 = arith.constant dense<0.000000e+00> : vector<64x32xf32>
    %23 = tpu.matmul %22, %11, %cst_9 {dimension_numbers = #tpu.dot_dimension_numbers<[1], [0], [0], [1], [0, 0, 1, 1], [], []>} : vector<64x64xbf16>, vector<64x32xbf16>, vector<64x32xf32> -> vector<64x32xf32>
    %24 = vector.broadcast %21 : vector<64x1xf32> to vector<64x32xf32>
    %25 = arith.mulf %23, %24 : vector<64x32xf32>
    %26 = vector.extract_strided_slice %8 {offsets = [0, 32], sizes = [64, 32], strides = [1, 1]} : vector<64x384xbf16> to vector<64x32xbf16>
    %27 = vector.extract_strided_slice %8 {offsets = [0, 160], sizes = [64, 32], strides = [1, 1]} : vector<64x384xbf16> to vector<64x32xbf16>
    %28 = vector.extract_strided_slice %8 {offsets = [0, 288], sizes = [64, 32], strides = [1, 1]} : vector<64x384xbf16> to vector<64x32xbf16>
    %29 = tpu.transpose %27, [1, 0] : vector<64x32xbf16> -> vector<32x64xbf16>
    %cst_10 = arith.constant dense<0.000000e+00> : vector<64x64xf32>
    %30 = tpu.matmul %26, %29, %cst_10 {dimension_numbers = #tpu.dot_dimension_numbers<[1], [0], [0], [1], [0, 0, 1, 1], [], []>} : vector<64x32xbf16>, vector<32x64xbf16>, vector<64x64xf32> -> vector<64x64xf32>
    %cst_11 = arith.constant dense<0xFF800000> : vector<64xf32>
    %31 = vector.multi_reduction <maximumf>, %30, %cst_11 [1] : vector<64x64xf32> to vector<64xf32>
    %32 = vector.shape_cast %31 : vector<64xf32> to vector<64x1xf32>
    %33 = vector.broadcast %32 : vector<64x1xf32> to vector<64x64xf32>
    %34 = arith.subf %30, %33 : vector<64x64xf32>
    %35 = math.exp %34 : vector<64x64xf32>
    %cst_12 = arith.constant dense<0.000000e+00> : vector<64xf32>
    %36 = vector.multi_reduction <add>, %35, %cst_12 [1] : vector<64x64xf32> to vector<64xf32>
    %37 = vector.shape_cast %36 : vector<64xf32> to vector<64x1xf32>
    %38 = tpu.reciprocal %37 {approx = true} : vector<64x1xf32> -> vector<64x1xf32>
    %39 = arith.truncf %35 : vector<64x64xf32> to vector<64x64xbf16>
    %cst_13 = arith.constant dense<0.000000e+00> : vector<64x32xf32>
    %40 = tpu.matmul %39, %28, %cst_13 {dimension_numbers = #tpu.dot_dimension_numbers<[1], [0], [0], [1], [0, 0, 1, 1], [], []>} : vector<64x64xbf16>, vector<64x32xbf16>, vector<64x32xf32> -> vector<64x32xf32>
    %41 = vector.broadcast %38 : vector<64x1xf32> to vector<64x32xf32>
    %42 = arith.mulf %40, %41 : vector<64x32xf32>
    %43 = vector.extract_strided_slice %8 {offsets = [0, 64], sizes = [64, 32], strides = [1, 1]} : vector<64x384xbf16> to vector<64x32xbf16>
    %44 = vector.extract_strided_slice %8 {offsets = [0, 192], sizes = [64, 32], strides = [1, 1]} : vector<64x384xbf16> to vector<64x32xbf16>
    %45 = vector.extract_strided_slice %8 {offsets = [0, 320], sizes = [64, 32], strides = [1, 1]} : vector<64x384xbf16> to vector<64x32xbf16>
    %46 = tpu.transpose %44, [1, 0] : vector<64x32xbf16> -> vector<32x64xbf16>
    %cst_14 = arith.constant dense<0.000000e+00> : vector<64x64xf32>
    %47 = tpu.matmul %43, %46, %cst_14 {dimension_numbers = #tpu.dot_dimension_numbers<[1], [0], [0], [1], [0, 0, 1, 1], [], []>} : vector<64x32xbf16>, vector<32x64xbf16>, vector<64x64xf32> -> vector<64x64xf32>
    %cst_15 = arith.constant dense<0xFF800000> : vector<64xf32>
    %48 = vector.multi_reduction <maximumf>, %47, %cst_15 [1] : vector<64x64xf32> to vector<64xf32>
    %49 = vector.shape_cast %48 : vector<64xf32> to vector<64x1xf32>
    %50 = vector.broadcast %49 : vector<64x1xf32> to vector<64x64xf32>
    %51 = arith.subf %47, %50 : vector<64x64xf32>
    %52 = math.exp %51 : vector<64x64xf32>
    %cst_16 = arith.constant dense<0.000000e+00> : vector<64xf32>
    %53 = vector.multi_reduction <add>, %52, %cst_16 [1] : vector<64x64xf32> to vector<64xf32>
    %54 = vector.shape_cast %53 : vector<64xf32> to vector<64x1xf32>
    %55 = tpu.reciprocal %54 {approx = true} : vector<64x1xf32> -> vector<64x1xf32>
    %56 = arith.truncf %52 : vector<64x64xf32> to vector<64x64xbf16>
    %cst_17 = arith.constant dense<0.000000e+00> : vector<64x32xf32>
    %57 = tpu.matmul %56, %45, %cst_17 {dimension_numbers = #tpu.dot_dimension_numbers<[1], [0], [0], [1], [0, 0, 1, 1], [], []>} : vector<64x64xbf16>, vector<64x32xbf16>, vector<64x32xf32> -> vector<64x32xf32>
    %58 = vector.broadcast %55 : vector<64x1xf32> to vector<64x32xf32>
    %59 = arith.mulf %57, %58 : vector<64x32xf32>
    %60 = vector.extract_strided_slice %8 {offsets = [0, 96], sizes = [64, 32], strides = [1, 1]} : vector<64x384xbf16> to vector<64x32xbf16>
    %61 = vector.extract_strided_slice %8 {offsets = [0, 224], sizes = [64, 32], strides = [1, 1]} : vector<64x384xbf16> to vector<64x32xbf16>
    %62 = vector.extract_strided_slice %8 {offsets = [0, 352], sizes = [64, 32], strides = [1, 1]} : vector<64x384xbf16> to vector<64x32xbf16>
    %63 = tpu.transpose %61, [1, 0] : vector<64x32xbf16> -> vector<32x64xbf16>
    %cst_18 = arith.constant dense<0.000000e+00> : vector<64x64xf32>
    %64 = tpu.matmul %60, %63, %cst_18 {dimension_numbers = #tpu.dot_dimension_numbers<[1], [0], [0], [1], [0, 0, 1, 1], [], []>} : vector<64x32xbf16>, vector<32x64xbf16>, vector<64x64xf32> -> vector<64x64xf32>
    %cst_19 = arith.constant dense<0xFF800000> : vector<64xf32>
    %65 = vector.multi_reduction <maximumf>, %64, %cst_19 [1] : vector<64x64xf32> to vector<64xf32>
    %66 = vector.shape_cast %65 : vector<64xf32> to vector<64x1xf32>
    %67 = vector.broadcast %66 : vector<64x1xf32> to vector<64x64xf32>
    %68 = arith.subf %64, %67 : vector<64x64xf32>
    %69 = math.exp %68 : vector<64x64xf32>
    %cst_20 = arith.constant dense<0.000000e+00> : vector<64xf32>
    %70 = vector.multi_reduction <add>, %69, %cst_20 [1] : vector<64x64xf32> to vector<64xf32>
    %71 = vector.shape_cast %70 : vector<64xf32> to vector<64x1xf32>
    %72 = tpu.reciprocal %71 {approx = true} : vector<64x1xf32> -> vector<64x1xf32>
    %73 = arith.truncf %69 : vector<64x64xf32> to vector<64x64xbf16>
    %cst_21 = arith.constant dense<0.000000e+00> : vector<64x32xf32>
    %74 = tpu.matmul %73, %62, %cst_21 {dimension_numbers = #tpu.dot_dimension_numbers<[1], [0], [0], [1], [0, 0, 1, 1], [], []>} : vector<64x64xbf16>, vector<64x32xbf16>, vector<64x32xf32> -> vector<64x32xf32>
    %75 = vector.broadcast %72 : vector<64x1xf32> to vector<64x32xf32>
    %76 = arith.mulf %74, %75 : vector<64x32xf32>
    %77 = tpu.concatenate %25, %42, %59, %76 in 1 : vector<64x32xf32>, vector<64x32xf32>, vector<64x32xf32>, vector<64x32xf32> -> vector<64x128xf32>
    %78 = arith.truncf %77 : vector<64x128xf32> to vector<64x128xbf16>
    %c0_22 = arith.constant 0 : index
    %c0_23 = arith.constant 0 : index
    %79 = vector.load %arg4[%c0_22, %c0_23] : memref<128x128xbf16, #tpu.memory_space<vmem>>, vector<128x128xbf16>
    %cst_24 = arith.constant dense<0.000000e+00> : vector<64x128xf32>
    %80 = tpu.matmul %78, %79, %cst_24 {dimension_numbers = #tpu.dot_dimension_numbers<[1], [0], [0], [1], [0, 0, 1, 1], [], []>} : vector<64x128xbf16>, vector<128x128xbf16>, vector<64x128xf32> -> vector<64x128xf32>
    %c0_25 = arith.constant 0 : index
    %c0_26 = arith.constant 0 : index
    %81 = vector.load %arg5[%c0_25, %c0_26] : memref<1x128xf32, #tpu.memory_space<vmem>>, vector<1x128xf32>
    %82 = vector.broadcast %81 : vector<1x128xf32> to vector<64x128xf32>
    %83 = arith.addf %80, %82 : vector<64x128xf32>
    %84 = arith.addf %1, %83 : vector<64x128xf32>
    %cst_27 = arith.constant dense<0.000000e+00> : vector<64xf32>
    %85 = vector.multi_reduction <add>, %84, %cst_27 [1] : vector<64x128xf32> to vector<64xf32>
    %86 = vector.shape_cast %85 : vector<64xf32> to vector<64x1xf32>
    %cst_28 = arith.constant 1.280000e+02 : f32
    %87 = vector.broadcast %cst_28 : f32 to vector<64x1xf32>
    %88 = arith.divf %86, %87 : vector<64x1xf32>
    %89 = vector.broadcast %88 : vector<64x1xf32> to vector<64x128xf32>
    %90 = arith.subf %84, %89 : vector<64x128xf32>
    %91 = arith.mulf %90, %90 : vector<64x128xf32>
    %cst_29 = arith.constant dense<0.000000e+00> : vector<64xf32>
    %92 = vector.multi_reduction <add>, %91, %cst_29 [1] : vector<64x128xf32> to vector<64xf32>
    %93 = vector.shape_cast %92 : vector<64xf32> to vector<64x1xf32>
    %cst_30 = arith.constant 1.280000e+02 : f32
    %94 = vector.broadcast %cst_30 : f32 to vector<64x1xf32>
    %95 = arith.divf %93, %94 : vector<64x1xf32>
    %cst_31 = arith.constant 9.99999974E-6 : f32
    %96 = vector.broadcast %cst_31 : f32 to vector<64x1xf32>
    %97 = arith.addf %95, %96 : vector<64x1xf32>
    %98 = math.rsqrt %97 : vector<64x1xf32>
    %99 = vector.broadcast %98 : vector<64x1xf32> to vector<64x128xf32>
    %100 = arith.mulf %90, %99 : vector<64x128xf32>
    %c0_32 = arith.constant 0 : index
    %c0_33 = arith.constant 0 : index
    %101 = vector.load %arg6[%c0_32, %c0_33] : memref<1x128xf32, #tpu.memory_space<vmem>>, vector<1x128xf32>
    %102 = vector.broadcast %101 : vector<1x128xf32> to vector<64x128xf32>
    %103 = arith.mulf %100, %102 : vector<64x128xf32>
    %c0_34 = arith.constant 0 : index
    %c0_35 = arith.constant 0 : index
    %104 = vector.load %arg7[%c0_34, %c0_35] : memref<1x128xf32, #tpu.memory_space<vmem>>, vector<1x128xf32>
    %105 = vector.broadcast %104 : vector<1x128xf32> to vector<64x128xf32>
    %106 = arith.addf %103, %105 : vector<64x128xf32>
    %107 = arith.truncf %106 : vector<64x128xf32> to vector<64x128xbf16>
    %c0_36 = arith.constant 0 : index
    %c0_37 = arith.constant 0 : index
    %108 = vector.load %arg8[%c0_36, %c0_37] : memref<128x512xbf16, #tpu.memory_space<vmem>>, vector<128x512xbf16>
    %cst_38 = arith.constant dense<0.000000e+00> : vector<64x512xf32>
    %109 = tpu.matmul %107, %108, %cst_38 {dimension_numbers = #tpu.dot_dimension_numbers<[1], [0], [0], [1], [0, 0, 1, 1], [], []>} : vector<64x128xbf16>, vector<128x512xbf16>, vector<64x512xf32> -> vector<64x512xf32>
    %c0_39 = arith.constant 0 : index
    %c0_40 = arith.constant 0 : index
    %110 = vector.load %arg9[%c0_39, %c0_40] : memref<1x512xf32, #tpu.memory_space<vmem>>, vector<1x512xf32>
    %111 = vector.broadcast %110 : vector<1x512xf32> to vector<64x512xf32>
    %112 = arith.addf %109, %111 : vector<64x512xf32>
    %cst_41 = arith.constant 0.000000e+00 : f32
    %113 = vector.broadcast %cst_41 : f32 to vector<64x512xf32>
    %114 = arith.maximumf %112, %113 : vector<64x512xf32>
    %115 = arith.truncf %114 : vector<64x512xf32> to vector<64x512xbf16>
    %c0_42 = arith.constant 0 : index
    %c0_43 = arith.constant 0 : index
    %116 = vector.load %arg10[%c0_42, %c0_43] : memref<512x128xbf16, #tpu.memory_space<vmem>>, vector<512x128xbf16>
    %cst_44 = arith.constant dense<0.000000e+00> : vector<64x128xf32>
    %117 = tpu.matmul %115, %116, %cst_44 {dimension_numbers = #tpu.dot_dimension_numbers<[1], [0], [0], [1], [0, 0, 1, 1], [], []>} : vector<64x512xbf16>, vector<512x128xbf16>, vector<64x128xf32> -> vector<64x128xf32>
    %c0_45 = arith.constant 0 : index
    %c0_46 = arith.constant 0 : index
    %118 = vector.load %arg11[%c0_45, %c0_46] : memref<1x128xf32, #tpu.memory_space<vmem>>, vector<1x128xf32>
    %119 = vector.broadcast %118 : vector<1x128xf32> to vector<64x128xf32>
    %120 = arith.addf %117, %119 : vector<64x128xf32>
    %121 = arith.addf %106, %120 : vector<64x128xf32>
    %cst_47 = arith.constant dense<0.000000e+00> : vector<64xf32>
    %122 = vector.multi_reduction <add>, %121, %cst_47 [1] : vector<64x128xf32> to vector<64xf32>
    %123 = vector.shape_cast %122 : vector<64xf32> to vector<64x1xf32>
    %cst_48 = arith.constant 1.280000e+02 : f32
    %124 = vector.broadcast %cst_48 : f32 to vector<64x1xf32>
    %125 = arith.divf %123, %124 : vector<64x1xf32>
    %126 = vector.broadcast %125 : vector<64x1xf32> to vector<64x128xf32>
    %127 = arith.subf %121, %126 : vector<64x128xf32>
    %128 = arith.mulf %127, %127 : vector<64x128xf32>
    %cst_49 = arith.constant dense<0.000000e+00> : vector<64xf32>
    %129 = vector.multi_reduction <add>, %128, %cst_49 [1] : vector<64x128xf32> to vector<64xf32>
    %130 = vector.shape_cast %129 : vector<64xf32> to vector<64x1xf32>
    %cst_50 = arith.constant 1.280000e+02 : f32
    %131 = vector.broadcast %cst_50 : f32 to vector<64x1xf32>
    %132 = arith.divf %130, %131 : vector<64x1xf32>
    %cst_51 = arith.constant 9.99999974E-6 : f32
    %133 = vector.broadcast %cst_51 : f32 to vector<64x1xf32>
    %134 = arith.addf %132, %133 : vector<64x1xf32>
    %135 = math.rsqrt %134 : vector<64x1xf32>
    %136 = vector.broadcast %135 : vector<64x1xf32> to vector<64x128xf32>
    %137 = arith.mulf %127, %136 : vector<64x128xf32>
    %c0_52 = arith.constant 0 : index
    %c0_53 = arith.constant 0 : index
    %138 = vector.load %arg12[%c0_52, %c0_53] : memref<1x128xf32, #tpu.memory_space<vmem>>, vector<1x128xf32>
    %139 = vector.broadcast %138 : vector<1x128xf32> to vector<64x128xf32>
    %140 = arith.mulf %137, %139 : vector<64x128xf32>
    %c0_54 = arith.constant 0 : index
    %c0_55 = arith.constant 0 : index
    %141 = vector.load %arg13[%c0_54, %c0_55] : memref<1x128xf32, #tpu.memory_space<vmem>>, vector<1x128xf32>
    %142 = vector.broadcast %141 : vector<1x128xf32> to vector<64x128xf32>
    %143 = arith.addf %140, %142 : vector<64x128xf32>
    %144 = vector.shape_cast %143 : vector<64x128xf32> to vector<1x64x128xf32>
    %c0_56 = arith.constant 0 : index
    %c0_57 = arith.constant 0 : index
    %c0_58 = arith.constant 0 : index
    %145 = vector.load %arg14[%c0_56, %c0_57, %c0_58] : memref<1x64x128xf32, #tpu.memory_space<vmem>>, vector<1x64x128xf32>
    tpu.vector_store %arg14[%c0_56, %c0_57, %c0_58], %144 {strides = array<i32>} : memref<1x64x128xf32, #tpu.memory_space<vmem>>, vector<1x64x128xf32>,
    return
  }
  func.func @transform_0(%arg0: i32) -> (i32, i32, i32) {
    %c0_i32 = arith.constant 0 : i32
    %c0_i32_0 = arith.constant 0 : i32
    %c0_i32_1 = arith.constant 0 : i32
    return %arg0, %c0_i32, %c0_i32_0 : i32, i32, i32
  }
  func.func @transform_1(%arg0: i32) -> (i32, i32) {
    %c0_i32 = arith.constant 0 : i32
    %c0_i32_0 = arith.constant 0 : i32
    %c0_i32_1 = arith.constant 0 : i32
    return %c0_i32, %c0_i32_0 : i32, i32
  }
  func.func @transform_2(%arg0: i32) -> (i32, i32) {
    %c0_i32 = arith.constant 0 : i32
    %c0_i32_0 = arith.constant 0 : i32
    %c0_i32_1 = arith.constant 0 : i32
    return %c0_i32, %c0_i32_0 : i32, i32
  }
  func.func @transform_3(%arg0: i32) -> (i32, i32) {
    %c0_i32 = arith.constant 0 : i32
    %c0_i32_0 = arith.constant 0 : i32
    %c0_i32_1 = arith.constant 0 : i32
    return %c0_i32, %c0_i32_0 : i32, i32
  }
  func.func @transform_4(%arg0: i32) -> (i32, i32) {
    %c0_i32 = arith.constant 0 : i32
    %c0_i32_0 = arith.constant 0 : i32
    %c0_i32_1 = arith.constant 0 : i32
    return %c0_i32, %c0_i32_0 : i32, i32
  }
  func.func @transform_5(%arg0: i32) -> (i32, i32) {
    %c0_i32 = arith.constant 0 : i32
    %c0_i32_0 = arith.constant 0 : i32
    %c0_i32_1 = arith.constant 0 : i32
    return %c0_i32, %c0_i32_0 : i32, i32
  }
  func.func @transform_6(%arg0: i32) -> (i32, i32) {
    %c0_i32 = arith.constant 0 : i32
    %c0_i32_0 = arith.constant 0 : i32
    %c0_i32_1 = arith.constant 0 : i32
    return %c0_i32, %c0_i32_0 : i32, i32
  }
  func.func @transform_7(%arg0: i32) -> (i32, i32) {
    %c0_i32 = arith.constant 0 : i32
    %c0_i32_0 = arith.constant 0 : i32
    %c0_i32_1 = arith.constant 0 : i32
    return %c0_i32, %c0_i32_0 : i32, i32
  }
  func.func @transform_8(%arg0: i32) -> (i32, i32) {
    %c0_i32 = arith.constant 0 : i32
    %c0_i32_0 = arith.constant 0 : i32
    %c0_i32_1 = arith.constant 0 : i32
    return %c0_i32, %c0_i32_0 : i32, i32
  }
  func.func @transform_9(%arg0: i32) -> (i32, i32) {
    %c0_i32 = arith.constant 0 : i32
    %c0_i32_0 = arith.constant 0 : i32
    %c0_i32_1 = arith.constant 0 : i32
    return %c0_i32, %c0_i32_0 : i32, i32
  }
  func.func @transform_10(%arg0: i32) -> (i32, i32) {
    %c0_i32 = arith.constant 0 : i32
    %c0_i32_0 = arith.constant 0 : i32
    %c0_i32_1 = arith.constant 0 : i32
    return %c0_i32, %c0_i32_0 : i32, i32
  }
  func.func @transform_11(%arg0: i32) -> (i32, i32) {
    %c0_i32 = arith.constant 0 : i32
    %c0_i32_0 = arith.constant 0 : i32
    %c0_i32_1 = arith.constant 0 : i32
    return %c0_i32, %c0_i32_0 : i32, i32
  }
  func.func @transform_12(%arg0: i32) -> (i32, i32) {
    %c0_i32 = arith.constant 0 : i32
    %c0_i32_0 = arith.constant 0 : i32
    %c0_i32_1 = arith.constant 0 : i32
    return %c0_i32, %c0_i32_0 : i32, i32
  }
  func.func @transform_13(%arg0: i32) -> (i32, i32, i32) {
    %c0_i32 = arith.constant 0 : i32
    %c0_i32_0 = arith.constant 0 : i32
    %c0_i32_1 = arith.constant 0 : i32
    return %arg0, %c0_i32, %c0_i32_0 : i32, i32, i32
  }
}

</mosaic_0001>

<llo_original>
// kernel: tpu_custom_call.1
$region0: #{tpu_custom_call.1}
  #allocation0 [shape = 'u32[]', space=smem, size = 0x4, offset = 0x4, fixed_abs, tag = 'smem constant byte address 0x4 - core index']
  #allocation1 [shape = 'u32[72,128]{1,0:T(1,128)}', space=vmem, size = 0x9000, scoped, tag = 'internal scratch']
  %s0 = inlined_call_operand.hbm [shape: f32[2,64,128], index: 0, kind: input, shape index: {}]
  %s1 = inlined_call_operand.hbm [shape: bf16[128,384], index: 1, kind: input, shape index: {}]
  %s2 = inlined_call_operand.hbm [shape: f32[1,384], index: 2, kind: input, shape index: {}]
  %s3 = inlined_call_operand.hbm [shape: bf16[128,128], index: 3, kind: input, shape index: {}]
  %s4 = inlined_call_operand.vmem [shape: f32[1,128], index: 4, kind: input, shape index: {}]
  %s5 = inlined_call_operand.vmem [shape: f32[1,128], index: 5, kind: input, shape index: {}]
  %s6 = inlined_call_operand.vmem [shape: f32[1,128], index: 6, kind: input, shape index: {}]
  %s7 = inlined_call_operand.hbm [shape: bf16[128,512], index: 7, kind: input, shape index: {}]
  %s8 = inlined_call_operand.vmem [shape: f32[1,512], index: 8, kind: input, shape index: {}]
  %s9 = inlined_call_operand.hbm [shape: bf16[512,128], index: 9, kind: input, shape index: {}]
  %s10 = inlined_call_operand.vmem [shape: f32[1,128], index: 10, kind: input, shape index: {}]
  %s11 = inlined_call_operand.vmem [shape: f32[1,128], index: 11, kind: input, shape index: {}]
  %s12 = inlined_call_operand.vmem [shape: f32[1,128], index: 12, kind: input, shape index: {}]
  %s13 = inlined_call_operand.hbm [shape: f32[2,64,128], index: 13, kind: output, shape index: {}]
  %s14 = sld [smem:[#allocation0]]
  $region109: #{tpu_custom_call.1} parent=0
    _
  %s16 = ssub.s32 1, %s14
  %s17 = scalar_select 0, %s16, %s14
  $region1: #{tpu_custom_call.1} parent=0
    #allocation2 [shape = 'u8[65536]{0}', space=vmem, size = 0x10000, scoped, tag = 'input window, operand 0']
    #allocation3 [shape = 's32[2]{0}', space=sflag, size = 0x8, scoped, tag = 'scoped memory for tpu_custom_call.1']
    #allocation4 [shape = 's32[2]{0}', space=sflag, size = 0x8, scoped, tag = 'scoped memory for tpu_custom_call.1']
    #allocation5 [shape = 'u8[98304]{0}', space=vmem, size = 0x18000, scoped, tag = 'input window, operand 1, single buffered']
    #allocation6 [shape = 's32[1]{0}', space=sflag, size = 0x4, scoped, tag = 'scoped memory for tpu_custom_call.1']
    #allocation7 [shape = 'u8[1536]{0}', space=vmem, size = 0x800, scoped, tag = 'input window, operand 2, single buffered']
    #allocation8 [shape = 'u8[32768]{0}', space=vmem, size = 0x8000, scoped, tag = 'input window, operand 3, single buffered']
    #allocation9 [shape = 's32[1]{0}', space=sflag, size = 0x4, scoped, tag = 'scoped memory for tpu_custom_call.1']
    #allocation10 [shape = 'u8[131072]{0}', space=vmem, size = 0x20000, scoped, tag = 'input window, operand 7, single buffered']
    #allocation11 [shape = 'u8[131072]{0}', space=vmem, size = 0x20000, scoped, tag = 'input window, operand 9, single buffered']
    #allocation12 [shape = 's32[1]{0}', space=sflag, size = 0x4, scoped, tag = 'scoped memory for tpu_custom_call.1']
    #allocation13 [shape = 'u8[65536]{0}', space=vmem, size = 0x10000, scoped, tag = 'output window, operand 0']
    %18 = vsyncpa [#allocation3], 0
    %s19 = scalar_lea.sflag [#allocation3], 1
    %20 = vsyncpa %s19, 0
    %21 = vsyncpa [#allocation6], 0
    %22 = vsyncpa [#allocation9], 0
    %23 = vsyncpa [#allocation12], 0
    %24 = vsyncpa [#allocation4], 0
    %s25 = scalar_lea.sflag [#allocation4], 1
    %26 = vsyncpa %s25, 0
    loop: start=0, step=1, limit=4
    $region2: #{tpu_custom_call.1} parent=1 // loop_pre_header
      _
    $region3: #{tpu_custom_call.1} parent=1 // loop_header
      %s28 = sphi 0, %s32
      %p29 = scmp.ge.s32.totalorder %s28, 4
      %s38 = sphi 0, %s40
      %s41 = sphi 0, %s38
      %s42 = sphi 0, %s41
      %s58 = sphi 0, %s42
      %s62 = sphi 0, %s62
      %s64 = sphi 0, %s62
      %s65 = sphi 0, %s64
      %s79 = sphi 0, %s65
      %s83 = sphi 0, %s83
      %s85 = sphi 0, %s83
      %s86 = sphi 0, %s85
      %s100 = sphi 0, %s86
      %s104 = sphi 0, %s104
      %s106 = sphi 0, %s104
      %s107 = sphi 0, %s106
      %s121 = sphi 0, %s107
      %s125 = sphi 0, %s125
      %s127 = sphi 0, %s125
      %s128 = sphi 0, %s127
      %s142 = sphi 0, %s128
      %s146 = sphi 0, %s146
      %s148 = sphi 0, %s146
      %s149 = sphi 0, %s148
      %s163 = sphi 0, %s149
      %s167 = sphi 0, %s167
      %s169 = sphi 0, %s167
      %s170 = sphi 0, %s169
      %s184 = sphi 0, %s170
      %s188 = sphi 0, %s188
      %s190 = sphi 0, %s188
      %s191 = sphi 0, %s190
      %s205 = sphi 0, %s191
      %s209 = sphi 0, %s209
      %s211 = sphi 0, %s209
      %s212 = sphi 0, %s211
      %s226 = sphi 0, %s212
      %s230 = sphi 0, %s230
      %s232 = sphi 0, %s230
      %s233 = sphi 0, %s232
      %s247 = sphi 0, %s233
      %s251 = sphi 0, %s251
      %s253 = sphi 0, %s251
      %s254 = sphi 0, %s253
      %s268 = sphi 0, %s254
      %s272 = sphi 0, %s272
      %s274 = sphi 0, %s272
      %s275 = sphi 0, %s274
      %s289 = sphi 0, %s275
      %s293 = sphi 0, %s293
      %s295 = sphi 0, %s293
      %s296 = sphi 0, %s295
      %s310 = sphi 0, %s296
      %s316 = sphi 0, %s318
      %s319 = sphi 0, %s316
      %s320 = sphi 0, %s319
      %s336 = sphi 0, %s320
    $region4: #{tpu_custom_call.1} parent=1 // loop_header_branch
      %31 = sbr.rel (%p29) target = $region8
    $region5: #{tpu_custom_call.1} parent=1 // loop_body
      %s33 = ssub.s32 %s28, 1
      %s34 = ssub.s32 %s28, 2
      %s35 = sadd.s32 %s28, 1
      %s36 = ssub.s32 %s28, %s35
      %p37 = scmp.eq.s32.totalorder %s36, 0
      %s39 = sadd.s32 %s38, 1
      %s40 = scalar_select %p37, %s38, %s39
      %p43 = pneg %p37
      %p44 = scmp.eq.s32.totalorder %s28, 1
      %p45 = por %p43, %p44
      %p46 = scmp.ne.s32.totalorder %s38, %s41
      %p47 = scmp.eq.s32.totalorder %s28, 0
      %p48 = por %p46, %p47
      %p49 = scmp.ne.s32.totalorder %s38, %s41
      %p50 = scmp.eq.s32.totalorder %s33, 1
      %p51 = por %p49, %p50
      %p52 = scmp.ne.s32.totalorder %s41, %s42
      %p53 = scmp.eq.s32.totalorder %s33, 0
      %p54 = por %p52, %p53
      %p55 = scmp.ne.s32.totalorder %s41, %s42
      %p56 = scmp.eq.s32.totalorder %s34, 1
      %p57 = por %p55, %p56
      %p59 = scmp.ne.s32.totalorder %s42, %s58
      %p60 = scmp.eq.s32.totalorder %s34, 0
      %p61 = por %p59, %p60
      %s63 = sadd.s32 %s62, 1
      %p66 = scmp.eq.s32.totalorder %s28, 1
      %p67 = scmp.ne.s32.totalorder %s62, %s64
      %p68 = scmp.eq.s32.totalorder %s28, 0
      %p69 = por %p67, %p68
      %p70 = scmp.ne.s32.totalorder %s62, %s64
      %p71 = scmp.eq.s32.totalorder %s33, 1
      %p72 = por %p70, %p71
      %p73 = scmp.ne.s32.totalorder %s64, %s65
      %p74 = scmp.eq.s32.totalorder %s33, 0
      %p75 = por %p73, %p74
      %p76 = scmp.ne.s32.totalorder %s64, %s65
      %p77 = scmp.eq.s32.totalorder %s34, 1
      %p78 = por %p76, %p77
      %p80 = scmp.ne.s32.totalorder %s65, %s79
      %p81 = scmp.eq.s32.totalorder %s34, 0
      %p82 = por %p80, %p81
      %s84 = sadd.s32 %s83, 1
      %p87 = scmp.eq.s32.totalorder %s28, 1
      %p88 = scmp.ne.s32.totalorder %s83, %s85
      %p89 = scmp.eq.s32.totalorder %s28, 0
      %p90 = por %p88, %p89
      %p91 = scmp.ne.s32.totalorder %s83, %s85
      %p92 = scmp.eq.s32.totalorder %s33, 1
      %p93 = por %p91, %p92
      %p94 = scmp.ne.s32.totalorder %s85, %s86
      %p95 = scmp.eq.s32.totalorder %s33, 0
      %p96 = por %p94, %p95
      %p97 = scmp.ne.s32.totalorder %s85, %s86
      %p98 = scmp.eq.s32.totalorder %s34, 1
      %p99 = por %p97, %p98
      %p101 = scmp.ne.s32.totalorder %s86, %s100
      %p102 = scmp.eq.s32.totalorder %s34, 0
      %p103 = por %p101, %p102
      %s105 = sadd.s32 %s104, 1
      %p108 = scmp.eq.s32.totalorder %s28, 1
      %p109 = scmp.ne.s32.totalorder %s104, %s106
      %p110 = scmp.eq.s32.totalorder %s28, 0
      %p111 = por %p109, %p110
      %p112 = scmp.ne.s32.totalorder %s104, %s106
      %p113 = scmp.eq.s32.totalorder %s33, 1
      %p114 = por %p112, %p113
      %p115 = scmp.ne.s32.totalorder %s106, %s107
      %p116 = scmp.eq.s32.totalorder %s33, 0
      %p117 = por %p115, %p116
      %p118 = scmp.ne.s32.totalorder %s106, %s107
      %p119 = scmp.eq.s32.totalorder %s34, 1
      %p120 = por %p118, %p119
      %p122 = scmp.ne.s32.totalorder %s107, %s121
      %p123 = scmp.eq.s32.totalorder %s34, 0
      %p124 = por %p122, %p123
      %s126 = sadd.s32 %s125, 1
      %p129 = scmp.eq.s32.totalorder %s28, 1
      %p130 = scmp.ne.s32.totalorder %s125, %s127
      %p131 = scmp.eq.s32.totalorder %s28, 0
      %p132 = por %p130, %p131
      %p133 = scmp.ne.s32.totalorder %s125, %s127
      %p134 = scmp.eq.s32.totalorder %s33, 1
      %p135 = por %p133, %p134
      %p136 = scmp.ne.s32.totalorder %s127, %s128
      %p137 = scmp.eq.s32.totalorder %s33, 0
      %p138 = por %p136, %p137
      %p139 = scmp.ne.s32.totalorder %s127, %s128
      %p140 = scmp.eq.s32.totalorder %s34, 1
      %p141 = por %p139, %p140
      %p143 = scmp.ne.s32.totalorder %s128, %s142
      %p144 = scmp.eq.s32.totalorder %s34, 0
      %p145 = por %p143, %p144
      %s147 = sadd.s32 %s146, 1
      %p150 = scmp.eq.s32.totalorder %s28, 1
      %p151 = scmp.ne.s32.totalorder %s146, %s148
      %p152 = scmp.eq.s32.totalorder %s28, 0
      %p153 = por %p151, %p152
      %p154 = scmp.ne.s32.totalorder %s146, %s148
      %p155 = scmp.eq.s32.totalorder %s33, 1
      %p156 = por %p154, %p155
      %p157 = scmp.ne.s32.totalorder %s148, %s149
      %p158 = scmp.eq.s32.totalorder %s33, 0
      %p159 = por %p157, %p158
      %p160 = scmp.ne.s32.totalorder %s148, %s149
      %p161 = scmp.eq.s32.totalorder %s34, 1
      %p162 = por %p160, %p161
      %p164 = scmp.ne.s32.totalorder %s149, %s163
      %p165 = scmp.eq.s32.totalorder %s34, 0
      %p166 = por %p164, %p165
      %s168 = sadd.s32 %s167, 1
      %p171 = scmp.eq.s32.totalorder %s28, 1
      %p172 = scmp.ne.s32.totalorder %s167, %s169
      %p173 = scmp.eq.s32.totalorder %s28, 0
      %p174 = por %p172, %p173
      %p175 = scmp.ne.s32.totalorder %s167, %s169
      %p176 = scmp.eq.s32.totalorder %s33, 1
      %p177 = por %p175, %p176
      %p178 = scmp.ne.s32.totalorder %s169, %s170
      %p179 = scmp.eq.s32.totalorder %s33, 0
      %p180 = por %p178, %p179
      %p181 = scmp.ne.s32.totalorder %s169, %s170
      %p182 = scmp.eq.s32.totalorder %s34, 1
      %p183 = por %p181, %p182
      %p185 = scmp.ne.s32.totalorder %s170, %s184
      %p186 = scmp.eq.s32.totalorder %s34, 0
      %p187 = por %p185, %p186
      %s189 = sadd.s32 %s188, 1
      %p192 = scmp.eq.s32.totalorder %s28, 1
      %p193 = scmp.ne.s32.totalorder %s188, %s190
      %p194 = scmp.eq.s32.totalorder %s28, 0
      %p195 = por %p193, %p194
      %p196 = scmp.ne.s32.totalorder %s188, %s190
      %p197 = scmp.eq.s32.totalorder %s33, 1
      %p198 = por %p196, %p197
      %p199 = scmp.ne.s32.totalorder %s190, %s191
      %p200 = scmp.eq.s32.totalorder %s33, 0
      %p201 = por %p199, %p200
      %p202 = scmp.ne.s32.totalorder %s190, %s191
      %p203 = scmp.eq.s32.totalorder %s34, 1
      %p204 = por %p202, %p203
      %p206 = scmp.ne.s32.totalorder %s191, %s205
      %p207 = scmp.eq.s32.totalorder %s34, 0
      %p208 = por %p206, %p207
      %s210 = sadd.s32 %s209, 1
      %p213 = scmp.eq.s32.totalorder %s28, 1
      %p214 = scmp.ne.s32.totalorder %s209, %s211
      %p215 = scmp.eq.s32.totalorder %s28, 0
      %p216 = por %p214, %p215
      %p217 = scmp.ne.s32.totalorder %s209, %s211
      %p218 = scmp.eq.s32.totalorder %s33, 1
      %p219 = por %p217, %p218
      %p220 = scmp.ne.s32.totalorder %s211, %s212
      %p221 = scmp.eq.s32.totalorder %s33, 0
      %p222 = por %p220, %p221
      %p223 = scmp.ne.s32.totalorder %s211, %s212
      %p224 = scmp.eq.s32.totalorder %s34, 1
      %p225 = por %p223, %p224
      %p227 = scmp.ne.s32.totalorder %s212, %s226
      %p228 = scmp.eq.s32.totalorder %s34, 0
      %p229 = por %p227, %p228
      %s231 = sadd.s32 %s230, 1
      %p234 = scmp.eq.s32.totalorder %s28, 1
      %p235 = scmp.ne.s32.totalorder %s230, %s232
      %p236 = scmp.eq.s32.totalorder %s28, 0
      %p237 = por %p235, %p236
      %p238 = scmp.ne.s32.totalorder %s230, %s232
      %p239 = scmp.eq.s32.totalorder %s33, 1
      %p240 = por %p238, %p239
      %p241 = scmp.ne.s32.totalorder %s232, %s233
      %p242 = scmp.eq.s32.totalorder %s33, 0
      %p243 = por %p241, %p242
      %p244 = scmp.ne.s32.totalorder %s232, %s233
      %p245 = scmp.eq.s32.totalorder %s34, 1
      %p246 = por %p244, %p245
      %p248 = scmp.ne.s32.totalorder %s233, %s247
      %p249 = scmp.eq.s32.totalorder %s34, 0
      %p250 = por %p248, %p249
      %s252 = sadd.s32 %s251, 1
      %p255 = scmp.eq.s32.totalorder %s28, 1
      %p256 = scmp.ne.s32.totalorder %s251, %s253
      %p257 = scmp.eq.s32.totalorder %s28, 0
      %p258 = por %p256, %p257
      %p259 = scmp.ne.s32.totalorder %s251, %s253
      %p260 = scmp.eq.s32.totalorder %s33, 1
      %p261 = por %p259, %p260
      %p262 = scmp.ne.s32.totalorder %s253, %s254
      %p263 = scmp.eq.s32.totalorder %s33, 0
      %p264 = por %p262, %p263
      %p265 = scmp.ne.s32.totalorder %s253, %s254
      %p266 = scmp.eq.s32.totalorder %s34, 1
      %p267 = por %p265, %p266
      %p269 = scmp.ne.s32.totalorder %s254, %s268
      %p270 = scmp.eq.s32.totalorder %s34, 0
      %p271 = por %p269, %p270
      %s273 = sadd.s32 %s272, 1
      %p276 = scmp.eq.s32.totalorder %s28, 1
      %p277 = scmp.ne.s32.totalorder %s272, %s274
      %p278 = scmp.eq.s32.totalorder %s28, 0
      %p279 = por %p277, %p278
      %p280 = scmp.ne.s32.totalorder %s272, %s274
      %p281 = scmp.eq.s32.totalorder %s33, 1
      %p282 = por %p280, %p281
      %p283 = scmp.ne.s32.totalorder %s274, %s275
      %p284 = scmp.eq.s32.totalorder %s33, 0
      %p285 = por %p283, %p284
      %p286 = scmp.ne.s32.totalorder %s274, %s275
      %p287 = scmp.eq.s32.totalorder %s34, 1
      %p288 = por %p286, %p287
      %p290 = scmp.ne.s32.totalorder %s275, %s289
      %p291 = scmp.eq.s32.totalorder %s34, 0
      %p292 = por %p290, %p291
      %s294 = sadd.s32 %s293, 1
      %p297 = scmp.eq.s32.totalorder %s28, 1
      %p298 = scmp.ne.s32.totalorder %s293, %s295
      %p299 = scmp.eq.s32.totalorder %s28, 0
      %p300 = por %p298, %p299
      %p301 = scmp.ne.s32.totalorder %s293, %s295
      %p302 = scmp.eq.s32.totalorder %s33, 1
      %p303 = por %p301, %p302
      %p304 = scmp.ne.s32.totalorder %s295, %s296
      %p305 = scmp.eq.s32.totalorder %s33, 0
      %p306 = por %p304, %p305
      %p307 = scmp.ne.s32.totalorder %s295, %s296
      %p308 = scmp.eq.s32.totalorder %s34, 1
      %p309 = por %p307, %p308
      %p311 = scmp.ne.s32.totalorder %s296, %s310
      %p312 = scmp.eq.s32.totalorder %s34, 0
      %p313 = por %p311, %p312
      %s314 = ssub.s32 %s28, %s35
      %p315 = scmp.eq.s32.totalorder %s314, 0
      %s317 = sadd.s32 %s316, 1
      %s318 = scalar_select %p315, %s316, %s317
      %p321 = pneg %p315
      %p322 = scmp.eq.s32.totalorder %s28, 1
      %p323 = por %p321, %p322
      %p324 = scmp.ne.s32.totalorder %s316, %s319
      %p325 = scmp.eq.s32.totalorder %s28, 0
      %p326 = por %p324, %p325
      %p327 = scmp.ne.s32.totalorder %s316, %s319
      %p328 = scmp.eq.s32.totalorder %s33, 1
      %p329 = por %p327, %p328
      %p330 = scmp.ne.s32.totalorder %s319, %s320
      %p331 = scmp.eq.s32.totalorder %s33, 0
      %p332 = por %p330, %p331
      %p333 = scmp.ne.s32.totalorder %s319, %s320
      %p334 = scmp.eq.s32.totalorder %s34, 1
      %p335 = por %p333, %p334
      %p337 = scmp.ne.s32.totalorder %s320, %s336
      %p338 = scmp.eq.s32.totalorder %s34, 0
      %p339 = por %p337, %p338
      %p340 = scmp.le.s32.totalorder 1, %s28
      %p341 = scmp.lt.s32.totalorder %s28, 3
      %p342 = pnand %p340, %p341
      %p343 = pneg %p342
      // Predicated region
      $region9: #{tpu_custom_call.1} parent=5 // pred_check
        _
      $region10: #{tpu_custom_call.1} parent=5 // pred_check_branch
        %345 = sbr.rel (%p342) target = $region12
      $region11: #{tpu_custom_call.1} parent=5 // pred_region
        %s346 = ssub.s32 %s28, 1
        // Predicated region
        $region13: #{tpu_custom_call.1} parent=11 // pred_check
          %p347 = pneg %p75
        $region14: #{tpu_custom_call.1} parent=11 // pred_check_branch
          %349 = sbr.rel (%p347) target = $region16
        $region15: #{tpu_custom_call.1} parent=11 // pred_region
          %351 = vsyncadd [#allocation6], 0
          %s352 = sshll.u32 %s1, 4
          %s353 = int_to_ptr.hbm [resolvable:$true] %s352
          %s354 = sshll.u32 [#allocation5], 4
          %s355 = int_to_ptr.vmem [resolvable:$true] %s354
          %360 = dma.hbm_to_vmem [thread:$0]  %s353, 3072, %s355, [#allocation6], 192, 192, 12
        $region16: #{tpu_custom_call.1} parent=11 // pred_fallthru
          _
        // Predicated region
        $region17: #{tpu_custom_call.1} parent=11 // pred_check
          %p361 = pneg %p96
        $region18: #{tpu_custom_call.1} parent=11 // pred_check_branch
          %363 = sbr.rel (%p361) target = $region20
        $region19: #{tpu_custom_call.1} parent=11 // pred_region
          %365 = vsyncadd [#allocation6], 0
          %s367 = sshll.u32 %s2, 4
          %s368 = int_to_ptr.hbm [resolvable:$true] %s367
          %s369 = sshll.u32 [#allocation7], 4
          %s370 = int_to_ptr.vmem [resolvable:$true] %s369
          %372 = dma.hbm_to_vmem [thread:$0]  %s368, 48, %s370, [#allocation6]
        $region20: #{tpu_custom_call.1} parent=11 // pred_fallthru
          _
        // Predicated region
        $region21: #{tpu_custom_call.1} parent=11 // pred_check
          %p373 = pneg %p117
        $region22: #{tpu_custom_call.1} parent=11 // pred_check_branch
          %375 = sbr.rel (%p373) target = $region24
        $region23: #{tpu_custom_call.1} parent=11 // pred_region
          %377 = vsyncadd [#allocation9], 0
          %s378 = sshll.u32 %s3, 4
          %s379 = int_to_ptr.hbm [resolvable:$true] %s378
          %s380 = sshll.u32 [#allocation8], 4
          %s381 = int_to_ptr.vmem [resolvable:$true] %s380
          %386 = dma.hbm_to_vmem [thread:$0]  %s379, 1024, %s381, [#allocation9], 64, 64, 4
        $region24: #{tpu_custom_call.1} parent=11 // pred_fallthru
          _
        // Predicated region
        $region25: #{tpu_custom_call.1} parent=11 // pred_check
          %p387 = pneg %p138
        $region26: #{tpu_custom_call.1} parent=11 // pred_check_branch
          %389 = sbr.rel (%p387) target = $region28
        $region27: #{tpu_custom_call.1} parent=11 // pred_region
          _
        $region28: #{tpu_custom_call.1} parent=11 // pred_fallthru
          _
        // Predicated region
        $region29: #{tpu_custom_call.1} parent=11 // pred_check
          %p390 = pneg %p159
        $region30: #{tpu_custom_call.1} parent=11 // pred_check_branch
          %392 = sbr.rel (%p390) target = $region32
        $region31: #{tpu_custom_call.1} parent=11 // pred_region
          _
        $region32: #{tpu_custom_call.1} parent=11 // pred_fallthru
          _
        // Predicated region
        $region33: #{tpu_custom_call.1} parent=11 // pred_check
          %p393 = pneg %p180
        $region34: #{tpu_custom_call.1} parent=11 // pred_check_branch
          %395 = sbr.rel (%p393) target = $region36
        $region35: #{tpu_custom_call.1} parent=11 // pred_region
          _
        $region36: #{tpu_custom_call.1} parent=11 // pred_fallthru
          _
        // Predicated region
        $region37: #{tpu_custom_call.1} parent=11 // pred_check
          %p396 = pneg %p201
        $region38: #{tpu_custom_call.1} parent=11 // pred_check_branch
          %398 = sbr.rel (%p396) target = $region40
        $region39: #{tpu_custom_call.1} parent=11 // pred_region
          %400 = vsyncadd [#allocation9], 0
          %s401 = sshll.u32 %s7, 4
          %s402 = int_to_ptr.hbm [resolvable:$true] %s401
          %s403 = sshll.u32 [#allocation10], 4
          %s404 = int_to_ptr.vmem [resolvable:$true] %s403
          %409 = dma.hbm_to_vmem [thread:$0]  %s402, 4096, %s404, [#allocation9], 256, 256, 16
        $region40: #{tpu_custom_call.1} parent=11 // pred_fallthru
          _
        // Predicated region
        $region41: #{tpu_custom_call.1} parent=11 // pred_check
          %p410 = pneg %p222
        $region42: #{tpu_custom_call.1} parent=11 // pred_check_branch
          %412 = sbr.rel (%p410) target = $region44
        $region43: #{tpu_custom_call.1} parent=11 // pred_region
          _
        $region44: #{tpu_custom_call.1} parent=11 // pred_fallthru
          _
        // Predicated region
        $region45: #{tpu_custom_call.1} parent=11 // pred_check
          %p413 = pneg %p243
        $region46: #{tpu_custom_call.1} parent=11 // pred_check_branch
          %415 = sbr.rel (%p413) target = $region48
        $region47: #{tpu_custom_call.1} parent=11 // pred_region
          %417 = vsyncadd [#allocation12], 0
          %s418 = sshll.u32 %s9, 4
          %s419 = int_to_ptr.hbm [resolvable:$true] %s418
          %s420 = sshll.u32 [#allocation11], 4
          %s421 = int_to_ptr.vmem [resolvable:$true] %s420
          %426 = dma.hbm_to_vmem [thread:$0]  %s419, 4096, %s421, [#allocation12], 64, 64, 4
        $region48: #{tpu_custom_call.1} parent=11 // pred_fallthru
          _
        // Predicated region
        $region49: #{tpu_custom_call.1} parent=11 // pred_check
          %p427 = pneg %p264
        $region50: #{tpu_custom_call.1} parent=11 // pred_check_branch
          %429 = sbr.rel (%p427) target = $region52
        $region51: #{tpu_custom_call.1} parent=11 // pred_region
          _
        $region52: #{tpu_custom_call.1} parent=11 // pred_fallthru
          _
        // Predicated region
        $region53: #{tpu_custom_call.1} parent=11 // pred_check
          %p430 = pneg %p285
        $region54: #{tpu_custom_call.1} parent=11 // pred_check_branch
          %432 = sbr.rel (%p430) target = $region56
        $region55: #{tpu_custom_call.1} parent=11 // pred_region
          _
        $region56: #{tpu_custom_call.1} parent=11 // pred_fallthru
          _
        // Predicated region
        $region57: #{tpu_custom_call.1} parent=11 // pred_check
          %p433 = pneg %p306
        $region58: #{tpu_custom_call.1} parent=11 // pred_check_branch
          %435 = sbr.rel (%p433) target = $region60
        $region59: #{tpu_custom_call.1} parent=11 // pred_region
          _
        $region60: #{tpu_custom_call.1} parent=11 // pred_fallthru
          _
      $region12: #{tpu_custom_call.1} parent=5 // pred_fallthru
        _
      %p436 = scmp.lt.s32.totalorder %s28, 2
      // Predicated region
      $region61: #{tpu_custom_call.1} parent=5 // pred_check
        %p437 = pneg %p436
      $region62: #{tpu_custom_call.1} parent=5 // pred_check_branch
        %439 = sbr.rel (%p437) target = $region64
      $region63: #{tpu_custom_call.1} parent=5 // pred_region
        // Predicated region
        $region65: #{tpu_custom_call.1} parent=63 // pred_check
          %p440 = pneg %p48
        $region66: #{tpu_custom_call.1} parent=63 // pred_check_branch
          %442 = sbr.rel (%p440) target = $region68
        $region67: #{tpu_custom_call.1} parent=63 // pred_region
          %s443 = sand.u32 %s38, 1
          %s444 = scalar_lea.sflag [#allocation3], %s443
          %s445 = sand.u32 %s38, 1
          %s446 = smul.addr %s445, 64
          %s447 = scalar_lea.vmem [#allocation2], %s446
          %449 = vsyncadd %s444, 0
          %s450 = smul.addr %s28, 8
          %s451 = smul.addr %s450, 8
          %s452 = scalar_lea.hbm %s0, %s451
          %s453 = sshll.u32 %s452, 4
          %s454 = int_to_ptr.hbm [resolvable:$true] %s453
          %s455 = sshll.u32 %s447, 4
          %s456 = int_to_ptr.vmem [resolvable:$true] %s455
          %461 = dma.hbm_to_vmem [thread:$0]  %s454, 1024, %s456, %s444, 128, 128, 8
        $region68: #{tpu_custom_call.1} parent=63 // pred_fallthru
          _
      $region64: #{tpu_custom_call.1} parent=5 // pred_fallthru
        _
      %p462 = scmp.le.s32.totalorder 1, %s28
      %p463 = scmp.lt.s32.totalorder %s28, 3
      %p464 = pnand %p462, %p463
      %p465 = pneg %p464
      // Predicated region
      $region69: #{tpu_custom_call.1} parent=5 // pred_check
        _
      $region70: #{tpu_custom_call.1} parent=5 // pred_check_branch
        %467 = sbr.rel (%p464) target = $region72
      $region71: #{tpu_custom_call.1} parent=5 // pred_region
        %s468 = ssub.s32 %s28, 1
        %s469 = sand.u32 %s41, 1
        %s470 = scalar_lea.sflag [#allocation3], %s469
        %s471 = sand.u32 %s41, 1
        %s472 = smul.addr %s471, 64
        %s473 = scalar_lea.vmem [#allocation2], %s472
        // Predicated region
        $region73: #{tpu_custom_call.1} parent=71 // pred_check
          %p474 = pneg %p54
        $region74: #{tpu_custom_call.1} parent=71 // pred_check_branch
          %476 = sbr.rel (%p474) target = $region76
        $region75: #{tpu_custom_call.1} parent=71 // pred_region
          %478 = dma.done %s470, 1024
        $region76: #{tpu_custom_call.1} parent=71 // pred_fallthru
          _
        // Predicated region
        $region77: #{tpu_custom_call.1} parent=71 // pred_check
          %p479 = pneg %p75
        $region78: #{tpu_custom_call.1} parent=71 // pred_check_branch
          %481 = sbr.rel (%p479) target = $region80
        $region79: #{tpu_custom_call.1} parent=71 // pred_region
          %483 = dma.done [#allocation6], 3072
        $region80: #{tpu_custom_call.1} parent=71 // pred_fallthru
          _
        // Predicated region
        $region81: #{tpu_custom_call.1} parent=71 // pred_check
          %p484 = pneg %p96
        $region82: #{tpu_custom_call.1} parent=71 // pred_check_branch
          %486 = sbr.rel (%p484) target = $region84
        $region83: #{tpu_custom_call.1} parent=71 // pred_region
          %488 = dma.done [#allocation6], 48
        $region84: #{tpu_custom_call.1} parent=71 // pred_fallthru
          _
        // Predicated region
        $region85: #{tpu_custom_call.1} parent=71 // pred_check
          %p489 = pneg %p117
        $region86: #{tpu_custom_call.1} parent=71 // pred_check_branch
          %491 = sbr.rel (%p489) target = $region88
        $region87: #{tpu_custom_call.1} parent=71 // pred_region
          %493 = dma.done [#allocation9], 1024
        $region88: #{tpu_custom_call.1} parent=71 // pred_fallthru
          _
        // Predicated region
        $region89: #{tpu_custom_call.1} parent=71 // pred_check
          %p494 = pneg %p201
        $region90: #{tpu_custom_call.1} parent=71 // pred_check_branch
          %496 = sbr.rel (%p494) target = $region92
        $region91: #{tpu_custom_call.1} parent=71 // pred_region
          %498 = dma.done [#allocation9], 4096
        $region92: #{tpu_custom_call.1} parent=71 // pred_fallthru
          _
        // Predicated region
        $region93: #{tpu_custom_call.1} parent=71 // pred_check
          %p499 = pneg %p243
        $region94: #{tpu_custom_call.1} parent=71 // pred_check_branch
          %501 = sbr.rel (%p499) target = $region96
        $region95: #{tpu_custom_call.1} parent=71 // pred_region
          %503 = dma.done [#allocation12], 4096
        $region96: #{tpu_custom_call.1} parent=71 // pred_fallthru
          _
        %s504 = sand.u32 %s41, 1
        %s505 = scalar_lea.sflag [#allocation3], %s504
        %s506 = sand.u32 %s41, 1
        %s507 = smul.addr %s506, 64
        %s508 = scalar_lea.vmem [#allocation2], %s507
        %p509 = pneg %p54
        %p510 = pneg %p51
        %p511 = pneg %p75
        %p512 = pneg %p72
        %p513 = pneg %p96
        %p514 = pneg %p93
        %p515 = pneg %p117
        %p516 = pneg %p114
        %p517 = pneg %p138
        %p518 = pneg %p135
        %p519 = pneg %p159
        %p520 = pneg %p156
        %p521 = pneg %p180
        %p522 = pneg %p177
        %p523 = pneg %p201
        %p524 = pneg %p198
        %p525 = pneg %p222
        %p526 = pneg %p219
        %p527 = pneg %p243
        %p528 = pneg %p240
        %p529 = pneg %p264
        %p530 = pneg %p261
        %p531 = pneg %p285
        %p532 = pneg %p282
        %p533 = pneg %p306
        %p534 = pneg %p303
        %p535 = pneg %p332
        %p536 = pneg %p329
        %s537 = sand.u32 %s319, 1
        %s538 = scalar_lea.sflag [#allocation4], %s537
        %s539 = sand.u32 %s319, 1
        %s540 = smul.addr %s539, 64
        %s541 = scalar_lea.vmem [#allocation13], %s540
        %v543 = vld [vmem:[%s473] sm:$0xff]
        %v544 = vld [vmem:[%s473 + $0x8] sm:$0xff]
        %v545 = vld [vmem:[%s473 + $0x10] sm:$0xff]
        %v546 = vld [vmem:[%s473 + $0x18] sm:$0xff]
        %v547 = vld [vmem:[%s473 + $0x20] sm:$0xff]
        %v548 = vld [vmem:[%s473 + $0x28] sm:$0xff]
        %v549 = vld [vmem:[%s473 + $0x30] sm:$0xff]
        %v550 = vld [vmem:[%s473 + $0x38] sm:$0xff]
        %v551 = vpack.c.bf16 %v544, %v543
        %v552 = vpack.c.bf16 %v546, %v545
        %v553 = vpack.c.bf16 %v548, %v547
        %v554 = vpack.c.bf16 %v550, %v549
        %v555 = vld [vmem:[#allocation5] sm:$0xff]
        %v556 = vld [vmem:[#allocation5 + $0x8] sm:$0xf]
        %v557 = vld [vmem:[#allocation5 + $0xc] sm:$0xff]
        %v558 = vld [vmem:[#allocation5 + $0x14] sm:$0xf]
        %v559 = vld [vmem:[#allocation5 + $0x18] sm:$0xff]
        %v560 = vld [vmem:[#allocation5 + $0x20] sm:$0xf]
        %v561 = vld [vmem:[#allocation5 + $0x24] sm:$0xff]
        %v562 = vld [vmem:[#allocation5 + $0x2c] sm:$0xf]
        %v563 = vld [vmem:[#allocation5 + $0x30] sm:$0xff]
        %v564 = vld [vmem:[#allocation5 + $0x38] sm:$0xf]
        %v565 = vld [vmem:[#allocation5 + $0x3c] sm:$0xff]
        %v566 = vld [vmem:[#allocation5 + $0x44] sm:$0xf]
        %v567 = vld [vmem:[#allocation5 + $0x48] sm:$0xff]
        %v568 = vld [vmem:[#allocation5 + $0x50] sm:$0xf]
        %v569 = vld [vmem:[#allocation5 + $0x54] sm:$0xff]
        %v570 = vld [vmem:[#allocation5 + $0x5c] sm:$0xf]
        %v571 = vld [vmem:[#allocation5 + $0x60] sm:$0xff]
        %v572 = vld [vmem:[#allocation5 + $0x68] sm:$0xf]
        %v573 = vld [vmem:[#allocation5 + $0x6c] sm:$0xff]
        %v574 = vld [vmem:[#allocation5 + $0x74] sm:$0xf]
        %v575 = vld [vmem:[#allocation5 + $0x78] sm:$0xff]
        %v576 = vld [vmem:[#allocation5 + $0x80] sm:$0xf]
        %v577 = vld [vmem:[#allocation5 + $0x84] sm:$0xff]
        %v578 = vld [vmem:[#allocation5 + $0x8c] sm:$0xf]
        %v579 = vld [vmem:[#allocation5 + $0x90] sm:$0xff]
        %v580 = vld [vmem:[#allocation5 + $0x98] sm:$0xf]
        %v581 = vld [vmem:[#allocation5 + $0x9c] sm:$0xff]
        %v582 = vld [vmem:[#allocation5 + $0xa4] sm:$0xf]
        %v583 = vld [vmem:[#allocation5 + $0xa8] sm:$0xff]
        %v584 = vld [vmem:[#allocation5 + $0xb0] sm:$0xf]
        %v585 = vld [vmem:[#allocation5 + $0xb4] sm:$0xff]
        %v586 = vld [vmem:[#allocation5 + $0xbc] sm:$0xf]
        %v587 = vld [vmem:[#allocation7] sm:$0x7]
        %v589 = vperm.slane %v587, 0
        %v590 = vperm.slane %v587, 1
        %v591 = vperm.slane %v587, 2
        %v627 = vunpack.c.l.b16 %v555
        %v628 = vunpack.c.h.b16 %v555
        %v629 = vunpack.c.l.b16 %v556
        %v630 = vunpack.c.l.b16 %v557
        %v631 = vunpack.c.h.b16 %v557
        %v632 = vunpack.c.l.b16 %v558
        %v633 = vunpack.c.l.b16 %v559
        %v634 = vunpack.c.h.b16 %v559
        %v635 = vunpack.c.l.b16 %v560
        %v636 = vunpack.c.l.b16 %v561
        %v637 = vunpack.c.h.b16 %v561
        %v638 = vunpack.c.l.b16 %v562
        %v639 = vunpack.c.l.b16 %v563
        %v640 = vunpack.c.h.b16 %v563
        %v641 = vunpack.c.l.b16 %v564
        %v642 = vunpack.c.l.b16 %v565
        %v643 = vunpack.c.h.b16 %v565
        %v644 = vunpack.c.l.b16 %v566
        %v645 = vunpack.c.l.b16 %v567
        %v646 = vunpack.c.h.b16 %v567
        %v647 = vunpack.c.l.b16 %v568
        %v648 = vunpack.c.l.b16 %v569
        %v649 = vunpack.c.h.b16 %v569
        %v650 = vunpack.c.l.b16 %v570
        %v651 = vunpack.c.l.b16 %v571
        %v652 = vunpack.c.h.b16 %v571
        %v653 = vunpack.c.l.b16 %v572
        %v654 = vunpack.c.l.b16 %v573
        %v655 = vunpack.c.h.b16 %v573
        %v656 = vunpack.c.l.b16 %v574
        %v657 = vunpack.c.l.b16 %v575
        %v658 = vunpack.c.h.b16 %v575
        %v659 = vunpack.c.l.b16 %v576
        %v660 = vunpack.c.l.b16 %v577
        %v661 = vunpack.c.h.b16 %v577
        %v662 = vunpack.c.l.b16 %v578
        %v663 = vunpack.c.l.b16 %v579
        %v664 = vunpack.c.h.b16 %v579
        %v665 = vunpack.c.l.b16 %v580
        %v666 = vunpack.c.l.b16 %v581
        %v667 = vunpack.c.h.b16 %v581
        %v668 = vunpack.c.l.b16 %v582
        %v669 = vunpack.c.l.b16 %v583
        %v670 = vunpack.c.h.b16 %v583
        %v671 = vunpack.c.l.b16 %v584
        %v672 = vunpack.c.l.b16 %v585
        %v673 = vunpack.c.h.b16 %v585
        %v674 = vunpack.c.l.b16 %v586
        %v675 = vpack.c.b16 %v630, %v627
        %v676 = vpack.c.b16 %v631, %v628
        %v677 = vpack.c.b16 %v632, %v629
        %v678 = vpack.c.b16 %v636, %v633
        %v679 = vpack.c.b16 %v637, %v634
        %v680 = vpack.c.b16 %v638, %v635
        %v681 = vpack.c.b16 %v642, %v639
        %v682 = vpack.c.b16 %v643, %v640
        %v683 = vpack.c.b16 %v644, %v641
        %v684 = vpack.c.b16 %v648, %v645
        %v685 = vpack.c.b16 %v649, %v646
        %v686 = vpack.c.b16 %v650, %v647
        %v687 = vpack.c.b16 %v654, %v651
        %v688 = vpack.c.b16 %v655, %v652
        %v689 = vpack.c.b16 %v656, %v653
        %v690 = vpack.c.b16 %v660, %v657
        %v691 = vpack.c.b16 %v661, %v658
        %v692 = vpack.c.b16 %v662, %v659
        %v693 = vpack.c.b16 %v666, %v663
        %v694 = vpack.c.b16 %v667, %v664
        %v695 = vpack.c.b16 %v668, %v665
        %v696 = vpack.c.b16 %v672, %v669
        %v697 = vpack.c.b16 %v673, %v670
        %v698 = vpack.c.b16 %v674, %v671
        %723 = vmatpush.bf16.msra.mxu0 %v696
        %724 = vmatpush.bf16.msra.mxu0 %v693
        %725 = vmatpush.bf16.msra.mxu0 %v690
        %726 = vmatpush.bf16.msra.mxu0 %v687
        %727 = vmatpush.bf16.msra.mxu0 %v684
        %728 = vmatpush.bf16.msra.mxu0 %v681
        %729 = vmatpush.bf16.msra.mxu0 %v678
        %730 = vmatpush.bf16.msra.mxu0 %v675
        %731 = vmatmul.bf16.gmra.mxu0 %v551
        %v732 = vpop.f32.mrf.mxu0
        %v733 = vadd.f32 %v589, %v732
        %v734 = vpop.f32.mrf.mxu0
        %v735 = vadd.f32 %v589, %v734
        %736 = vmatmul.bf16.gmra.mxu0 %v552
        %v737 = vpop.f32.mrf.mxu0
        %v738 = vadd.f32 %v589, %v737
        %v739 = vpop.f32.mrf.mxu0
        %v740 = vadd.f32 %v589, %v739
        %741 = vmatmul.bf16.gmra.mxu0 %v553
        %v742 = vpop.f32.mrf.mxu0
        %v743 = vadd.f32 %v589, %v742
        %v744 = vpop.f32.mrf.mxu0
        %v745 = vadd.f32 %v589, %v744
        %746 = vmatmul.bf16.gmra.mxu0 %v554
        %v747 = vpop.f32.mrf.mxu0
        %v748 = vadd.f32 %v589, %v747
        %v749 = vpop.f32.mrf.mxu0
        %v750 = vadd.f32 %v589, %v749
        %751 = vdwg.mxu0
        %752 = vmatpush.bf16.msra.mxu0 %v697
        %753 = vmatpush.bf16.msra.mxu0 %v694
        %754 = vmatpush.bf16.msra.mxu0 %v691
        %755 = vmatpush.bf16.msra.mxu0 %v688
        %756 = vmatpush.bf16.msra.mxu0 %v685
        %757 = vmatpush.bf16.msra.mxu0 %v682
        %758 = vmatpush.bf16.msra.mxu0 %v679
        %759 = vmatpush.bf16.msra.mxu0 %v676
        %760 = vmatmul.bf16.gmra.mxu0 %v551
        %v761 = vpop.f32.mrf.mxu0
        %v762 = vadd.f32 %v590, %v761
        %v763 = vpop.f32.mrf.mxu0
        %v764 = vadd.f32 %v590, %v763
        %765 = vmatmul.bf16.gmra.mxu0 %v552
        %v766 = vpop.f32.mrf.mxu0
        %v767 = vadd.f32 %v590, %v766
        %v768 = vpop.f32.mrf.mxu0
        %v769 = vadd.f32 %v590, %v768
        %770 = vmatmul.bf16.gmra.mxu0 %v553
        %v771 = vpop.f32.mrf.mxu0
        %v772 = vadd.f32 %v590, %v771
        %v773 = vpop.f32.mrf.mxu0
        %v774 = vadd.f32 %v590, %v773
        %775 = vmatmul.bf16.gmra.mxu0 %v554
        %v776 = vpop.f32.mrf.mxu0
        %v777 = vadd.f32 %v590, %v776
        %v778 = vpop.f32.mrf.mxu0
        %v779 = vadd.f32 %v590, %v778
        %780 = vdwg.mxu0
        %781 = vmatpush.bf16.msra.mxu0 %v698
        %782 = vmatpush.bf16.msra.mxu0 %v695
        %783 = vmatpush.bf16.msra.mxu0 %v692
        %784 = vmatpush.bf16.msra.mxu0 %v689
        %785 = vmatpush.bf16.msra.mxu0 %v686
        %786 = vmatpush.bf16.msra.mxu0 %v683
        %787 = vmatpush.bf16.msra.mxu0 %v680
        %788 = vmatpush.bf16.msra.mxu0 %v677
        %789 = vmatmul.bf16.gmra.mxu0 %v551
        %v790 = vpop.f32.mrf.mxu0
        %v791 = vadd.f32 %v591, %v790
        %v792 = vpop.f32.mrf.mxu0
        %v793 = vadd.f32 %v591, %v792
        %794 = vmatmul.bf16.gmra.mxu0 %v552
        %v795 = vpop.f32.mrf.mxu0
        %v796 = vadd.f32 %v591, %v795
        %v797 = vpop.f32.mrf.mxu0
        %v798 = vadd.f32 %v591, %v797
        %799 = vmatmul.bf16.gmra.mxu0 %v553
        %v800 = vpop.f32.mrf.mxu0
        %v801 = vadd.f32 %v591, %v800
        %v802 = vpop.f32.mrf.mxu0
        %v803 = vadd.f32 %v591, %v802
        %804 = vmatmul.bf16.gmra.mxu0 %v554
        %v805 = vpop.f32.mrf.mxu0
        %v806 = vadd.f32 %v591, %v805
        %v807 = vpop.f32.mrf.mxu0
        %v808 = vadd.f32 %v591, %v807
        %809 = vdwg.mxu0
        %v810 = vpack.c.bf16 %v762, %v733
        %v811 = vpack.c.bf16 %v791, %v791
        %v812 = vpack.c.bf16 %v764, %v735
        %v813 = vpack.c.bf16 %v793, %v793
        %v814 = vpack.c.bf16 %v767, %v738
        %v815 = vpack.c.bf16 %v796, %v796
        %v816 = vpack.c.bf16 %v769, %v740
        %v817 = vpack.c.bf16 %v798, %v798
        %v818 = vpack.c.bf16 %v772, %v743
        %v819 = vpack.c.bf16 %v801, %v801
        %v820 = vpack.c.bf16 %v774, %v745
        %v821 = vpack.c.bf16 %v803, %v803
        %v822 = vpack.c.bf16 %v777, %v748
        %v823 = vpack.c.bf16 %v806, %v806
        %v824 = vpack.c.bf16 %v779, %v750
        %v825 = vpack.c.bf16 %v808, %v808
        %v834 = vunpack.c.l.b16 %v810
        %v835 = vunpack.c.l.b16 %v812
        %v836 = vunpack.c.l.b16 %v814
        %v837 = vunpack.c.l.b16 %v816
        %v838 = vunpack.c.l.b16 %v818
        %v839 = vunpack.c.l.b16 %v820
        %v840 = vunpack.c.l.b16 %v822
        %v841 = vunpack.c.l.b16 %v824
        %v842 = vpack.c.b16 %v835, %v834
        %v843 = vpack.c.b16 %v837, %v836
        %v844 = vpack.c.b16 %v839, %v838
        %v845 = vpack.c.b16 %v841, %v840
        %v846 = vunpack.c.h.b16 %v810
        %v847 = vunpack.c.h.b16 %v812
        %v848 = vunpack.c.h.b16 %v814
        %v849 = vunpack.c.h.b16 %v816
        %v850 = vunpack.c.h.b16 %v818
        %v851 = vunpack.c.h.b16 %v820
        %v852 = vunpack.c.h.b16 %v822
        %v853 = vunpack.c.h.b16 %v824
        %v854 = vpack.c.b16 %v847, %v846
        %v855 = vpack.c.b16 %v849, %v848
        %v856 = vpack.c.b16 %v851, %v850
        %v857 = vpack.c.b16 %v853, %v852
        %vm858 = vcmask 261120
        %v860 = vsel %vm858, %v842, 0
        %v863 = vsel %vm858, %v843, 0
        %v866 = vsel %vm858, %v844, 0
        %v869 = vsel %vm858, %v845, 0
        %v872 = vsel %vm858, %v854, 0
        %v875 = vsel %vm858, %v855, 0
        %v878 = vsel %vm858, %v856, 0
        %v881 = vsel %vm858, %v857, 0
        %883 = vmatpush.bf16.xpose.msra.mxu0 0
        %884 = vmatpush.bf16.xpose.msra.mxu0 0
        %885 = vmatpush.bf16.xpose.msra.mxu0 0
        %886 = vmatpush.bf16.xpose.msra.mxu0 0
        %887 = vmatpush.bf16.xpose.msra.mxu0 %v881
        %888 = vmatpush.bf16.xpose.msra.mxu0 %v878
        %889 = vmatpush.bf16.xpose.msra.mxu0 %v875
        %890 = vmatpush.bf16.xpose.msra.mxu0 %v872
        %891 = vmatmul.bf16.gmra.mxu0 %v860
        %v892 = vpop.f32.mrf.mxu0
        %v893 = vadd.f32 0.0, %v892
        %v894 = vpop.f32.mrf.mxu0
        %v895 = vadd.f32 0.0, %v894
        %896 = vmatmul.bf16.gmra.mxu0 %v863
        %v897 = vpop.f32.mrf.mxu0
        %v898 = vadd.f32 0.0, %v897
        %v899 = vpop.f32.mrf.mxu0
        %v900 = vadd.f32 0.0, %v899
        %901 = vmatmul.bf16.gmra.mxu0 %v866
        %v902 = vpop.f32.mrf.mxu0
        %v903 = vadd.f32 0.0, %v902
        %v904 = vpop.f32.mrf.mxu0
        %v905 = vadd.f32 0.0, %v904
        %906 = vmatmul.bf16.gmra.mxu0 %v869
        %v907 = vpop.f32.mrf.mxu0
        %v908 = vadd.f32 0.0, %v907
        %v909 = vpop.f32.mrf.mxu0
        %v910 = vadd.f32 0.0, %v909
        %911 = vdwg.mxu0
        %vm912 = vcmask 523264
        %v913 = vsel %vm912, %v893, -inf
        %914 = vmax.xlane.f32.xlu0 %v913
        %v915 = vpop.xlane.xlu0 %914
        %v916 = vsel %vm912, %v895, -inf
        %917 = vmax.xlane.f32.xlu0 %v916
        %v918 = vpop.xlane.xlu0 %917
        %v919 = vsel %vm912, %v898, -inf
        %920 = vmax.xlane.f32.xlu0 %v919
        %v921 = vpop.xlane.xlu0 %920
        %v922 = vsel %vm912, %v900, -inf
        %923 = vmax.xlane.f32.xlu0 %v922
        %v924 = vpop.xlane.xlu0 %923
        %v925 = vsel %vm912, %v903, -inf
        %926 = vmax.xlane.f32.xlu0 %v925
        %v927 = vpop.xlane.xlu0 %926
        %v928 = vsel %vm912, %v905, -inf
        %929 = vmax.xlane.f32.xlu0 %v928
        %v930 = vpop.xlane.xlu0 %929
        %v931 = vsel %vm912, %v908, -inf
        %932 = vmax.xlane.f32.xlu0 %v931
        %v933 = vpop.xlane.xlu0 %932
        %v934 = vsel %vm912, %v910, -inf
        %935 = vmax.xlane.f32.xlu0 %v934
        %v936 = vpop.xlane.xlu0 %935
        %v937 = vsub.f32 %v893, %v915
        %v938 = vsub.f32 %v895, %v918
        %v939 = vsub.f32 %v898, %v921
        %v940 = vsub.f32 %v900, %v924
        %v941 = vsub.f32 %v903, %v927
        %v942 = vsub.f32 %v905, %v930
        %v943 = vsub.f32 %v908, %v933
        %v944 = vsub.f32 %v910, %v936
        %v945 = vmul.f32 %v937, 1.442695
        %v946 = vpow.pop %v945
        %v947 = vmul.f32 %v938, 1.442695
        %v948 = vpow.pop %v947
        %v949 = vmul.f32 %v939, 1.442695
        %v950 = vpow.pop %v949
        %v951 = vmul.f32 %v940, 1.442695
        %v952 = vpow.pop %v951
        %v953 = vmul.f32 %v941, 1.442695
        %v954 = vpow.pop %v953
        %v955 = vmul.f32 %v942, 1.442695
        %v956 = vpow.pop %v955
        %v957 = vmul.f32 %v943, 1.442695
        %v958 = vpow.pop %v957
        %v959 = vmul.f32 %v944, 1.442695
        %v960 = vpow.pop %v959
        %v961 = vsel %vm912, %v946, 0.0
        %962 = vadd.xlane.f32.xlu0 %v961
        %v963 = vpop.xlane.xlu0 %962
        %v964 = vsel %vm912, %v948, 0.0
        %965 = vadd.xlane.f32.xlu0 %v964
        %v966 = vpop.xlane.xlu0 %965
        %v967 = vsel %vm912, %v950, 0.0
        %968 = vadd.xlane.f32.xlu0 %v967
        %v969 = vpop.xlane.xlu0 %968
        %v970 = vsel %vm912, %v952, 0.0
        %971 = vadd.xlane.f32.xlu0 %v970
        %v972 = vpop.xlane.xlu0 %971
        %v973 = vsel %vm912, %v954, 0.0
        %974 = vadd.xlane.f32.xlu0 %v973
        %v975 = vpop.xlane.xlu0 %974
        %v976 = vsel %vm912, %v956, 0.0
        %977 = vadd.xlane.f32.xlu0 %v976
        %v978 = vpop.xlane.xlu0 %977
        %v979 = vsel %vm912, %v958, 0.0
        %980 = vadd.xlane.f32.xlu0 %v979
        %v981 = vpop.xlane.xlu0 %980
        %v982 = vsel %vm912, %v960, 0.0
        %983 = vadd.xlane.f32.xlu0 %v982
        %v984 = vpop.xlane.xlu0 %983
        %v985 = vrcp.pop %v963
        %v986 = vrcp.pop %v966
        %v987 = vrcp.pop %v969
        %v988 = vrcp.pop %v972
        %v989 = vrcp.pop %v975
        %v990 = vrcp.pop %v978
        %v991 = vrcp.pop %v981
        %v992 = vrcp.pop %v984
        %v993 = vpack.c.bf16 %v948, %v946
        %v994 = vpack.c.bf16 %v952, %v950
        %v995 = vpack.c.bf16 %v956, %v954
        %v996 = vpack.c.bf16 %v960, %v958
        %v1005 = vunpack.c.l.b16 %v811
        %v1006 = vunpack.c.l.b16 %v813
        %v1007 = vunpack.c.l.b16 %v815
        %v1008 = vunpack.c.l.b16 %v817
        %v1009 = vunpack.c.l.b16 %v819
        %v1010 = vunpack.c.l.b16 %v821
        %v1011 = vunpack.c.l.b16 %v823
        %v1012 = vunpack.c.l.b16 %v825
        %v1013 = vpack.c.b16 %v1006, %v1005
        %v1014 = vpack.c.b16 %v1008, %v1007
        %v1015 = vpack.c.b16 %v1010, %v1009
        %v1016 = vpack.c.b16 %v1012, %v1011
        %v1022 = vsel %vm912, %v993, 0
        %v1025 = vsel %vm912, %v994, 0
        %v1028 = vsel %vm912, %v995, 0
        %v1031 = vsel %vm912, %v996, 0
        %1033 = vmatpush.bf16.msra.mxu0 0
        %1034 = vmatpush.bf16.msra.mxu0 0
        %1035 = vmatpush.bf16.msra.mxu0 0
        %1036 = vmatpush.bf16.msra.mxu0 0
        %1037 = vmatpush.bf16.msra.mxu0 %v1016
        %1038 = vmatpush.bf16.msra.mxu0 %v1015
        %1039 = vmatpush.bf16.msra.mxu0 %v1014
        %1040 = vmatpush.bf16.msra.mxu0 %v1013
        %1041 = vmatmul.bf16.gmra.mxu0 %v1022
        %v1042 = vpop.f32.mrf.mxu0
        %v1043 = vadd.f32 0.0, %v1042
        %v1044 = vpop.f32.mrf.mxu0
        %v1045 = vadd.f32 0.0, %v1044
        %1046 = vmatmul.bf16.gmra.mxu0 %v1025
        %v1047 = vpop.f32.mrf.mxu0
        %v1048 = vadd.f32 0.0, %v1047
        %v1049 = vpop.f32.mrf.mxu0
        %v1050 = vadd.f32 0.0, %v1049
        %1051 = vmatmul.bf16.gmra.mxu0 %v1028
        %v1052 = vpop.f32.mrf.mxu0
        %v1053 = vadd.f32 0.0, %v1052
        %v1054 = vpop.f32.mrf.mxu0
        %v1055 = vadd.f32 0.0, %v1054
        %1056 = vmatmul.bf16.gmra.mxu0 %v1031
        %v1057 = vpop.f32.mrf.mxu0
        %v1058 = vadd.f32 0.0, %v1057
        %v1059 = vpop.f32.mrf.mxu0
        %v1060 = vadd.f32 0.0, %v1059
        %1061 = vdwg.mxu0
        %v1062 = vmul.f32 %v1043, %v985
        %v1063 = vmul.f32 %v1045, %v986
        %v1064 = vmul.f32 %v1048, %v987
        %v1065 = vmul.f32 %v1050, %v988
        %v1066 = vmul.f32 %v1053, %v989
        %v1067 = vmul.f32 %v1055, %v990
        %v1068 = vmul.f32 %v1058, %v991
        %v1069 = vmul.f32 %v1060, %v992
        %1070 = vrot.lane.b32.xlu0 %v842, 96
        %v1071 = vpop.permute.xlu0 %1070
        %1072 = vrot.lane.b32.xlu0 %v843, 96
        %v1073 = vpop.permute.xlu0 %1072
        %1074 = vrot.lane.b32.xlu0 %v844, 96
        %v1075 = vpop.permute.xlu0 %1074
        %1076 = vrot.lane.b32.xlu0 %v845, 96
        %v1077 = vpop.permute.xlu0 %1076
        %1078 = vrot.lane.b32.xlu0 %v854, 96
        %v1079 = vpop.permute.xlu0 %1078
        %1080 = vrot.lane.b32.xlu0 %v855, 96
        %v1081 = vpop.permute.xlu0 %1080
        %1082 = vrot.lane.b32.xlu0 %v856, 96
        %v1083 = vpop.permute.xlu0 %1082
        %1084 = vrot.lane.b32.xlu0 %v857, 96
        %v1085 = vpop.permute.xlu0 %1084
        %v1087 = vsel %vm858, %v1071, 0
        %v1090 = vsel %vm858, %v1073, 0
        %v1093 = vsel %vm858, %v1075, 0
        %v1096 = vsel %vm858, %v1077, 0
        %v1099 = vsel %vm858, %v1079, 0
        %v1102 = vsel %vm858, %v1081, 0
        %v1105 = vsel %vm858, %v1083, 0
        %v1108 = vsel %vm858, %v1085, 0
        %1110 = vmatpush.bf16.xpose.msra.mxu0 0
        %1111 = vmatpush.bf16.xpose.msra.mxu0 0
        %1112 = vmatpush.bf16.xpose.msra.mxu0 0
        %1113 = vmatpush.bf16.xpose.msra.mxu0 0
        %1114 = vmatpush.bf16.xpose.msra.mxu0 %v1108
        %1115 = vmatpush.bf16.xpose.msra.mxu0 %v1105
        %1116 = vmatpush.bf16.xpose.msra.mxu0 %v1102
        %1117 = vmatpush.bf16.xpose.msra.mxu0 %v1099
        %1118 = vmatmul.bf16.gmra.mxu0 %v1087
        %v1119 = vpop.f32.mrf.mxu0
        %v1120 = vadd.f32 0.0, %v1119
        %v1121 = vpop.f32.mrf.mxu0
        %v1122 = vadd.f32 0.0, %v1121
        %1123 = vmatmul.bf16.gmra.mxu0 %v1090
        %v1124 = vpop.f32.mrf.mxu0
        %v1125 = vadd.f32 0.0, %v1124
        %v1126 = vpop.f32.mrf.mxu0
        %v1127 = vadd.f32 0.0, %v1126
        %1128 = vmatmul.bf16.gmra.mxu0 %v1093
        %v1129 = vpop.f32.mrf.mxu0
        %v1130 = vadd.f32 0.0, %v1129
        %v1131 = vpop.f32.mrf.mxu0
        %v1132 = vadd.f32 0.0, %v1131
        %1133 = vmatmul.bf16.gmra.mxu0 %v1096
        %v1134 = vpop.f32.mrf.mxu0
        %v1135 = vadd.f32 0.0, %v1134
        %v1136 = vpop.f32.mrf.mxu0
        %v1137 = vadd.f32 0.0, %v1136
        %1138 = vdwg.mxu0
        %v1139 = vsel %vm912, %v1120, -inf
        %1140 = vmax.xlane.f32.xlu0 %v1139
        %v1141 = vpop.xlane.xlu0 %1140
        %v1142 = vsel %vm912, %v1122, -inf
        %1143 = vmax.xlane.f32.xlu0 %v1142
        %v1144 = vpop.xlane.xlu0 %1143
        %v1145 = vsel %vm912, %v1125, -inf
        %1146 = vmax.xlane.f32.xlu0 %v1145
        %v1147 = vpop.xlane.xlu0 %1146
        %v1148 = vsel %vm912, %v1127, -inf
        %1149 = vmax.xlane.f32.xlu0 %v1148
        %v1150 = vpop.xlane.xlu0 %1149
        %v1151 = vsel %vm912, %v1130, -inf
        %1152 = vmax.xlane.f32.xlu0 %v1151
        %v1153 = vpop.xlane.xlu0 %1152
        %v1154 = vsel %vm912, %v1132, -inf
        %1155 = vmax.xlane.f32.xlu0 %v1154
        %v1156 = vpop.xlane.xlu0 %1155
        %v1157 = vsel %vm912, %v1135, -inf
        %1158 = vmax.xlane.f32.xlu0 %v1157
        %v1159 = vpop.xlane.xlu0 %1158
        %v1160 = vsel %vm912, %v1137, -inf
        %1161 = vmax.xlane.f32.xlu0 %v1160
        %v1162 = vpop.xlane.xlu0 %1161
        %v1163 = vsub.f32 %v1120, %v1141
        %v1164 = vsub.f32 %v1122, %v1144
        %v1165 = vsub.f32 %v1125, %v1147
        %v1166 = vsub.f32 %v1127, %v1150
        %v1167 = vsub.f32 %v1130, %v1153
        %v1168 = vsub.f32 %v1132, %v1156
        %v1169 = vsub.f32 %v1135, %v1159
        %v1170 = vsub.f32 %v1137, %v1162
        %v1171 = vmul.f32 %v1163, 1.442695
        %v1172 = vpow.pop %v1171
        %v1173 = vmul.f32 %v1164, 1.442695
        %v1174 = vpow.pop %v1173
        %v1175 = vmul.f32 %v1165, 1.442695
        %v1176 = vpow.pop %v1175
        %v1177 = vmul.f32 %v1166, 1.442695
        %v1178 = vpow.pop %v1177
        %v1179 = vmul.f32 %v1167, 1.442695
        %v1180 = vpow.pop %v1179
        %v1181 = vmul.f32 %v1168, 1.442695
        %v1182 = vpow.pop %v1181
        %v1183 = vmul.f32 %v1169, 1.442695
        %v1184 = vpow.pop %v1183
        %v1185 = vmul.f32 %v1170, 1.442695
        %v1186 = vpow.pop %v1185
        %v1187 = vsel %vm912, %v1172, 0.0
        %1188 = vadd.xlane.f32.xlu0 %v1187
        %v1189 = vpop.xlane.xlu0 %1188
        %v1190 = vsel %vm912, %v1174, 0.0
        %1191 = vadd.xlane.f32.xlu0 %v1190
        %v1192 = vpop.xlane.xlu0 %1191
        %v1193 = vsel %vm912, %v1176, 0.0
        %1194 = vadd.xlane.f32.xlu0 %v1193
        %v1195 = vpop.xlane.xlu0 %1194
        %v1196 = vsel %vm912, %v1178, 0.0
        %1197 = vadd.xlane.f32.xlu0 %v1196
        %v1198 = vpop.xlane.xlu0 %1197
        %v1199 = vsel %vm912, %v1180, 0.0
        %1200 = vadd.xlane.f32.xlu0 %v1199
        %v1201 = vpop.xlane.xlu0 %1200
        %v1202 = vsel %vm912, %v1182, 0.0
        %1203 = vadd.xlane.f32.xlu0 %v1202
        %v1204 = vpop.xlane.xlu0 %1203
        %v1205 = vsel %vm912, %v1184, 0.0
        %1206 = vadd.xlane.f32.xlu0 %v1205
        %v1207 = vpop.xlane.xlu0 %1206
        %v1208 = vsel %vm912, %v1186, 0.0
        %1209 = vadd.xlane.f32.xlu0 %v1208
        %v1210 = vpop.xlane.xlu0 %1209
        %v1211 = vrcp.pop %v1189
        %v1212 = vrcp.pop %v1192
        %v1213 = vrcp.pop %v1195
        %v1214 = vrcp.pop %v1198
        %v1215 = vrcp.pop %v1201
        %v1216 = vrcp.pop %v1204
        %v1217 = vrcp.pop %v1207
        %v1218 = vrcp.pop %v1210
        %v1219 = vpack.c.bf16 %v1174, %v1172
        %v1220 = vpack.c.bf16 %v1178, %v1176
        %v1221 = vpack.c.bf16 %v1182, %v1180
        %v1222 = vpack.c.bf16 %v1186, %v1184
        %1223 = vrot.lane.b32.xlu0 %v1013, 96
        %v1224 = vpop.permute.xlu0 %1223
        %1225 = vrot.lane.b32.xlu0 %v1014, 96
        %v1226 = vpop.permute.xlu0 %1225
        %1227 = vrot.lane.b32.xlu0 %v1015, 96
        %v1228 = vpop.permute.xlu0 %1227
        %1229 = vrot.lane.b32.xlu0 %v1016, 96
        %v1230 = vpop.permute.xlu0 %1229
        %v1236 = vsel %vm912, %v1219, 0
        %v1239 = vsel %vm912, %v1220, 0
        %v1242 = vsel %vm912, %v1221, 0
        %v1245 = vsel %vm912, %v1222, 0
        %1247 = vmatpush.bf16.msra.mxu0 0
        %1248 = vmatpush.bf16.msra.mxu0 0
        %1249 = vmatpush.bf16.msra.mxu0 0
        %1250 = vmatpush.bf16.msra.mxu0 0
        %1251 = vmatpush.bf16.msra.mxu0 %v1230
        %1252 = vmatpush.bf16.msra.mxu0 %v1228
        %1253 = vmatpush.bf16.msra.mxu0 %v1226
        %1254 = vmatpush.bf16.msra.mxu0 %v1224
        %1255 = vmatmul.bf16.gmra.mxu0 %v1236
        %v1256 = vpop.f32.mrf.mxu0
        %v1257 = vadd.f32 0.0, %v1256
        %v1258 = vpop.f32.mrf.mxu0
        %v1259 = vadd.f32 0.0, %v1258
        %1260 = vmatmul.bf16.gmra.mxu0 %v1239
        %v1261 = vpop.f32.mrf.mxu0
        %v1262 = vadd.f32 0.0, %v1261
        %v1263 = vpop.f32.mrf.mxu0
        %v1264 = vadd.f32 0.0, %v1263
        %1265 = vmatmul.bf16.gmra.mxu0 %v1242
        %v1266 = vpop.f32.mrf.mxu0
        %v1267 = vadd.f32 0.0, %v1266
        %v1268 = vpop.f32.mrf.mxu0
        %v1269 = vadd.f32 0.0, %v1268
        %1270 = vmatmul.bf16.gmra.mxu0 %v1245
        %v1271 = vpop.f32.mrf.mxu0
        %v1272 = vadd.f32 0.0, %v1271
        %v1273 = vpop.f32.mrf.mxu0
        %v1274 = vadd.f32 0.0, %v1273
        %1275 = vdwg.mxu0
        %v1276 = vmul.f32 %v1257, %v1211
        %v1277 = vmul.f32 %v1259, %v1212
        %v1278 = vmul.f32 %v1262, %v1213
        %v1279 = vmul.f32 %v1264, %v1214
        %v1280 = vmul.f32 %v1267, %v1215
        %v1281 = vmul.f32 %v1269, %v1216
        %v1282 = vmul.f32 %v1272, %v1217
        %v1283 = vmul.f32 %v1274, %v1218
        %1284 = vrot.lane.b32.xlu0 %v842, 64
        %v1285 = vpop.permute.xlu0 %1284
        %1286 = vrot.lane.b32.xlu0 %v843, 64
        %v1287 = vpop.permute.xlu0 %1286
        %1288 = vrot.lane.b32.xlu0 %v844, 64
        %v1289 = vpop.permute.xlu0 %1288
        %1290 = vrot.lane.b32.xlu0 %v845, 64
        %v1291 = vpop.permute.xlu0 %1290
        %1292 = vrot.lane.b32.xlu0 %v854, 64
        %v1293 = vpop.permute.xlu0 %1292
        %1294 = vrot.lane.b32.xlu0 %v855, 64
        %v1295 = vpop.permute.xlu0 %1294
        %1296 = vrot.lane.b32.xlu0 %v856, 64
        %v1297 = vpop.permute.xlu0 %1296
        %1298 = vrot.lane.b32.xlu0 %v857, 64
        %v1299 = vpop.permute.xlu0 %1298
        %v1301 = vsel %vm858, %v1285, 0
        %v1304 = vsel %vm858, %v1287, 0
        %v1307 = vsel %vm858, %v1289, 0
        %v1310 = vsel %vm858, %v1291, 0
        %v1313 = vsel %vm858, %v1293, 0
        %v1316 = vsel %vm858, %v1295, 0
        %v1319 = vsel %vm858, %v1297, 0
        %v1322 = vsel %vm858, %v1299, 0
        %1324 = vmatpush.bf16.xpose.msra.mxu0 0
        %1325 = vmatpush.bf16.xpose.msra.mxu0 0
        %1326 = vmatpush.bf16.xpose.msra.mxu0 0
        %1327 = vmatpush.bf16.xpose.msra.mxu0 0
        %1328 = vmatpush.bf16.xpose.msra.mxu0 %v1322
        %1329 = vmatpush.bf16.xpose.msra.mxu0 %v1319
        %1330 = vmatpush.bf16.xpose.msra.mxu0 %v1316
        %1331 = vmatpush.bf16.xpose.msra.mxu0 %v1313
        %1332 = vmatmul.bf16.gmra.mxu0 %v1301
        %v1333 = vpop.f32.mrf.mxu0
        %v1334 = vadd.f32 0.0, %v1333
        %v1335 = vpop.f32.mrf.mxu0
        %v1336 = vadd.f32 0.0, %v1335
        %1337 = vmatmul.bf16.gmra.mxu0 %v1304
        %v1338 = vpop.f32.mrf.mxu0
        %v1339 = vadd.f32 0.0, %v1338
        %v1340 = vpop.f32.mrf.mxu0
        %v1341 = vadd.f32 0.0, %v1340
        %1342 = vmatmul.bf16.gmra.mxu0 %v1307
        %v1343 = vpop.f32.mrf.mxu0
        %v1344 = vadd.f32 0.0, %v1343
        %v1345 = vpop.f32.mrf.mxu0
        %v1346 = vadd.f32 0.0, %v1345
        %1347 = vmatmul.bf16.gmra.mxu0 %v1310
        %v1348 = vpop.f32.mrf.mxu0
        %v1349 = vadd.f32 0.0, %v1348
        %v1350 = vpop.f32.mrf.mxu0
        %v1351 = vadd.f32 0.0, %v1350
        %1352 = vdwg.mxu0
        %v1353 = vsel %vm912, %v1334, -inf
        %1354 = vmax.xlane.f32.xlu0 %v1353
        %v1355 = vpop.xlane.xlu0 %1354
        %v1356 = vsel %vm912, %v1336, -inf
        %1357 = vmax.xlane.f32.xlu0 %v1356
        %v1358 = vpop.xlane.xlu0 %1357
        %v1359 = vsel %vm912, %v1339, -inf
        %1360 = vmax.xlane.f32.xlu0 %v1359
        %v1361 = vpop.xlane.xlu0 %1360
        %v1362 = vsel %vm912, %v1341, -inf
        %1363 = vmax.xlane.f32.xlu0 %v1362
        %v1364 = vpop.xlane.xlu0 %1363
        %v1365 = vsel %vm912, %v1344, -inf
        %1366 = vmax.xlane.f32.xlu0 %v1365
        %v1367 = vpop.xlane.xlu0 %1366
        %v1368 = vsel %vm912, %v1346, -inf
        %1369 = vmax.xlane.f32.xlu0 %v1368
        %v1370 = vpop.xlane.xlu0 %1369
        %v1371 = vsel %vm912, %v1349, -inf
        %1372 = vmax.xlane.f32.xlu0 %v1371
        %v1373 = vpop.xlane.xlu0 %1372
        %v1374 = vsel %vm912, %v1351, -inf
        %1375 = vmax.xlane.f32.xlu0 %v1374
        %v1376 = vpop.xlane.xlu0 %1375
        %v1377 = vsub.f32 %v1334, %v1355
        %v1378 = vsub.f32 %v1336, %v1358
        %v1379 = vsub.f32 %v1339, %v1361
        %v1380 = vsub.f32 %v1341, %v1364
        %v1381 = vsub.f32 %v1344, %v1367
        %v1382 = vsub.f32 %v1346, %v1370
        %v1383 = vsub.f32 %v1349, %v1373
        %v1384 = vsub.f32 %v1351, %v1376
        %v1385 = vmul.f32 %v1377, 1.442695
        %v1386 = vpow.pop %v1385
        %v1387 = vmul.f32 %v1378, 1.442695
        %v1388 = vpow.pop %v1387
        %v1389 = vmul.f32 %v1379, 1.442695
        %v1390 = vpow.pop %v1389
        %v1391 = vmul.f32 %v1380, 1.442695
        %v1392 = vpow.pop %v1391
        %v1393 = vmul.f32 %v1381, 1.442695
        %v1394 = vpow.pop %v1393
        %v1395 = vmul.f32 %v1382, 1.442695
        %v1396 = vpow.pop %v1395
        %v1397 = vmul.f32 %v1383, 1.442695
        %v1398 = vpow.pop %v1397
        %v1399 = vmul.f32 %v1384, 1.442695
        %v1400 = vpow.pop %v1399
        %v1401 = vsel %vm912, %v1386, 0.0
        %1402 = vadd.xlane.f32.xlu0 %v1401
        %v1403 = vpop.xlane.xlu0 %1402
        %v1404 = vsel %vm912, %v1388, 0.0
        %1405 = vadd.xlane.f32.xlu0 %v1404
        %v1406 = vpop.xlane.xlu0 %1405
        %v1407 = vsel %vm912, %v1390, 0.0
        %1408 = vadd.xlane.f32.xlu0 %v1407
        %v1409 = vpop.xlane.xlu0 %1408
        %v1410 = vsel %vm912, %v1392, 0.0
        %1411 = vadd.xlane.f32.xlu0 %v1410
        %v1412 = vpop.xlane.xlu0 %1411
        %v1413 = vsel %vm912, %v1394, 0.0
        %1414 = vadd.xlane.f32.xlu0 %v1413
        %v1415 = vpop.xlane.xlu0 %1414
        %v1416 = vsel %vm912, %v1396, 0.0
        %1417 = vadd.xlane.f32.xlu0 %v1416
        %v1418 = vpop.xlane.xlu0 %1417
        %v1419 = vsel %vm912, %v1398, 0.0
        %1420 = vadd.xlane.f32.xlu0 %v1419
        %v1421 = vpop.xlane.xlu0 %1420
        %v1422 = vsel %vm912, %v1400, 0.0
        %1423 = vadd.xlane.f32.xlu0 %v1422
        %v1424 = vpop.xlane.xlu0 %1423
        %v1425 = vrcp.pop %v1403
        %v1426 = vrcp.pop %v1406
        %v1427 = vrcp.pop %v1409
        %v1428 = vrcp.pop %v1412
        %v1429 = vrcp.pop %v1415
        %v1430 = vrcp.pop %v1418
        %v1431 = vrcp.pop %v1421
        %v1432 = vrcp.pop %v1424
        %v1433 = vpack.c.bf16 %v1388, %v1386
        %v1434 = vpack.c.bf16 %v1392, %v1390
        %v1435 = vpack.c.bf16 %v1396, %v1394
        %v1436 = vpack.c.bf16 %v1400, %v1398
        %1437 = vrot.lane.b32.xlu0 %v1013, 64
        %v1438 = vpop.permute.xlu0 %1437
        %1439 = vrot.lane.b32.xlu0 %v1014, 64
        %v1440 = vpop.permute.xlu0 %1439
        %1441 = vrot.lane.b32.xlu0 %v1015, 64
        %v1442 = vpop.permute.xlu0 %1441
        %1443 = vrot.lane.b32.xlu0 %v1016, 64
        %v1444 = vpop.permute.xlu0 %1443
        %v1450 = vsel %vm912, %v1433, 0
        %v1453 = vsel %vm912, %v1434, 0
        %v1456 = vsel %vm912, %v1435, 0
        %v1459 = vsel %vm912, %v1436, 0
        %1461 = vmatpush.bf16.msra.mxu0 0
        %1462 = vmatpush.bf16.msra.mxu0 0
        %1463 = vmatpush.bf16.msra.mxu0 0
        %1464 = vmatpush.bf16.msra.mxu0 0
        %1465 = vmatpush.bf16.msra.mxu0 %v1444
        %1466 = vmatpush.bf16.msra.mxu0 %v1442
        %1467 = vmatpush.bf16.msra.mxu0 %v1440
        %1468 = vmatpush.bf16.msra.mxu0 %v1438
        %1469 = vmatmul.bf16.gmra.mxu0 %v1450
        %v1470 = vpop.f32.mrf.mxu0
        %v1471 = vadd.f32 0.0, %v1470
        %v1472 = vpop.f32.mrf.mxu0
        %v1473 = vadd.f32 0.0, %v1472
        %1474 = vmatmul.bf16.gmra.mxu0 %v1453
        %v1475 = vpop.f32.mrf.mxu0
        %v1476 = vadd.f32 0.0, %v1475
        %v1477 = vpop.f32.mrf.mxu0
        %v1478 = vadd.f32 0.0, %v1477
        %1479 = vmatmul.bf16.gmra.mxu0 %v1456
        %v1480 = vpop.f32.mrf.mxu0
        %v1481 = vadd.f32 0.0, %v1480
        %v1482 = vpop.f32.mrf.mxu0
        %v1483 = vadd.f32 0.0, %v1482
        %1484 = vmatmul.bf16.gmra.mxu0 %v1459
        %v1485 = vpop.f32.mrf.mxu0
        %v1486 = vadd.f32 0.0, %v1485
        %v1487 = vpop.f32.mrf.mxu0
        %v1488 = vadd.f32 0.0, %v1487
        %1489 = vdwg.mxu0
        %v1490 = vmul.f32 %v1471, %v1425
        %v1491 = vmul.f32 %v1473, %v1426
        %v1492 = vmul.f32 %v1476, %v1427
        %v1493 = vmul.f32 %v1478, %v1428
        %v1494 = vmul.f32 %v1481, %v1429
        %v1495 = vmul.f32 %v1483, %v1430
        %v1496 = vmul.f32 %v1486, %v1431
        %v1497 = vmul.f32 %v1488, %v1432
        %1498 = vrot.lane.b32.xlu0 %v842, 32
        %v1499 = vpop.permute.xlu0 %1498
        %1500 = vrot.lane.b32.xlu0 %v843, 32
        %v1501 = vpop.permute.xlu0 %1500
        %1502 = vrot.lane.b32.xlu0 %v844, 32
        %v1503 = vpop.permute.xlu0 %1502
        %1504 = vrot.lane.b32.xlu0 %v845, 32
        %v1505 = vpop.permute.xlu0 %1504
        %1506 = vrot.lane.b32.xlu0 %v854, 32
        %v1507 = vpop.permute.xlu0 %1506
        %1508 = vrot.lane.b32.xlu0 %v855, 32
        %v1509 = vpop.permute.xlu0 %1508
        %1510 = vrot.lane.b32.xlu0 %v856, 32
        %v1511 = vpop.permute.xlu0 %1510
        %1512 = vrot.lane.b32.xlu0 %v857, 32
        %v1513 = vpop.permute.xlu0 %1512
        %v1515 = vsel %vm858, %v1499, 0
        %v1518 = vsel %vm858, %v1501, 0
        %v1521 = vsel %vm858, %v1503, 0
        %v1524 = vsel %vm858, %v1505, 0
        %v1527 = vsel %vm858, %v1507, 0
        %v1530 = vsel %vm858, %v1509, 0
        %v1533 = vsel %vm858, %v1511, 0
        %v1536 = vsel %vm858, %v1513, 0
        %1538 = vmatpush.bf16.xpose.msra.mxu0 0
        %1539 = vmatpush.bf16.xpose.msra.mxu0 0
        %1540 = vmatpush.bf16.xpose.msra.mxu0 0
        %1541 = vmatpush.bf16.xpose.msra.mxu0 0
        %1542 = vmatpush.bf16.xpose.msra.mxu0 %v1536
        %1543 = vmatpush.bf16.xpose.msra.mxu0 %v1533
        %1544 = vmatpush.bf16.xpose.msra.mxu0 %v1530
        %1545 = vmatpush.bf16.xpose.msra.mxu0 %v1527
        %1546 = vmatmul.bf16.gmra.mxu0 %v1515
        %v1547 = vpop.f32.mrf.mxu0
        %v1548 = vadd.f32 0.0, %v1547
        %v1549 = vpop.f32.mrf.mxu0
        %v1550 = vadd.f32 0.0, %v1549
        %1551 = vmatmul.bf16.gmra.mxu0 %v1518
        %v1552 = vpop.f32.mrf.mxu0
        %v1553 = vadd.f32 0.0, %v1552
        %v1554 = vpop.f32.mrf.mxu0
        %v1555 = vadd.f32 0.0, %v1554
        %1556 = vmatmul.bf16.gmra.mxu0 %v1521
        %v1557 = vpop.f32.mrf.mxu0
        %v1558 = vadd.f32 0.0, %v1557
        %v1559 = vpop.f32.mrf.mxu0
        %v1560 = vadd.f32 0.0, %v1559
        %1561 = vmatmul.bf16.gmra.mxu0 %v1524
        %v1562 = vpop.f32.mrf.mxu0
        %v1563 = vadd.f32 0.0, %v1562
        %v1564 = vpop.f32.mrf.mxu0
        %v1565 = vadd.f32 0.0, %v1564
        %1566 = vdwg.mxu0
        %v1567 = vsel %vm912, %v1548, -inf
        %1568 = vmax.xlane.f32.xlu0 %v1567
        %v1569 = vpop.xlane.xlu0 %1568
        %v1570 = vsel %vm912, %v1550, -inf
        %1571 = vmax.xlane.f32.xlu0 %v1570
        %v1572 = vpop.xlane.xlu0 %1571
        %v1573 = vsel %vm912, %v1553, -inf
        %1574 = vmax.xlane.f32.xlu0 %v1573
        %v1575 = vpop.xlane.xlu0 %1574
        %v1576 = vsel %vm912, %v1555, -inf
        %1577 = vmax.xlane.f32.xlu0 %v1576
        %v1578 = vpop.xlane.xlu0 %1577
        %v1579 = vsel %vm912, %v1558, -inf
        %1580 = vmax.xlane.f32.xlu0 %v1579
        %v1581 = vpop.xlane.xlu0 %1580
        %v1582 = vsel %vm912, %v1560, -inf
        %1583 = vmax.xlane.f32.xlu0 %v1582
        %v1584 = vpop.xlane.xlu0 %1583
        %v1585 = vsel %vm912, %v1563, -inf
        %1586 = vmax.xlane.f32.xlu0 %v1585
        %v1587 = vpop.xlane.xlu0 %1586
        %v1588 = vsel %vm912, %v1565, -inf
        %1589 = vmax.xlane.f32.xlu0 %v1588
        %v1590 = vpop.xlane.xlu0 %1589
        %v1591 = vsub.f32 %v1548, %v1569
        %v1592 = vsub.f32 %v1550, %v1572
        %v1593 = vsub.f32 %v1553, %v1575
        %v1594 = vsub.f32 %v1555, %v1578
        %v1595 = vsub.f32 %v1558, %v1581
        %v1596 = vsub.f32 %v1560, %v1584
        %v1597 = vsub.f32 %v1563, %v1587
        %v1598 = vsub.f32 %v1565, %v1590
        %v1599 = vmul.f32 %v1591, 1.442695
        %v1600 = vpow.pop %v1599
        %v1601 = vmul.f32 %v1592, 1.442695
        %v1602 = vpow.pop %v1601
        %v1603 = vmul.f32 %v1593, 1.442695
        %v1604 = vpow.pop %v1603
        %v1605 = vmul.f32 %v1594, 1.442695
        %v1606 = vpow.pop %v1605
        %v1607 = vmul.f32 %v1595, 1.442695
        %v1608 = vpow.pop %v1607
        %v1609 = vmul.f32 %v1596, 1.442695
        %v1610 = vpow.pop %v1609
        %v1611 = vmul.f32 %v1597, 1.442695
        %v1612 = vpow.pop %v1611
        %v1613 = vmul.f32 %v1598, 1.442695
        %v1614 = vpow.pop %v1613
        %v1615 = vsel %vm912, %v1600, 0.0
        %1616 = vadd.xlane.f32.xlu0 %v1615
        %v1617 = vpop.xlane.xlu0 %1616
        %v1618 = vsel %vm912, %v1602, 0.0
        %1619 = vadd.xlane.f32.xlu0 %v1618
        %v1620 = vpop.xlane.xlu0 %1619
        %v1621 = vsel %vm912, %v1604, 0.0
        %1622 = vadd.xlane.f32.xlu0 %v1621
        %v1623 = vpop.xlane.xlu0 %1622
        %v1624 = vsel %vm912, %v1606, 0.0
        %1625 = vadd.xlane.f32.xlu0 %v1624
        %v1626 = vpop.xlane.xlu0 %1625
        %v1627 = vsel %vm912, %v1608, 0.0
        %1628 = vadd.xlane.f32.xlu0 %v1627
        %v1629 = vpop.xlane.xlu0 %1628
        %v1630 = vsel %vm912, %v1610, 0.0
        %1631 = vadd.xlane.f32.xlu0 %v1630
        %v1632 = vpop.xlane.xlu0 %1631
        %v1633 = vsel %vm912, %v1612, 0.0
        %1634 = vadd.xlane.f32.xlu0 %v1633
        %v1635 = vpop.xlane.xlu0 %1634
        %v1636 = vsel %vm912, %v1614, 0.0
        %1637 = vadd.xlane.f32.xlu0 %v1636
        %v1638 = vpop.xlane.xlu0 %1637
        %v1639 = vrcp.pop %v1617
        %v1640 = vrcp.pop %v1620
        %v1641 = vrcp.pop %v1623
        %v1642 = vrcp.pop %v1626
        %v1643 = vrcp.pop %v1629
        %v1644 = vrcp.pop %v1632
        %v1645 = vrcp.pop %v1635
        %v1646 = vrcp.pop %v1638
        %v1647 = vpack.c.bf16 %v1602, %v1600
        %v1648 = vpack.c.bf16 %v1606, %v1604
        %v1649 = vpack.c.bf16 %v1610, %v1608
        %v1650 = vpack.c.bf16 %v1614, %v1612
        %1651 = vrot.lane.b32.xlu0 %v1013, 32
        %v1652 = vpop.permute.xlu0 %1651
        %1653 = vrot.lane.b32.xlu0 %v1014, 32
        %v1654 = vpop.permute.xlu0 %1653
        %1655 = vrot.lane.b32.xlu0 %v1015, 32
        %v1656 = vpop.permute.xlu0 %1655
        %1657 = vrot.lane.b32.xlu0 %v1016, 32
        %v1658 = vpop.permute.xlu0 %1657
        %v1664 = vsel %vm912, %v1647, 0
        %v1667 = vsel %vm912, %v1648, 0
        %v1670 = vsel %vm912, %v1649, 0
        %v1673 = vsel %vm912, %v1650, 0
        %1675 = vmatpush.bf16.msra.mxu0 0
        %1676 = vmatpush.bf16.msra.mxu0 0
        %1677 = vmatpush.bf16.msra.mxu0 0
        %1678 = vmatpush.bf16.msra.mxu0 0
        %1679 = vmatpush.bf16.msra.mxu0 %v1658
        %1680 = vmatpush.bf16.msra.mxu0 %v1656
        %1681 = vmatpush.bf16.msra.mxu0 %v1654
        %1682 = vmatpush.bf16.msra.mxu0 %v1652
        %1683 = vmatmul.bf16.gmra.mxu0 %v1664
        %v1684 = vpop.f32.mrf.mxu0
        %v1685 = vadd.f32 0.0, %v1684
        %v1686 = vpop.f32.mrf.mxu0
        %v1687 = vadd.f32 0.0, %v1686
        %1688 = vmatmul.bf16.gmra.mxu0 %v1667
        %v1689 = vpop.f32.mrf.mxu0
        %v1690 = vadd.f32 0.0, %v1689
        %v1691 = vpop.f32.mrf.mxu0
        %v1692 = vadd.f32 0.0, %v1691
        %1693 = vmatmul.bf16.gmra.mxu0 %v1670
        %v1694 = vpop.f32.mrf.mxu0
        %v1695 = vadd.f32 0.0, %v1694
        %v1696 = vpop.f32.mrf.mxu0
        %v1697 = vadd.f32 0.0, %v1696
        %1698 = vmatmul.bf16.gmra.mxu0 %v1673
        %v1699 = vpop.f32.mrf.mxu0
        %v1700 = vadd.f32 0.0, %v1699
        %v1701 = vpop.f32.mrf.mxu0
        %v1702 = vadd.f32 0.0, %v1701
        %1703 = vdwg.mxu0
        %v1704 = vmul.f32 %v1685, %v1639
        %v1705 = vmul.f32 %v1687, %v1640
        %v1706 = vmul.f32 %v1690, %v1641
        %v1707 = vmul.f32 %v1692, %v1642
        %v1708 = vmul.f32 %v1695, %v1643
        %v1709 = vmul.f32 %v1697, %v1644
        %v1710 = vmul.f32 %v1700, %v1645
        %v1711 = vmul.f32 %v1702, %v1646
        %1720 = vrot.lane.b32.xlu0 %v1276, 32
        %v1721 = vpop.permute.xlu0 %1720
        %1722 = vrot.lane.b32.xlu0 %v1277, 32
        %v1723 = vpop.permute.xlu0 %1722
        %1724 = vrot.lane.b32.xlu0 %v1278, 32
        %v1725 = vpop.permute.xlu0 %1724
        %1726 = vrot.lane.b32.xlu0 %v1279, 32
        %v1727 = vpop.permute.xlu0 %1726
        %1728 = vrot.lane.b32.xlu0 %v1280, 32
        %v1729 = vpop.permute.xlu0 %1728
        %1730 = vrot.lane.b32.xlu0 %v1281, 32
        %v1731 = vpop.permute.xlu0 %1730
        %1732 = vrot.lane.b32.xlu0 %v1282, 32
        %v1733 = vpop.permute.xlu0 %1732
        %1734 = vrot.lane.b32.xlu0 %v1283, 32
        %v1735 = vpop.permute.xlu0 %1734
        %1752 = vrot.lane.b32.xlu0 %v1490, 64
        %v1753 = vpop.permute.xlu0 %1752
        %1754 = vrot.lane.b32.xlu0 %v1491, 64
        %v1755 = vpop.permute.xlu0 %1754
        %1756 = vrot.lane.b32.xlu0 %v1492, 64
        %v1757 = vpop.permute.xlu0 %1756
        %1758 = vrot.lane.b32.xlu0 %v1493, 64
        %v1759 = vpop.permute.xlu0 %1758
        %1760 = vrot.lane.b32.xlu0 %v1494, 64
        %v1761 = vpop.permute.xlu0 %1760
        %1762 = vrot.lane.b32.xlu0 %v1495, 64
        %v1763 = vpop.permute.xlu0 %1762
        %1764 = vrot.lane.b32.xlu0 %v1496, 64
        %v1765 = vpop.permute.xlu0 %1764
        %1766 = vrot.lane.b32.xlu0 %v1497, 64
        %v1767 = vpop.permute.xlu0 %1766
        %1784 = vrot.lane.b32.xlu0 %v1704, 96
        %v1785 = vpop.permute.xlu0 %1784
        %1786 = vrot.lane.b32.xlu0 %v1705, 96
        %v1787 = vpop.permute.xlu0 %1786
        %1788 = vrot.lane.b32.xlu0 %v1706, 96
        %v1789 = vpop.permute.xlu0 %1788
        %1790 = vrot.lane.b32.xlu0 %v1707, 96
        %v1791 = vpop.permute.xlu0 %1790
        %1792 = vrot.lane.b32.xlu0 %v1708, 96
        %v1793 = vpop.permute.xlu0 %1792
        %1794 = vrot.lane.b32.xlu0 %v1709, 96
        %v1795 = vpop.permute.xlu0 %1794
        %1796 = vrot.lane.b32.xlu0 %v1710, 96
        %v1797 = vpop.permute.xlu0 %1796
        %1798 = vrot.lane.b32.xlu0 %v1711, 96
        %v1799 = vpop.permute.xlu0 %1798
        %v1808 = vsel %vm858, %v1062, %v1721
        %v1809 = vsel %vm858, %v1063, %v1723
        %v1810 = vsel %vm858, %v1064, %v1725
        %v1811 = vsel %vm858, %v1065, %v1727
        %v1812 = vsel %vm858, %v1066, %v1729
        %v1813 = vsel %vm858, %v1067, %v1731
        %v1814 = vsel %vm858, %v1068, %v1733
        %v1815 = vsel %vm858, %v1069, %v1735
        %v1816 = vsel %vm912, %v1808, %v1753
        %v1817 = vsel %vm912, %v1809, %v1755
        %v1818 = vsel %vm912, %v1810, %v1757
        %v1819 = vsel %vm912, %v1811, %v1759
        %v1820 = vsel %vm912, %v1812, %v1761
        %v1821 = vsel %vm912, %v1813, %v1763
        %v1822 = vsel %vm912, %v1814, %v1765
        %v1823 = vsel %vm912, %v1815, %v1767
        %vm1824 = vcmask 785408
        %v1825 = vsel %vm1824, %v1816, %v1785
        %v1826 = vsel %vm1824, %v1817, %v1787
        %v1827 = vsel %vm1824, %v1818, %v1789
        %v1828 = vsel %vm1824, %v1819, %v1791
        %v1829 = vsel %vm1824, %v1820, %v1793
        %v1830 = vsel %vm1824, %v1821, %v1795
        %v1831 = vsel %vm1824, %v1822, %v1797
        %v1832 = vsel %vm1824, %v1823, %v1799
        %v1833 = vpack.c.bf16 %v1826, %v1825
        %v1834 = vpack.c.bf16 %v1828, %v1827
        %v1835 = vpack.c.bf16 %v1830, %v1829
        %v1836 = vpack.c.bf16 %v1832, %v1831
        %v1837 = vld [vmem:[#allocation8] sm:$0xf]
        %v1838 = vld [vmem:[#allocation8 + $0x4] sm:$0xf]
        %v1839 = vld [vmem:[#allocation8 + $0x8] sm:$0xf]
        %v1840 = vld [vmem:[#allocation8 + $0xc] sm:$0xf]
        %v1841 = vld [vmem:[#allocation8 + $0x10] sm:$0xf]
        %v1842 = vld [vmem:[#allocation8 + $0x14] sm:$0xf]
        %v1843 = vld [vmem:[#allocation8 + $0x18] sm:$0xf]
        %v1844 = vld [vmem:[#allocation8 + $0x1c] sm:$0xf]
        %v1845 = vld [vmem:[#allocation8 + $0x20] sm:$0xf]
        %v1846 = vld [vmem:[#allocation8 + $0x24] sm:$0xf]
        %v1847 = vld [vmem:[#allocation8 + $0x28] sm:$0xf]
        %v1848 = vld [vmem:[#allocation8 + $0x2c] sm:$0xf]
        %v1849 = vld [vmem:[#allocation8 + $0x30] sm:$0xf]
        %v1850 = vld [vmem:[#allocation8 + $0x34] sm:$0xf]
        %v1851 = vld [vmem:[#allocation8 + $0x38] sm:$0xf]
        %v1852 = vld [vmem:[#allocation8 + $0x3c] sm:$0xf]
        %v1853 = vld [vmem:[%s4] sm:$0x1]
        %v1855 = vperm.slane %v1853, 0
        %v1873 = vunpack.c.l.b16 %v1837
        %v1874 = vunpack.c.l.b16 %v1838
        %v1875 = vunpack.c.l.b16 %v1839
        %v1876 = vunpack.c.l.b16 %v1840
        %v1877 = vunpack.c.l.b16 %v1841
        %v1878 = vunpack.c.l.b16 %v1842
        %v1879 = vunpack.c.l.b16 %v1843
        %v1880 = vunpack.c.l.b16 %v1844
        %v1881 = vunpack.c.l.b16 %v1845
        %v1882 = vunpack.c.l.b16 %v1846
        %v1883 = vunpack.c.l.b16 %v1847
        %v1884 = vunpack.c.l.b16 %v1848
        %v1885 = vunpack.c.l.b16 %v1849
        %v1886 = vunpack.c.l.b16 %v1850
        %v1887 = vunpack.c.l.b16 %v1851
        %v1888 = vunpack.c.l.b16 %v1852
        %v1889 = vpack.c.b16 %v1874, %v1873
        %v1890 = vpack.c.b16 %v1876, %v1875
        %v1891 = vpack.c.b16 %v1878, %v1877
        %v1892 = vpack.c.b16 %v1880, %v1879
        %v1893 = vpack.c.b16 %v1882, %v1881
        %v1894 = vpack.c.b16 %v1884, %v1883
        %v1895 = vpack.c.b16 %v1886, %v1885
        %v1896 = vpack.c.b16 %v1888, %v1887
        %1905 = vmatpush.bf16.msra.mxu0 %v1896
        %1906 = vmatpush.bf16.msra.mxu0 %v1895
        %1907 = vmatpush.bf16.msra.mxu0 %v1894
        %1908 = vmatpush.bf16.msra.mxu0 %v1893
        %1909 = vmatpush.bf16.msra.mxu0 %v1892
        %1910 = vmatpush.bf16.msra.mxu0 %v1891
        %1911 = vmatpush.bf16.msra.mxu0 %v1890
        %1912 = vmatpush.bf16.msra.mxu0 %v1889
        %1913 = vmatmul.bf16.gmra.mxu0 %v1833
        %v1914 = vpop.f32.mrf.mxu0
        %v1915 = vadd.f32 %v1855, %v1914
        %v1916 = vpop.f32.mrf.mxu0
        %v1917 = vadd.f32 %v1855, %v1916
        %1918 = vmatmul.bf16.gmra.mxu0 %v1834
        %v1919 = vpop.f32.mrf.mxu0
        %v1920 = vadd.f32 %v1855, %v1919
        %v1921 = vpop.f32.mrf.mxu0
        %v1922 = vadd.f32 %v1855, %v1921
        %1923 = vmatmul.bf16.gmra.mxu0 %v1835
        %v1924 = vpop.f32.mrf.mxu0
        %v1925 = vadd.f32 %v1855, %v1924
        %v1926 = vpop.f32.mrf.mxu0
        %v1927 = vadd.f32 %v1855, %v1926
        %1928 = vmatmul.bf16.gmra.mxu0 %v1836
        %v1929 = vpop.f32.mrf.mxu0
        %v1930 = vadd.f32 %v1855, %v1929
        %v1931 = vpop.f32.mrf.mxu0
        %v1932 = vadd.f32 %v1855, %v1931
        %1933 = vdwg.mxu0
        %v1934 = vadd.f32 %v543, %v1915
        %v1935 = vadd.f32 %v544, %v1917
        %v1936 = vadd.f32 %v545, %v1920
        %v1937 = vadd.f32 %v546, %v1922
        %v1938 = vadd.f32 %v547, %v1925
        %v1939 = vadd.f32 %v548, %v1927
        %v1940 = vadd.f32 %v549, %v1930
        %v1941 = vadd.f32 %v550, %v1932
        %1942 = vadd.xlane.f32.xlu0 %v1934
        %v1943 = vpop.xlane.xlu0 %1942
        %1944 = vadd.xlane.f32.xlu0 %v1935
        %v1945 = vpop.xlane.xlu0 %1944
        %1946 = vadd.xlane.f32.xlu0 %v1936
        %v1947 = vpop.xlane.xlu0 %1946
        %1948 = vadd.xlane.f32.xlu0 %v1937
        %v1949 = vpop.xlane.xlu0 %1948
        %1950 = vadd.xlane.f32.xlu0 %v1938
        %v1951 = vpop.xlane.xlu0 %1950
        %1952 = vadd.xlane.f32.xlu0 %v1939
        %v1953 = vpop.xlane.xlu0 %1952
        %1954 = vadd.xlane.f32.xlu0 %v1940
        %v1955 = vpop.xlane.xlu0 %1954
        %1956 = vadd.xlane.f32.xlu0 %v1941
        %v1957 = vpop.xlane.xlu0 %1956
        %v1958 = vrcp.pop 128.0
        %v1959 = vmul.f32 128.0, %v1958
        %v1960 = vsub.f32 1.0, %v1959
        %v1961 = vmul.f32 %v1958, %v1960
        %v1962 = vadd.f32 %v1958, %v1961
        %vm1963 = vweird.f32 %v1958
        %v1964 = vsel %vm1963, %v1958, %v1962
        %v1965 = vmul.f32 %v1943, %v1964
        %v1966 = vmul.f32 %v1945, %v1964
        %v1967 = vmul.f32 %v1947, %v1964
        %v1968 = vmul.f32 %v1949, %v1964
        %v1969 = vmul.f32 %v1951, %v1964
        %v1970 = vmul.f32 %v1953, %v1964
        %v1971 = vmul.f32 %v1955, %v1964
        %v1972 = vmul.f32 %v1957, %v1964
        %v1973 = vsub.f32 %v1934, %v1965
        %v1974 = vsub.f32 %v1935, %v1966
        %v1975 = vsub.f32 %v1936, %v1967
        %v1976 = vsub.f32 %v1937, %v1968
        %v1977 = vsub.f32 %v1938, %v1969
        %v1978 = vsub.f32 %v1939, %v1970
        %v1979 = vsub.f32 %v1940, %v1971
        %v1980 = vsub.f32 %v1941, %v1972
        %v1981 = vmul.f32 %v1973, %v1973
        %v1982 = vmul.f32 %v1974, %v1974
        %v1983 = vmul.f32 %v1975, %v1975
        %v1984 = vmul.f32 %v1976, %v1976
        %v1985 = vmul.f32 %v1977, %v1977
        %v1986 = vmul.f32 %v1978, %v1978
        %v1987 = vmul.f32 %v1979, %v1979
        %v1988 = vmul.f32 %v1980, %v1980
        %1989 = vadd.xlane.f32.xlu0 %v1981
        %v1990 = vpop.xlane.xlu0 %1989
        %1991 = vadd.xlane.f32.xlu0 %v1982
        %v1992 = vpop.xlane.xlu0 %1991
        %1993 = vadd.xlane.f32.xlu0 %v1983
        %v1994 = vpop.xlane.xlu0 %1993
        %1995 = vadd.xlane.f32.xlu0 %v1984
        %v1996 = vpop.xlane.xlu0 %1995
        %1997 = vadd.xlane.f32.xlu0 %v1985
        %v1998 = vpop.xlane.xlu0 %1997
        %1999 = vadd.xlane.f32.xlu0 %v1986
        %v2000 = vpop.xlane.xlu0 %1999
        %2001 = vadd.xlane.f32.xlu0 %v1987
        %v2002 = vpop.xlane.xlu0 %2001
        %2003 = vadd.xlane.f32.xlu0 %v1988
        %v2004 = vpop.xlane.xlu0 %2003
        %v2005 = vmul.f32 %v1990, %v1964
        %v2006 = vmul.f32 %v1992, %v1964
        %v2007 = vmul.f32 %v1994, %v1964
        %v2008 = vmul.f32 %v1996, %v1964
        %v2009 = vmul.f32 %v1998, %v1964
        %v2010 = vmul.f32 %v2000, %v1964
        %v2011 = vmul.f32 %v2002, %v1964
        %v2012 = vmul.f32 %v2004, %v1964
        %v2013 = vadd.f32 %v2005, 1e-05
        %v2014 = vadd.f32 %v2006, 1e-05
        %v2015 = vadd.f32 %v2007, 1e-05
        %v2016 = vadd.f32 %v2008, 1e-05
        %v2017 = vadd.f32 %v2009, 1e-05
        %v2018 = vadd.f32 %v2010, 1e-05
        %v2019 = vadd.f32 %v2011, 1e-05
        %v2020 = vadd.f32 %v2012, 1e-05
        %v2021 = vrsqrt.pop %v2013
        %v2022 = vmul.f32 %v2021, %v2013
        %v2023 = vmul.f32 %v2022, %v2021
        %v2024 = vmul.f32 0.5, %v2023
        %v2025 = vsub.f32 1.5, %v2024
        %v2026 = vmul.f32 %v2021, %v2025
        %vm2027 = vweird.f32 %v2013
        %vm2028 = vweird.f32 %v2021
        %vm2029 = vmor %vm2027, %vm2028
        %v2030 = vsel %vm2029, %v2021, %v2026
        %v2031 = vrsqrt.pop %v2014
        %v2032 = vmul.f32 %v2031, %v2014
        %v2033 = vmul.f32 %v2032, %v2031
        %v2034 = vmul.f32 0.5, %v2033
        %v2035 = vsub.f32 1.5, %v2034
        %v2036 = vmul.f32 %v2031, %v2035
        %vm2037 = vweird.f32 %v2014
        %vm2038 = vweird.f32 %v2031
        %vm2039 = vmor %vm2037, %vm2038
        %v2040 = vsel %vm2039, %v2031, %v2036
        %v2041 = vrsqrt.pop %v2015
        %v2042 = vmul.f32 %v2041, %v2015
        %v2043 = vmul.f32 %v2042, %v2041
        %v2044 = vmul.f32 0.5, %v2043
        %v2045 = vsub.f32 1.5, %v2044
        %v2046 = vmul.f32 %v2041, %v2045
        %vm2047 = vweird.f32 %v2015
        %vm2048 = vweird.f32 %v2041
        %vm2049 = vmor %vm2047, %vm2048
        %v2050 = vsel %vm2049, %v2041, %v2046
        %v2051 = vrsqrt.pop %v2016
        %v2052 = vmul.f32 %v2051, %v2016
        %v2053 = vmul.f32 %v2052, %v2051
        %v2054 = vmul.f32 0.5, %v2053
        %v2055 = vsub.f32 1.5, %v2054
        %v2056 = vmul.f32 %v2051, %v2055
        %vm2057 = vweird.f32 %v2016
        %vm2058 = vweird.f32 %v2051
        %vm2059 = vmor %vm2057, %vm2058
        %v2060 = vsel %vm2059, %v2051, %v2056
        %v2061 = vrsqrt.pop %v2017
        %v2062 = vmul.f32 %v2061, %v2017
        %v2063 = vmul.f32 %v2062, %v2061
        %v2064 = vmul.f32 0.5, %v2063
        %v2065 = vsub.f32 1.5, %v2064
        %v2066 = vmul.f32 %v2061, %v2065
        %vm2067 = vweird.f32 %v2017
        %vm2068 = vweird.f32 %v2061
        %vm2069 = vmor %vm2067, %vm2068
        %v2070 = vsel %vm2069, %v2061, %v2066
        %v2071 = vrsqrt.pop %v2018
        %v2072 = vmul.f32 %v2071, %v2018
        %v2073 = vmul.f32 %v2072, %v2071
        %v2074 = vmul.f32 0.5, %v2073
        %v2075 = vsub.f32 1.5, %v2074
        %v2076 = vmul.f32 %v2071, %v2075
        %vm2077 = vweird.f32 %v2018
        %vm2078 = vweird.f32 %v2071
        %vm2079 = vmor %vm2077, %vm2078
        %v2080 = vsel %vm2079, %v2071, %v2076
        %v2081 = vrsqrt.pop %v2019
        %v2082 = vmul.f32 %v2081, %v2019
        %v2083 = vmul.f32 %v2082, %v2081
        %v2084 = vmul.f32 0.5, %v2083
        %v2085 = vsub.f32 1.5, %v2084
        %v2086 = vmul.f32 %v2081, %v2085
        %vm2087 = vweird.f32 %v2019
        %vm2088 = vweird.f32 %v2081
        %vm2089 = vmor %vm2087, %vm2088
        %v2090 = vsel %vm2089, %v2081, %v2086
        %v2091 = vrsqrt.pop %v2020
        %v2092 = vmul.f32 %v2091, %v2020
        %v2093 = vmul.f32 %v2092, %v2091
        %v2094 = vmul.f32 0.5, %v2093
        %v2095 = vsub.f32 1.5, %v2094
        %v2096 = vmul.f32 %v2091, %v2095
        %vm2097 = vweird.f32 %v2020
        %vm2098 = vweird.f32 %v2091
        %vm2099 = vmor %vm2097, %vm2098
        %v2100 = vsel %vm2099, %v2091, %v2096
        %v2101 = vmul.f32 %v1973, %v2030
        %v2102 = vmul.f32 %v1974, %v2040
        %v2103 = vmul.f32 %v1975, %v2050
        %v2104 = vmul.f32 %v1976, %v2060
        %v2105 = vmul.f32 %v1977, %v2070
        %v2106 = vmul.f32 %v1978, %v2080
        %v2107 = vmul.f32 %v1979, %v2090
        %v2108 = vmul.f32 %v1980, %v2100
        %v2109 = vld [vmem:[%s5] sm:$0x1]
        %v2111 = vperm.slane %v2109, 0
        %v2113 = vmul.f32 %v2101, %v2111
        %v2114 = vmul.f32 %v2102, %v2111
        %v2115 = vmul.f32 %v2103, %v2111
        %v2116 = vmul.f32 %v2104, %v2111
        %v2117 = vmul.f32 %v2105, %v2111
        %v2118 = vmul.f32 %v2106, %v2111
        %v2119 = vmul.f32 %v2107, %v2111
        %v2120 = vmul.f32 %v2108, %v2111
        %v2121 = vld [vmem:[%s6] sm:$0x1]
        %v2123 = vperm.slane %v2121, 0
        %v2125 = vadd.f32 %v2113, %v2123
        %v2126 = vadd.f32 %v2114, %v2123
        %v2127 = vadd.f32 %v2115, %v2123
        %v2128 = vadd.f32 %v2116, %v2123
        %v2129 = vadd.f32 %v2117, %v2123
        %v2130 = vadd.f32 %v2118, %v2123
        %v2131 = vadd.f32 %v2119, %v2123
        %v2132 = vadd.f32 %v2120, %v2123
        %v2133 = vpack.c.bf16 %v2126, %v2125
        %v2134 = vpack.c.bf16 %v2128, %v2127
        %v2135 = vpack.c.bf16 %v2130, %v2129
        %v2136 = vpack.c.bf16 %v2132, %v2131
        %v2137 = vld [vmem:[#allocation10] sm:$0xff]
        %v2138 = vld [vmem:[#allocation10 + $0x8] sm:$0xff]
        %v2139 = vld [vmem:[#allocation10 + $0x10] sm:$0xff]
        %v2140 = vld [vmem:[#allocation10 + $0x18] sm:$0xff]
        %v2141 = vld [vmem:[#allocation10 + $0x20] sm:$0xff]
        %v2142 = vld [vmem:[#allocation10 + $0x28] sm:$0xff]
        %v2143 = vld [vmem:[#allocation10 + $0x30] sm:$0xff]
        %v2144 = vld [vmem:[#allocation10 + $0x38] sm:$0xff]
        %v2145 = vld [vmem:[#allocation10 + $0x40] sm:$0xff]
        %v2146 = vld [vmem:[#allocation10 + $0x48] sm:$0xff]
        %v2147 = vld [vmem:[#allocation10 + $0x50] sm:$0xff]
        %v2148 = vld [vmem:[#allocation10 + $0x58] sm:$0xff]
        %v2149 = vld [vmem:[#allocation10 + $0x60] sm:$0xff]
        %v2150 = vld [vmem:[#allocation10 + $0x68] sm:$0xff]
        %v2151 = vld [vmem:[#allocation10 + $0x70] sm:$0xff]
        %v2152 = vld [vmem:[#allocation10 + $0x78] sm:$0xff]
        %v2153 = vld [vmem:[#allocation10 + $0x80] sm:$0xff]
        %v2154 = vld [vmem:[#allocation10 + $0x88] sm:$0xff]
        %v2155 = vld [vmem:[#allocation10 + $0x90] sm:$0xff]
        %v2156 = vld [vmem:[#allocation10 + $0x98] sm:$0xff]
        %v2157 = vld [vmem:[#allocation10 + $0xa0] sm:$0xff]
        %v2158 = vld [vmem:[#allocation10 + $0xa8] sm:$0xff]
        %v2159 = vld [vmem:[#allocation10 + $0xb0] sm:$0xff]
        %v2160 = vld [vmem:[#allocation10 + $0xb8] sm:$0xff]
        %v2161 = vld [vmem:[#allocation10 + $0xc0] sm:$0xff]
        %v2162 = vld [vmem:[#allocation10 + $0xc8] sm:$0xff]
        %v2163 = vld [vmem:[#allocation10 + $0xd0] sm:$0xff]
        %v2164 = vld [vmem:[#allocation10 + $0xd8] sm:$0xff]
        %v2165 = vld [vmem:[#allocation10 + $0xe0] sm:$0xff]
        %v2166 = vld [vmem:[#allocation10 + $0xe8] sm:$0xff]
        %v2167 = vld [vmem:[#allocation10 + $0xf0] sm:$0xff]
        %v2168 = vld [vmem:[#allocation10 + $0xf8] sm:$0xff]
        %v2169 = vld [vmem:[%s8] sm:$0xf]
        %v2171 = vperm.slane %v2169, 0
        %v2172 = vperm.slane %v2169, 1
        %v2173 = vperm.slane %v2169, 2
        %v2174 = vperm.slane %v2169, 3
        %v2211 = vunpack.c.l.b16 %v2137
        %v2212 = vunpack.c.h.b16 %v2137
        %v2213 = vunpack.c.l.b16 %v2138
        %v2214 = vunpack.c.h.b16 %v2138
        %v2215 = vunpack.c.l.b16 %v2139
        %v2216 = vunpack.c.h.b16 %v2139
        %v2217 = vunpack.c.l.b16 %v2140
        %v2218 = vunpack.c.h.b16 %v2140
        %v2219 = vunpack.c.l.b16 %v2141
        %v2220 = vunpack.c.h.b16 %v2141
        %v2221 = vunpack.c.l.b16 %v2142
        %v2222 = vunpack.c.h.b16 %v2142
        %v2223 = vunpack.c.l.b16 %v2143
        %v2224 = vunpack.c.h.b16 %v2143
        %v2225 = vunpack.c.l.b16 %v2144
        %v2226 = vunpack.c.h.b16 %v2144
        %v2227 = vunpack.c.l.b16 %v2145
        %v2228 = vunpack.c.h.b16 %v2145
        %v2229 = vunpack.c.l.b16 %v2146
        %v2230 = vunpack.c.h.b16 %v2146
        %v2231 = vunpack.c.l.b16 %v2147
        %v2232 = vunpack.c.h.b16 %v2147
        %v2233 = vunpack.c.l.b16 %v2148
        %v2234 = vunpack.c.h.b16 %v2148
        %v2235 = vunpack.c.l.b16 %v2149
        %v2236 = vunpack.c.h.b16 %v2149
        %v2237 = vunpack.c.l.b16 %v2150
        %v2238 = vunpack.c.h.b16 %v2150
        %v2239 = vunpack.c.l.b16 %v2151
        %v2240 = vunpack.c.h.b16 %v2151
        %v2241 = vunpack.c.l.b16 %v2152
        %v2242 = vunpack.c.h.b16 %v2152
        %v2243 = vunpack.c.l.b16 %v2153
        %v2244 = vunpack.c.h.b16 %v2153
        %v2245 = vunpack.c.l.b16 %v2154
        %v2246 = vunpack.c.h.b16 %v2154
        %v2247 = vunpack.c.l.b16 %v2155
        %v2248 = vunpack.c.h.b16 %v2155
        %v2249 = vunpack.c.l.b16 %v2156
        %v2250 = vunpack.c.h.b16 %v2156
        %v2251 = vunpack.c.l.b16 %v2157
        %v2252 = vunpack.c.h.b16 %v2157
        %v2253 = vunpack.c.l.b16 %v2158
        %v2254 = vunpack.c.h.b16 %v2158
        %v2255 = vunpack.c.l.b16 %v2159
        %v2256 = vunpack.c.h.b16 %v2159
        %v2257 = vunpack.c.l.b16 %v2160
        %v2258 = vunpack.c.h.b16 %v2160
        %v2259 = vunpack.c.l.b16 %v2161
        %v2260 = vunpack.c.h.b16 %v2161
        %v2261 = vunpack.c.l.b16 %v2162
        %v2262 = vunpack.c.h.b16 %v2162
        %v2263 = vunpack.c.l.b16 %v2163
        %v2264 = vunpack.c.h.b16 %v2163
        %v2265 = vunpack.c.l.b16 %v2164
        %v2266 = vunpack.c.h.b16 %v2164
        %v2267 = vunpack.c.l.b16 %v2165
        %v2268 = vunpack.c.h.b16 %v2165
        %v2269 = vunpack.c.l.b16 %v2166
        %v2270 = vunpack.c.h.b16 %v2166
        %v2271 = vunpack.c.l.b16 %v2167
        %v2272 = vunpack.c.h.b16 %v2167
        %v2273 = vunpack.c.l.b16 %v2168
        %v2274 = vunpack.c.h.b16 %v2168
        %v2275 = vpack.c.b16 %v2215, %v2211
        %v2276 = vpack.c.b16 %v2216, %v2212
        %v2277 = vpack.c.b16 %v2217, %v2213
        %v2278 = vpack.c.b16 %v2218, %v2214
        %v2279 = vpack.c.b16 %v2223, %v2219
        %v2280 = vpack.c.b16 %v2224, %v2220
        %v2281 = vpack.c.b16 %v2225, %v2221
        %v2282 = vpack.c.b16 %v2226, %v2222
        %v2283 = vpack.c.b16 %v2231, %v2227
        %v2284 = vpack.c.b16 %v2232, %v2228
        %v2285 = vpack.c.b16 %v2233, %v2229
        %v2286 = vpack.c.b16 %v2234, %v2230
        %v2287 = vpack.c.b16 %v2239, %v2235
        %v2288 = vpack.c.b16 %v2240, %v2236
        %v2289 = vpack.c.b16 %v2241, %v2237
        %v2290 = vpack.c.b16 %v2242, %v2238
        %v2291 = vpack.c.b16 %v2247, %v2243
        %v2292 = vpack.c.b16 %v2248, %v2244
        %v2293 = vpack.c.b16 %v2249, %v2245
        %v2294 = vpack.c.b16 %v2250, %v2246
        %v2295 = vpack.c.b16 %v2255, %v2251
        %v2296 = vpack.c.b16 %v2256, %v2252
        %v2297 = vpack.c.b16 %v2257, %v2253
        %v2298 = vpack.c.b16 %v2258, %v2254
        %v2299 = vpack.c.b16 %v2263, %v2259
        %v2300 = vpack.c.b16 %v2264, %v2260
        %v2301 = vpack.c.b16 %v2265, %v2261
        %v2302 = vpack.c.b16 %v2266, %v2262
        %v2303 = vpack.c.b16 %v2271, %v2267
        %v2304 = vpack.c.b16 %v2272, %v2268
        %v2305 = vpack.c.b16 %v2273, %v2269
        %v2306 = vpack.c.b16 %v2274, %v2270
        %2339 = vmatpush.bf16.msra.mxu0 %v2303
        %2340 = vmatpush.bf16.msra.mxu0 %v2299
        %2341 = vmatpush.bf16.msra.mxu0 %v2295
        %2342 = vmatpush.bf16.msra.mxu0 %v2291
        %2343 = vmatpush.bf16.msra.mxu0 %v2287
        %2344 = vmatpush.bf16.msra.mxu0 %v2283
        %2345 = vmatpush.bf16.msra.mxu0 %v2279
        %2346 = vmatpush.bf16.msra.mxu0 %v2275
        %2347 = vmatmul.bf16.gmra.mxu0 %v2133
        %v2348 = vpop.f32.mrf.mxu0
        %v2349 = vadd.f32 %v2171, %v2348
        %v2350 = vpop.f32.mrf.mxu0
        %v2351 = vadd.f32 %v2171, %v2350
        %2352 = vmatmul.bf16.gmra.mxu0 %v2134
        %v2353 = vpop.f32.mrf.mxu0
        %v2354 = vadd.f32 %v2171, %v2353
        %v2355 = vpop.f32.mrf.mxu0
        %v2356 = vadd.f32 %v2171, %v2355
        %2357 = vmatmul.bf16.gmra.mxu0 %v2135
        %v2358 = vpop.f32.mrf.mxu0
        %v2359 = vadd.f32 %v2171, %v2358
        %v2360 = vpop.f32.mrf.mxu0
        %v2361 = vadd.f32 %v2171, %v2360
        %2362 = vmatmul.bf16.gmra.mxu0 %v2136
        %v2363 = vpop.f32.mrf.mxu0
        %v2364 = vadd.f32 %v2171, %v2363
        %v2365 = vpop.f32.mrf.mxu0
        %v2366 = vadd.f32 %v2171, %v2365
        %2367 = vdwg.mxu0
        %2368 = vmatpush.bf16.msra.mxu0 %v2304
        %2369 = vmatpush.bf16.msra.mxu0 %v2300
        %2370 = vmatpush.bf16.msra.mxu0 %v2296
        %2371 = vmatpush.bf16.msra.mxu0 %v2292
        %2372 = vmatpush.bf16.msra.mxu0 %v2288
        %2373 = vmatpush.bf16.msra.mxu0 %v2284
        %2374 = vmatpush.bf16.msra.mxu0 %v2280
        %2375 = vmatpush.bf16.msra.mxu0 %v2276
        %2376 = vmatmul.bf16.gmra.mxu0 %v2133
        %v2377 = vpop.f32.mrf.mxu0
        %v2378 = vadd.f32 %v2172, %v2377
        %v2379 = vpop.f32.mrf.mxu0
        %v2380 = vadd.f32 %v2172, %v2379
        %2381 = vmatmul.bf16.gmra.mxu0 %v2134
        %v2382 = vpop.f32.mrf.mxu0
        %v2383 = vadd.f32 %v2172, %v2382
        %v2384 = vpop.f32.mrf.mxu0
        %v2385 = vadd.f32 %v2172, %v2384
        %2386 = vmatmul.bf16.gmra.mxu0 %v2135
        %v2387 = vpop.f32.mrf.mxu0
        %v2388 = vadd.f32 %v2172, %v2387
        %v2389 = vpop.f32.mrf.mxu0
        %v2390 = vadd.f32 %v2172, %v2389
        %2391 = vmatmul.bf16.gmra.mxu0 %v2136
        %v2392 = vpop.f32.mrf.mxu0
        %v2393 = vadd.f32 %v2172, %v2392
        %v2394 = vpop.f32.mrf.mxu0
        %v2395 = vadd.f32 %v2172, %v2394
        %2396 = vdwg.mxu0
        %2397 = vmatpush.bf16.msra.mxu0 %v2305
        %2398 = vmatpush.bf16.msra.mxu0 %v2301
        %2399 = vmatpush.bf16.msra.mxu0 %v2297
        %2400 = vmatpush.bf16.msra.mxu0 %v2293
        %2401 = vmatpush.bf16.msra.mxu0 %v2289
        %2402 = vmatpush.bf16.msra.mxu0 %v2285
        %2403 = vmatpush.bf16.msra.mxu0 %v2281
        %2404 = vmatpush.bf16.msra.mxu0 %v2277
        %2405 = vmatmul.bf16.gmra.mxu0 %v2133
        %v2406 = vpop.f32.mrf.mxu0
        %v2407 = vadd.f32 %v2173, %v2406
        %v2408 = vpop.f32.mrf.mxu0
        %v2409 = vadd.f32 %v2173, %v2408
        %2410 = vmatmul.bf16.gmra.mxu0 %v2134
        %v2411 = vpop.f32.mrf.mxu0
        %v2412 = vadd.f32 %v2173, %v2411
        %v2413 = vpop.f32.mrf.mxu0
        %v2414 = vadd.f32 %v2173, %v2413
        %2415 = vmatmul.bf16.gmra.mxu0 %v2135
        %v2416 = vpop.f32.mrf.mxu0
        %v2417 = vadd.f32 %v2173, %v2416
        %v2418 = vpop.f32.mrf.mxu0
        %v2419 = vadd.f32 %v2173, %v2418
        %2420 = vmatmul.bf16.gmra.mxu0 %v2136
        %v2421 = vpop.f32.mrf.mxu0
        %v2422 = vadd.f32 %v2173, %v2421
        %v2423 = vpop.f32.mrf.mxu0
        %v2424 = vadd.f32 %v2173, %v2423
        %2425 = vdwg.mxu0
        %2426 = vmatpush.bf16.msra.mxu0 %v2306
        %2427 = vmatpush.bf16.msra.mxu0 %v2302
        %2428 = vmatpush.bf16.msra.mxu0 %v2298
        %2429 = vmatpush.bf16.msra.mxu0 %v2294
        %2430 = vmatpush.bf16.msra.mxu0 %v2290
        %2431 = vmatpush.bf16.msra.mxu0 %v2286
        %2432 = vmatpush.bf16.msra.mxu0 %v2282
        %2433 = vmatpush.bf16.msra.mxu0 %v2278
        %2434 = vmatmul.bf16.gmra.mxu0 %v2133
        %v2435 = vpop.f32.mrf.mxu0
        %v2436 = vadd.f32 %v2174, %v2435
        %v2437 = vpop.f32.mrf.mxu0
        %v2438 = vadd.f32 %v2174, %v2437
        %2439 = vmatmul.bf16.gmra.mxu0 %v2134
        %v2440 = vpop.f32.mrf.mxu0
        %v2441 = vadd.f32 %v2174, %v2440
        %v2442 = vpop.f32.mrf.mxu0
        %v2443 = vadd.f32 %v2174, %v2442
        %2444 = vmatmul.bf16.gmra.mxu0 %v2135
        %v2445 = vpop.f32.mrf.mxu0
        %v2446 = vadd.f32 %v2174, %v2445
        %v2447 = vpop.f32.mrf.mxu0
        %v2448 = vadd.f32 %v2174, %v2447
        %2449 = vmatmul.bf16.gmra.mxu0 %v2136
        %v2450 = vpop.f32.mrf.mxu0
        %v2451 = vadd.f32 %v2174, %v2450
        %v2452 = vpop.f32.mrf.mxu0
        %v2453 = vadd.f32 %v2174, %v2452
        %2454 = vdwg.mxu0
        %v2455 = vmax.f32 %v2349, 0.0
        %v2456 = vmax.f32 %v2378, 0.0
        %v2457 = vmax.f32 %v2407, 0.0
        %v2458 = vmax.f32 %v2436, 0.0
        %v2459 = vmax.f32 %v2351, 0.0
        %v2460 = vmax.f32 %v2380, 0.0
        %v2461 = vmax.f32 %v2409, 0.0
        %v2462 = vmax.f32 %v2438, 0.0
        %v2463 = vmax.f32 %v2354, 0.0
        %v2464 = vmax.f32 %v2383, 0.0
        %v2465 = vmax.f32 %v2412, 0.0
        %v2466 = vmax.f32 %v2441, 0.0
        %v2467 = vmax.f32 %v2356, 0.0
        %v2468 = vmax.f32 %v2385, 0.0
        %v2469 = vmax.f32 %v2414, 0.0
        %v2470 = vmax.f32 %v2443, 0.0
        %v2471 = vmax.f32 %v2359, 0.0
        %v2472 = vmax.f32 %v2388, 0.0
        %v2473 = vmax.f32 %v2417, 0.0
        %v2474 = vmax.f32 %v2446, 0.0
        %v2475 = vmax.f32 %v2361, 0.0
        %v2476 = vmax.f32 %v2390, 0.0
        %v2477 = vmax.f32 %v2419, 0.0
        %v2478 = vmax.f32 %v2448, 0.0
        %v2479 = vmax.f32 %v2364, 0.0
        %v2480 = vmax.f32 %v2393, 0.0
        %v2481 = vmax.f32 %v2422, 0.0
        %v2482 = vmax.f32 %v2451, 0.0
        %v2483 = vmax.f32 %v2366, 0.0
        %v2484 = vmax.f32 %v2395, 0.0
        %v2485 = vmax.f32 %v2424, 0.0
        %v2486 = vmax.f32 %v2453, 0.0
        %v2487 = vpack.c.bf16 %v2459, %v2455
        %v2488 = vpack.c.bf16 %v2460, %v2456
        %v2489 = vpack.c.bf16 %v2461, %v2457
        %v2490 = vpack.c.bf16 %v2462, %v2458
        %v2491 = vpack.c.bf16 %v2467, %v2463
        %v2492 = vpack.c.bf16 %v2468, %v2464
        %v2493 = vpack.c.bf16 %v2469, %v2465
        %v2494 = vpack.c.bf16 %v2470, %v2466
        %v2495 = vpack.c.bf16 %v2475, %v2471
        %v2496 = vpack.c.bf16 %v2476, %v2472
        %v2497 = vpack.c.bf16 %v2477, %v2473
        %v2498 = vpack.c.bf16 %v2478, %v2474
        %v2499 = vpack.c.bf16 %v2483, %v2479
        %v2500 = vpack.c.bf16 %v2484, %v2480
        %v2501 = vpack.c.bf16 %v2485, %v2481
        %v2502 = vpack.c.bf16 %v2486, %v2482
        %v2503 = vld [vmem:[#allocation11] sm:$0xf]
        %v2504 = vld [vmem:[#allocation11 + $0x4] sm:$0xf]
        %v2505 = vld [vmem:[#allocation11 + $0x8] sm:$0xf]
        %v2506 = vld [vmem:[#allocation11 + $0xc] sm:$0xf]
        %v2507 = vld [vmem:[#allocation11 + $0x10] sm:$0xf]
        %v2508 = vld [vmem:[#allocation11 + $0x14] sm:$0xf]
        %v2509 = vld [vmem:[#allocation11 + $0x18] sm:$0xf]
        %v2510 = vld [vmem:[#allocation11 + $0x1c] sm:$0xf]
        %v2511 = vld [vmem:[#allocation11 + $0x20] sm:$0xf]
        %v2512 = vld [vmem:[#allocation11 + $0x24] sm:$0xf]
        %v2513 = vld [vmem:[#allocation11 + $0x28] sm:$0xf]
        %v2514 = vld [vmem:[#allocation11 + $0x2c] sm:$0xf]
        %v2515 = vld [vmem:[#allocation11 + $0x30] sm:$0xf]
        %v2516 = vld [vmem:[#allocation11 + $0x34] sm:$0xf]
        %v2517 = vld [vmem:[#allocation11 + $0x38] sm:$0xf]
        %v2518 = vld [vmem:[#allocation11 + $0x3c] sm:$0xf]
        %v2519 = vld [vmem:[#allocation11 + $0x40] sm:$0xf]
        %v2520 = vld [vmem:[#allocation11 + $0x44] sm:$0xf]
        %v2521 = vld [vmem:[#allocation11 + $0x48] sm:$0xf]
        %v2522 = vld [vmem:[#allocation11 + $0x4c] sm:$0xf]
        %v2523 = vld [vmem:[#allocation11 + $0x50] sm:$0xf]
        %v2524 = vld [vmem:[#allocation11 + $0x54] sm:$0xf]
        %v2525 = vld [vmem:[#allocation11 + $0x58] sm:$0xf]
        %v2526 = vld [vmem:[#allocation11 + $0x5c] sm:$0xf]
        %v2527 = vld [vmem:[#allocation11 + $0x60] sm:$0xf]
        %v2528 = vld [vmem:[#allocation11 + $0x64] sm:$0xf]
        %v2529 = vld [vmem:[#allocation11 + $0x68] sm:$0xf]
        %v2530 = vld [vmem:[#allocation11 + $0x6c] sm:$0xf]
        %v2531 = vld [vmem:[#allocation11 + $0x70] sm:$0xf]
        %v2532 = vld [vmem:[#allocation11 + $0x74] sm:$0xf]
        %v2533 = vld [vmem:[#allocation11 + $0x78] sm:$0xf]
        %v2534 = vld [vmem:[#allocation11 + $0x7c] sm:$0xf]
        %v2535 = vld [vmem:[#allocation11 + $0x80] sm:$0xf]
        %v2536 = vld [vmem:[#allocation11 + $0x84] sm:$0xf]
        %v2537 = vld [vmem:[#allocation11 + $0x88] sm:$0xf]
        %v2538 = vld [vmem:[#allocation11 + $0x8c] sm:$0xf]
        %v2539 = vld [vmem:[#allocation11 + $0x90] sm:$0xf]
        %v2540 = vld [vmem:[#allocation11 + $0x94] sm:$0xf]
        %v2541 = vld [vmem:[#allocation11 + $0x98] sm:$0xf]
        %v2542 = vld [vmem:[#allocation11 + $0x9c] sm:$0xf]
        %v2543 = vld [vmem:[#allocation11 + $0xa0] sm:$0xf]
        %v2544 = vld [vmem:[#allocation11 + $0xa4] sm:$0xf]
        %v2545 = vld [vmem:[#allocation11 + $0xa8] sm:$0xf]
        %v2546 = vld [vmem:[#allocation11 + $0xac] sm:$0xf]
        %v2547 = vld [vmem:[#allocation11 + $0xb0] sm:$0xf]
        %v2548 = vld [vmem:[#allocation11 + $0xb4] sm:$0xf]
        %v2549 = vld [vmem:[#allocation11 + $0xb8] sm:$0xf]
        %v2550 = vld [vmem:[#allocation11 + $0xbc] sm:$0xf]
        %v2551 = vld [vmem:[#allocation11 + $0xc0] sm:$0xf]
        %v2552 = vld [vmem:[#allocation11 + $0xc4] sm:$0xf]
        %v2553 = vld [vmem:[#allocation11 + $0xc8] sm:$0xf]
        %v2554 = vld [vmem:[#allocation11 + $0xcc] sm:$0xf]
        %v2555 = vld [vmem:[#allocation11 + $0xd0] sm:$0xf]
        %v2556 = vld [vmem:[#allocation11 + $0xd4] sm:$0xf]
        %v2557 = vld [vmem:[#allocation11 + $0xd8] sm:$0xf]
        %v2558 = vld [vmem:[#allocation11 + $0xdc] sm:$0xf]
        %v2559 = vld [vmem:[#allocation11 + $0xe0] sm:$0xf]
        %v2560 = vld [vmem:[#allocation11 + $0xe4] sm:$0xf]
        %v2561 = vld [vmem:[#allocation11 + $0xe8] sm:$0xf]
        %v2562 = vld [vmem:[#allocation11 + $0xec] sm:$0xf]
        %v2563 = vld [vmem:[#allocation11 + $0xf0] sm:$0xf]
        %v2564 = vld [vmem:[#allocation11 + $0xf4] sm:$0xf]
        %v2565 = vld [vmem:[#allocation11 + $0xf8] sm:$0xf]
        %v2566 = vld [vmem:[#allocation11 + $0xfc] sm:$0xf]
        %v2567 = vld [vmem:[%s10] sm:$0x1]
        %v2569 = vperm.slane %v2567, 0
        %v2635 = vunpack.c.l.b16 %v2503
        %v2636 = vunpack.c.l.b16 %v2504
        %v2637 = vunpack.c.l.b16 %v2505
        %v2638 = vunpack.c.l.b16 %v2506
        %v2639 = vunpack.c.l.b16 %v2507
        %v2640 = vunpack.c.l.b16 %v2508
        %v2641 = vunpack.c.l.b16 %v2509
        %v2642 = vunpack.c.l.b16 %v2510
        %v2643 = vunpack.c.l.b16 %v2511
        %v2644 = vunpack.c.l.b16 %v2512
        %v2645 = vunpack.c.l.b16 %v2513
        %v2646 = vunpack.c.l.b16 %v2514
        %v2647 = vunpack.c.l.b16 %v2515
        %v2648 = vunpack.c.l.b16 %v2516
        %v2649 = vunpack.c.l.b16 %v2517
        %v2650 = vunpack.c.l.b16 %v2518
        %v2651 = vunpack.c.l.b16 %v2519
        %v2652 = vunpack.c.l.b16 %v2520
        %v2653 = vunpack.c.l.b16 %v2521
        %v2654 = vunpack.c.l.b16 %v2522
        %v2655 = vunpack.c.l.b16 %v2523
        %v2656 = vunpack.c.l.b16 %v2524
        %v2657 = vunpack.c.l.b16 %v2525
        %v2658 = vunpack.c.l.b16 %v2526
        %v2659 = vunpack.c.l.b16 %v2527
        %v2660 = vunpack.c.l.b16 %v2528
        %v2661 = vunpack.c.l.b16 %v2529
        %v2662 = vunpack.c.l.b16 %v2530
        %v2663 = vunpack.c.l.b16 %v2531
        %v2664 = vunpack.c.l.b16 %v2532
        %v2665 = vunpack.c.l.b16 %v2533
        %v2666 = vunpack.c.l.b16 %v2534
        %v2667 = vunpack.c.l.b16 %v2535
        %v2668 = vunpack.c.l.b16 %v2536
        %v2669 = vunpack.c.l.b16 %v2537
        %v2670 = vunpack.c.l.b16 %v2538
        %v2671 = vunpack.c.l.b16 %v2539
        %v2672 = vunpack.c.l.b16 %v2540
        %v2673 = vunpack.c.l.b16 %v2541
        %v2674 = vunpack.c.l.b16 %v2542
        %v2675 = vunpack.c.l.b16 %v2543
        %v2676 = vunpack.c.l.b16 %v2544
        %v2677 = vunpack.c.l.b16 %v2545
        %v2678 = vunpack.c.l.b16 %v2546
        %v2679 = vunpack.c.l.b16 %v2547
        %v2680 = vunpack.c.l.b16 %v2548
        %v2681 = vunpack.c.l.b16 %v2549
        %v2682 = vunpack.c.l.b16 %v2550
        %v2683 = vunpack.c.l.b16 %v2551
        %v2684 = vunpack.c.l.b16 %v2552
        %v2685 = vunpack.c.l.b16 %v2553
        %v2686 = vunpack.c.l.b16 %v2554
        %v2687 = vunpack.c.l.b16 %v2555
        %v2688 = vunpack.c.l.b16 %v2556
        %v2689 = vunpack.c.l.b16 %v2557
        %v2690 = vunpack.c.l.b16 %v2558
        %v2691 = vunpack.c.l.b16 %v2559
        %v2692 = vunpack.c.l.b16 %v2560
        %v2693 = vunpack.c.l.b16 %v2561
        %v2694 = vunpack.c.l.b16 %v2562
        %v2695 = vunpack.c.l.b16 %v2563
        %v2696 = vunpack.c.l.b16 %v2564
        %v2697 = vunpack.c.l.b16 %v2565
        %v2698 = vunpack.c.l.b16 %v2566
        %v2699 = vpack.c.b16 %v2636, %v2635
        %v2700 = vpack.c.b16 %v2638, %v2637
        %v2701 = vpack.c.b16 %v2640, %v2639
        %v2702 = vpack.c.b16 %v2642, %v2641
        %v2703 = vpack.c.b16 %v2644, %v2643
        %v2704 = vpack.c.b16 %v2646, %v2645
        %v2705 = vpack.c.b16 %v2648, %v2647
        %v2706 = vpack.c.b16 %v2650, %v2649
        %v2707 = vpack.c.b16 %v2652, %v2651
        %v2708 = vpack.c.b16 %v2654, %v2653
        %v2709 = vpack.c.b16 %v2656, %v2655
        %v2710 = vpack.c.b16 %v2658, %v2657
        %v2711 = vpack.c.b16 %v2660, %v2659
        %v2712 = vpack.c.b16 %v2662, %v2661
        %v2713 = vpack.c.b16 %v2664, %v2663
        %v2714 = vpack.c.b16 %v2666, %v2665
        %v2715 = vpack.c.b16 %v2668, %v2667
        %v2716 = vpack.c.b16 %v2670, %v2669
        %v2717 = vpack.c.b16 %v2672, %v2671
        %v2718 = vpack.c.b16 %v2674, %v2673
        %v2719 = vpack.c.b16 %v2676, %v2675
        %v2720 = vpack.c.b16 %v2678, %v2677
        %v2721 = vpack.c.b16 %v2680, %v2679
        %v2722 = vpack.c.b16 %v2682, %v2681
        %v2723 = vpack.c.b16 %v2684, %v2683
        %v2724 = vpack.c.b16 %v2686, %v2685
        %v2725 = vpack.c.b16 %v2688, %v2687
        %v2726 = vpack.c.b16 %v2690, %v2689
        %v2727 = vpack.c.b16 %v2692, %v2691
        %v2728 = vpack.c.b16 %v2694, %v2693
        %v2729 = vpack.c.b16 %v2696, %v2695
        %v2730 = vpack.c.b16 %v2698, %v2697
        %2763 = vmatpush.bf16.msra.mxu0 %v2706
        %2764 = vmatpush.bf16.msra.mxu0 %v2705
        %2765 = vmatpush.bf16.msra.mxu0 %v2704
        %2766 = vmatpush.bf16.msra.mxu0 %v2703
        %2767 = vmatpush.bf16.msra.mxu0 %v2702
        %2768 = vmatpush.bf16.msra.mxu0 %v2701
        %2769 = vmatpush.bf16.msra.mxu0 %v2700
        %2770 = vmatpush.bf16.msra.mxu0 %v2699
        %2771 = vmatmul.bf16.gmra.mxu0 %v2487
        %v2772 = vpop.f32.mrf.mxu0
        %v2773 = vadd.f32 %v2569, %v2772
        %v2774 = vpop.f32.mrf.mxu0
        %v2775 = vadd.f32 %v2569, %v2774
        %2776 = vmatmul.bf16.gmra.mxu0 %v2491
        %v2777 = vpop.f32.mrf.mxu0
        %v2778 = vadd.f32 %v2569, %v2777
        %v2779 = vpop.f32.mrf.mxu0
        %v2780 = vadd.f32 %v2569, %v2779
        %2781 = vmatmul.bf16.gmra.mxu0 %v2495
        %v2782 = vpop.f32.mrf.mxu0
        %v2783 = vadd.f32 %v2569, %v2782
        %v2784 = vpop.f32.mrf.mxu0
        %v2785 = vadd.f32 %v2569, %v2784
        %2786 = vmatmul.bf16.gmra.mxu0 %v2499
        %v2787 = vpop.f32.mrf.mxu0
        %v2788 = vadd.f32 %v2569, %v2787
        %v2789 = vpop.f32.mrf.mxu0
        %v2790 = vadd.f32 %v2569, %v2789
        %2791 = vdwg.mxu0
        %2792 = vmatpush.bf16.msra.mxu0 %v2714
        %2793 = vmatpush.bf16.msra.mxu0 %v2713
        %2794 = vmatpush.bf16.msra.mxu0 %v2712
        %2795 = vmatpush.bf16.msra.mxu0 %v2711
        %2796 = vmatpush.bf16.msra.mxu0 %v2710
        %2797 = vmatpush.bf16.msra.mxu0 %v2709
        %2798 = vmatpush.bf16.msra.mxu0 %v2708
        %2799 = vmatpush.bf16.msra.mxu0 %v2707
        %2800 = vmatmul.bf16.gmra.mxu0 %v2488
        %v2801 = vpop.f32.mrf.mxu0
        %v2802 = vadd.f32 %v2773, %v2801
        %v2803 = vpop.f32.mrf.mxu0
        %v2804 = vadd.f32 %v2775, %v2803
        %2805 = vmatmul.bf16.gmra.mxu0 %v2492
        %v2806 = vpop.f32.mrf.mxu0
        %v2807 = vadd.f32 %v2778, %v2806
        %v2808 = vpop.f32.mrf.mxu0
        %v2809 = vadd.f32 %v2780, %v2808
        %2810 = vmatmul.bf16.gmra.mxu0 %v2496
        %v2811 = vpop.f32.mrf.mxu0
        %v2812 = vadd.f32 %v2783, %v2811
        %v2813 = vpop.f32.mrf.mxu0
        %v2814 = vadd.f32 %v2785, %v2813
        %2815 = vmatmul.bf16.gmra.mxu0 %v2500
        %v2816 = vpop.f32.mrf.mxu0
        %v2817 = vadd.f32 %v2788, %v2816
        %v2818 = vpop.f32.mrf.mxu0
        %v2819 = vadd.f32 %v2790, %v2818
        %2820 = vdwg.mxu0
        %2821 = vmatpush.bf16.msra.mxu0 %v2722
        %2822 = vmatpush.bf16.msra.mxu0 %v2721
        %2823 = vmatpush.bf16.msra.mxu0 %v2720
        %2824 = vmatpush.bf16.msra.mxu0 %v2719
        %2825 = vmatpush.bf16.msra.mxu0 %v2718
        %2826 = vmatpush.bf16.msra.mxu0 %v2717
        %2827 = vmatpush.bf16.msra.mxu0 %v2716
        %2828 = vmatpush.bf16.msra.mxu0 %v2715
        %2829 = vmatmul.bf16.gmra.mxu0 %v2489
        %v2830 = vpop.f32.mrf.mxu0
        %v2831 = vadd.f32 %v2802, %v2830
        %v2832 = vpop.f32.mrf.mxu0
        %v2833 = vadd.f32 %v2804, %v2832
        %2834 = vmatmul.bf16.gmra.mxu0 %v2493
        %v2835 = vpop.f32.mrf.mxu0
        %v2836 = vadd.f32 %v2807, %v2835
        %v2837 = vpop.f32.mrf.mxu0
        %v2838 = vadd.f32 %v2809, %v2837
        %2839 = vmatmul.bf16.gmra.mxu0 %v2497
        %v2840 = vpop.f32.mrf.mxu0
        %v2841 = vadd.f32 %v2812, %v2840
        %v2842 = vpop.f32.mrf.mxu0
        %v2843 = vadd.f32 %v2814, %v2842
        %2844 = vmatmul.bf16.gmra.mxu0 %v2501
        %v2845 = vpop.f32.mrf.mxu0
        %v2846 = vadd.f32 %v2817, %v2845
        %v2847 = vpop.f32.mrf.mxu0
        %v2848 = vadd.f32 %v2819, %v2847
        %2849 = vdwg.mxu0
        %2850 = vmatpush.bf16.msra.mxu0 %v2730
        %2851 = vmatpush.bf16.msra.mxu0 %v2729
        %2852 = vmatpush.bf16.msra.mxu0 %v2728
        %2853 = vmatpush.bf16.msra.mxu0 %v2727
        %2854 = vmatpush.bf16.msra.mxu0 %v2726
        %2855 = vmatpush.bf16.msra.mxu0 %v2725
        %2856 = vmatpush.bf16.msra.mxu0 %v2724
        %2857 = vmatpush.bf16.msra.mxu0 %v2723
        %2858 = vmatmul.bf16.gmra.mxu0 %v2490
        %v2859 = vpop.f32.mrf.mxu0
        %v2860 = vadd.f32 %v2831, %v2859
        %v2861 = vpop.f32.mrf.mxu0
        %v2862 = vadd.f32 %v2833, %v2861
        %2863 = vmatmul.bf16.gmra.mxu0 %v2494
        %v2864 = vpop.f32.mrf.mxu0
        %v2865 = vadd.f32 %v2836, %v2864
        %v2866 = vpop.f32.mrf.mxu0
        %v2867 = vadd.f32 %v2838, %v2866
        %2868 = vmatmul.bf16.gmra.mxu0 %v2498
        %v2869 = vpop.f32.mrf.mxu0
        %v2870 = vadd.f32 %v2841, %v2869
        %v2871 = vpop.f32.mrf.mxu0
        %v2872 = vadd.f32 %v2843, %v2871
        %2873 = vmatmul.bf16.gmra.mxu0 %v2502
        %v2874 = vpop.f32.mrf.mxu0
        %v2875 = vadd.f32 %v2846, %v2874
        %v2876 = vpop.f32.mrf.mxu0
        %v2877 = vadd.f32 %v2848, %v2876
        %2878 = vdwg.mxu0
        %v2879 = vadd.f32 %v2125, %v2860
        %v2880 = vadd.f32 %v2126, %v2862
        %v2881 = vadd.f32 %v2127, %v2865
        %v2882 = vadd.f32 %v2128, %v2867
        %v2883 = vadd.f32 %v2129, %v2870
        %v2884 = vadd.f32 %v2130, %v2872
        %v2885 = vadd.f32 %v2131, %v2875
        %v2886 = vadd.f32 %v2132, %v2877
        %2887 = vadd.xlane.f32.xlu0 %v2879
        %v2888 = vpop.xlane.xlu0 %2887
        %2889 = vadd.xlane.f32.xlu0 %v2880
        %v2890 = vpop.xlane.xlu0 %2889
        %2891 = vadd.xlane.f32.xlu0 %v2881
        %v2892 = vpop.xlane.xlu0 %2891
        %2893 = vadd.xlane.f32.xlu0 %v2882
        %v2894 = vpop.xlane.xlu0 %2893
        %2895 = vadd.xlane.f32.xlu0 %v2883
        %v2896 = vpop.xlane.xlu0 %2895
        %2897 = vadd.xlane.f32.xlu0 %v2884
        %v2898 = vpop.xlane.xlu0 %2897
        %2899 = vadd.xlane.f32.xlu0 %v2885
        %v2900 = vpop.xlane.xlu0 %2899
        %2901 = vadd.xlane.f32.xlu0 %v2886
        %v2902 = vpop.xlane.xlu0 %2901
        %v2903 = vmul.f32 %v2888, %v1964
        %v2904 = vmul.f32 %v2890, %v1964
        %v2905 = vmul.f32 %v2892, %v1964
        %v2906 = vmul.f32 %v2894, %v1964
        %v2907 = vmul.f32 %v2896, %v1964
        %v2908 = vmul.f32 %v2898, %v1964
        %v2909 = vmul.f32 %v2900, %v1964
        %v2910 = vmul.f32 %v2902, %v1964
        %v2911 = vsub.f32 %v2879, %v2903
        %v2912 = vsub.f32 %v2880, %v2904
        %v2913 = vsub.f32 %v2881, %v2905
        %v2914 = vsub.f32 %v2882, %v2906
        %v2915 = vsub.f32 %v2883, %v2907
        %v2916 = vsub.f32 %v2884, %v2908
        %v2917 = vsub.f32 %v2885, %v2909
        %v2918 = vsub.f32 %v2886, %v2910
        %v2919 = vmul.f32 %v2911, %v2911
        %v2920 = vmul.f32 %v2912, %v2912
        %v2921 = vmul.f32 %v2913, %v2913
        %v2922 = vmul.f32 %v2914, %v2914
        %v2923 = vmul.f32 %v2915, %v2915
        %v2924 = vmul.f32 %v2916, %v2916
        %v2925 = vmul.f32 %v2917, %v2917
        %v2926 = vmul.f32 %v2918, %v2918
        %2927 = vadd.xlane.f32.xlu0 %v2919
        %v2928 = vpop.xlane.xlu0 %2927
        %2929 = vadd.xlane.f32.xlu0 %v2920
        %v2930 = vpop.xlane.xlu0 %2929
        %2931 = vadd.xlane.f32.xlu0 %v2921
        %v2932 = vpop.xlane.xlu0 %2931
        %2933 = vadd.xlane.f32.xlu0 %v2922
        %v2934 = vpop.xlane.xlu0 %2933
        %2935 = vadd.xlane.f32.xlu0 %v2923
        %v2936 = vpop.xlane.xlu0 %2935
        %2937 = vadd.xlane.f32.xlu0 %v2924
        %v2938 = vpop.xlane.xlu0 %2937
        %2939 = vadd.xlane.f32.xlu0 %v2925
        %v2940 = vpop.xlane.xlu0 %2939
        %2941 = vadd.xlane.f32.xlu0 %v2926
        %v2942 = vpop.xlane.xlu0 %2941
        %v2943 = vmul.f32 %v2928, %v1964
        %v2944 = vmul.f32 %v2930, %v1964
        %v2945 = vmul.f32 %v2932, %v1964
        %v2946 = vmul.f32 %v2934, %v1964
        %v2947 = vmul.f32 %v2936, %v1964
        %v2948 = vmul.f32 %v2938, %v1964
        %v2949 = vmul.f32 %v2940, %v1964
        %v2950 = vmul.f32 %v2942, %v1964
        %v2951 = vadd.f32 %v2943, 1e-05
        %v2952 = vadd.f32 %v2944, 1e-05
        %v2953 = vadd.f32 %v2945, 1e-05
        %v2954 = vadd.f32 %v2946, 1e-05
        %v2955 = vadd.f32 %v2947, 1e-05
        %v2956 = vadd.f32 %v2948, 1e-05
        %v2957 = vadd.f32 %v2949, 1e-05
        %v2958 = vadd.f32 %v2950, 1e-05
        %v2959 = vrsqrt.pop %v2951
        %v2960 = vmul.f32 %v2959, %v2951
        %v2961 = vmul.f32 %v2960, %v2959
        %v2962 = vmul.f32 0.5, %v2961
        %v2963 = vsub.f32 1.5, %v2962
        %v2964 = vmul.f32 %v2959, %v2963
        %vm2965 = vweird.f32 %v2951
        %vm2966 = vweird.f32 %v2959
        %vm2967 = vmor %vm2965, %vm2966
        %v2968 = vsel %vm2967, %v2959, %v2964
        %v2969 = vrsqrt.pop %v2952
        %v2970 = vmul.f32 %v2969, %v2952
        %v2971 = vmul.f32 %v2970, %v2969
        %v2972 = vmul.f32 0.5, %v2971
        %v2973 = vsub.f32 1.5, %v2972
        %v2974 = vmul.f32 %v2969, %v2973
        %vm2975 = vweird.f32 %v2952
        %vm2976 = vweird.f32 %v2969
        %vm2977 = vmor %vm2975, %vm2976
        %v2978 = vsel %vm2977, %v2969, %v2974
        %v2979 = vrsqrt.pop %v2953
        %v2980 = vmul.f32 %v2979, %v2953
        %v2981 = vmul.f32 %v2980, %v2979
        %v2982 = vmul.f32 0.5, %v2981
        %v2983 = vsub.f32 1.5, %v2982
        %v2984 = vmul.f32 %v2979, %v2983
        %vm2985 = vweird.f32 %v2953
        %vm2986 = vweird.f32 %v2979
        %vm2987 = vmor %vm2985, %vm2986
        %v2988 = vsel %vm2987, %v2979, %v2984
        %v2989 = vrsqrt.pop %v2954
        %v2990 = vmul.f32 %v2989, %v2954
        %v2991 = vmul.f32 %v2990, %v2989
        %v2992 = vmul.f32 0.5, %v2991
        %v2993 = vsub.f32 1.5, %v2992
        %v2994 = vmul.f32 %v2989, %v2993
        %vm2995 = vweird.f32 %v2954
        %vm2996 = vweird.f32 %v2989
        %vm2997 = vmor %vm2995, %vm2996
        %v2998 = vsel %vm2997, %v2989, %v2994
        %v2999 = vrsqrt.pop %v2955
        %v3000 = vmul.f32 %v2999, %v2955
        %v3001 = vmul.f32 %v3000, %v2999
        %v3002 = vmul.f32 0.5, %v3001
        %v3003 = vsub.f32 1.5, %v3002
        %v3004 = vmul.f32 %v2999, %v3003
        %vm3005 = vweird.f32 %v2955
        %vm3006 = vweird.f32 %v2999
        %vm3007 = vmor %vm3005, %vm3006
        %v3008 = vsel %vm3007, %v2999, %v3004
        %v3009 = vrsqrt.pop %v2956
        %v3010 = vmul.f32 %v3009, %v2956
        %v3011 = vmul.f32 %v3010, %v3009
        %v3012 = vmul.f32 0.5, %v3011
        %v3013 = vsub.f32 1.5, %v3012
        %v3014 = vmul.f32 %v3009, %v3013
        %vm3015 = vweird.f32 %v2956
        %vm3016 = vweird.f32 %v3009
        %vm3017 = vmor %vm3015, %vm3016
        %v3018 = vsel %vm3017, %v3009, %v3014
        %v3019 = vrsqrt.pop %v2957
        %v3020 = vmul.f32 %v3019, %v2957
        %v3021 = vmul.f32 %v3020, %v3019
        %v3022 = vmul.f32 0.5, %v3021
        %v3023 = vsub.f32 1.5, %v3022
        %v3024 = vmul.f32 %v3019, %v3023
        %vm3025 = vweird.f32 %v2957
        %vm3026 = vweird.f32 %v3019
        %vm3027 = vmor %vm3025, %vm3026
        %v3028 = vsel %vm3027, %v3019, %v3024
        %v3029 = vrsqrt.pop %v2958
        %v3030 = vmul.f32 %v3029, %v2958
        %v3031 = vmul.f32 %v3030, %v3029
        %v3032 = vmul.f32 0.5, %v3031
        %v3033 = vsub.f32 1.5, %v3032
        %v3034 = vmul.f32 %v3029, %v3033
        %vm3035 = vweird.f32 %v2958
        %vm3036 = vweird.f32 %v3029
        %vm3037 = vmor %vm3035, %vm3036
        %v3038 = vsel %vm3037, %v3029, %v3034
        %v3039 = vmul.f32 %v2911, %v2968
        %v3040 = vmul.f32 %v2912, %v2978
        %v3041 = vmul.f32 %v2913, %v2988
        %v3042 = vmul.f32 %v2914, %v2998
        %v3043 = vmul.f32 %v2915, %v3008
        %v3044 = vmul.f32 %v2916, %v3018
        %v3045 = vmul.f32 %v2917, %v3028
        %v3046 = vmul.f32 %v2918, %v3038
        %v3047 = vld [vmem:[%s11] sm:$0x1]
        %v3049 = vperm.slane %v3047, 0
        %v3051 = vmul.f32 %v3039, %v3049
        %v3052 = vmul.f32 %v3040, %v3049
        %v3053 = vmul.f32 %v3041, %v3049
        %v3054 = vmul.f32 %v3042, %v3049
        %v3055 = vmul.f32 %v3043, %v3049
        %v3056 = vmul.f32 %v3044, %v3049
        %v3057 = vmul.f32 %v3045, %v3049
        %v3058 = vmul.f32 %v3046, %v3049
        %v3059 = vld [vmem:[%s12] sm:$0x1]
        %v3061 = vperm.slane %v3059, 0
        %v3063 = vadd.f32 %v3051, %v3061
        %v3064 = vadd.f32 %v3052, %v3061
        %v3065 = vadd.f32 %v3053, %v3061
        %v3066 = vadd.f32 %v3054, %v3061
        %v3067 = vadd.f32 %v3055, %v3061
        %v3068 = vadd.f32 %v3056, %v3061
        %v3069 = vadd.f32 %v3057, %v3061
        %v3070 = vadd.f32 %v3058, %v3061
        %3071 = vst [vmem:[%s541] sm:$0xff] %v3063
        %3072 = vst [vmem:[%s541 + $0x8] sm:$0xff] %v3064
        %3073 = vst [vmem:[%s541 + $0x10] sm:$0xff] %v3065
        %3074 = vst [vmem:[%s541 + $0x18] sm:$0xff] %v3066
        %3075 = vst [vmem:[%s541 + $0x20] sm:$0xff] %v3067
        %3076 = vst [vmem:[%s541 + $0x28] sm:$0xff] %v3068
        %3077 = vst [vmem:[%s541 + $0x30] sm:$0xff] %v3069
        %3078 = vst [vmem:[%s541 + $0x38] sm:$0xff] %v3070
        %s3079 = sand.u32 %s319, 1
        %s3080 = scalar_lea.sflag [#allocation4], %s3079
        %s3081 = sand.u32 %s319, 1
        %s3082 = smul.addr %s3081, 64
        %s3083 = scalar_lea.vmem [#allocation13], %s3082
        // Predicated region
        $region97: #{tpu_custom_call.1} parent=71 // pred_check
          %p3084 = pneg %p329
        $region98: #{tpu_custom_call.1} parent=71 // pred_check_branch
          %3086 = sbr.rel (%p3084) target = $region100
        $region99: #{tpu_custom_call.1} parent=71 // pred_region
          %3088 = vsyncadd %s3080, 0
          %s3089 = smul.addr %s33, 8
          %s3090 = smul.addr %s3089, 8
          %s3091 = scalar_lea.hbm %s13, %s3090
          %s3092 = sshll.u32 %s3083, 4
          %s3093 = int_to_ptr.vmem [resolvable:$true] %s3092
          %s3094 = sshll.u32 %s3091, 4
          %s3095 = int_to_ptr.hbm [resolvable:$true] %s3094
          %3100 = dma.vmem_to_hbm [thread:$0]  %s3093, 1024, %s3095, %s3080, 128, 128, 8
        $region100: #{tpu_custom_call.1} parent=71 // pred_fallthru
          _
      $region72: #{tpu_custom_call.1} parent=5 // pred_fallthru
        _
      %p3101 = scmp.le.s32.totalorder 2, %s28
      // Predicated region
      $region101: #{tpu_custom_call.1} parent=5 // pred_check
        %p3102 = pneg %p3101
      $region102: #{tpu_custom_call.1} parent=5 // pred_check_branch
        %3104 = sbr.rel (%p3102) target = $region104
      $region103: #{tpu_custom_call.1} parent=5 // pred_region
        %s3105 = ssub.s32 %s28, 2
        // Predicated region
        $region105: #{tpu_custom_call.1} parent=103 // pred_check
          %p3106 = pneg %p335
        $region106: #{tpu_custom_call.1} parent=103 // pred_check_branch
          %3108 = sbr.rel (%p3106) target = $region108
        $region107: #{tpu_custom_call.1} parent=103 // pred_region
          %s3109 = sand.u32 %s320, 1
          %s3110 = scalar_lea.sflag [#allocation4], %s3109
          %s3111 = sand.u32 %s320, 1
          %s3112 = smul.addr %s3111, 64
          %s3113 = scalar_lea.vmem [#allocation13], %s3112
          %3115 = dma.done %s3110, 1024
        $region108: #{tpu_custom_call.1} parent=103 // pred_fallthru
          _
      $region104: #{tpu_custom_call.1} parent=5 // pred_fallthru
        _
    $region6: #{tpu_custom_call.1} parent=1 // loop_footer
      %s32 = sadd.s32 1, %s28
    $region7: #{tpu_custom_call.1} parent=1 // loop_footer_branch
      %27 = sbr.rel target = $region3
    $region8: #{tpu_custom_call.1} parent=1 // loop_exit
      _
    %3116 = vsyncpa [#allocation3], 1
    %s3117 = scalar_lea.sflag [#allocation3], 1
    %3118 = vsyncpa %s3117, 1
    %3119 = vsyncpa [#allocation6], 1
    %3120 = vsyncpa [#allocation9], 1
    %3121 = vsyncpa [#allocation12], 1
    %3122 = vsyncpa [#allocation4], 1
    %s3123 = scalar_lea.sflag [#allocation4], 1
    %3124 = vsyncpa %s3123, 1

</llo_original>
